<compile_context>
chip_gen: v7x
topology: tpu7x:2x2x1
jax: 0.10.0
libtpu: 0.0.40
codegen_flags: <defaults>
</compile_context>

<pallas_src>
import functools

import jax
import jax.numpy as jnp
import numpy as np
from jax.experimental import pallas as pl
from jax.experimental.pallas import tpu as pltpu
from jax.scipy.special import erf as jax_erf


# --------------------------- in-kernel helpers --------------------------------
def _layernorm(x, gamma, beta, eps=1e-5):
    # torch.nn.LayerNorm: biased variance, eps inside the sqrt.
    mu = jnp.mean(x, axis=-1, keepdims=True)
    xc = x - mu
    var = jnp.mean(xc * xc, axis=-1, keepdims=True)
    return xc * jax.lax.rsqrt(var + eps) * gamma + beta


def _erf_approx(x):
    # Abramowitz & Stegun 7.1.26 rational approximation (|err| < 1.5e-7).
    # Built only from ops with guaranteed Mosaic lowerings (exp, mul, where).
    a1, a2, a3, a4, a5 = (0.254829592, -0.284496736, 1.421413741,
                          -1.453152027, 1.061405429)
    p = 0.3275911
    z = jnp.abs(x)
    t = 1.0 / (1.0 + p * z)
    poly = t * (a1 + t * (a2 + t * (a3 + t * (a4 + t * a5))))
    r = 1.0 - poly * jnp.exp(-z * z)
    return jnp.where(x >= 0.0, r, -r)


def _gelu(x):
    # Exact (erf-based) GELU, matching torch.nn.GELU() default (approximate='none').
    return 0.5 * x * (1.0 + _erf_approx(x * 0.7071067811865476))


# ----------------------------- Pallas kernel ----------------------------------
def transformer_layer_kernel(x_ref, ln1g_ref, ln1b_ref, wq_ref, wk_ref, wv_ref,
                             wphi_ref, bphi_ref, wout_ref, bout_ref,
                             ln2g_ref, ln2b_ref, w1_ref, b1_ref, w2_ref, b2_ref,
                             o_ref, attn_acc, *, heads, dim_head):
    # x_ref:  (1, N, DIM)     current batch element
    # wq/wk/wv_ref: (H, DIM, D)  per-head projection weight stacks (pre-transposed)
    # wphi_ref: (D, D), bphi_ref: (1, D)            G_Block linear
    # wout_ref: (INNER, DIM), bout_ref: (1, DIM)    output projection
    # w1_ref: (DIM, MLP), b1_ref: (1, MLP); w2_ref: (MLP, DIM), b2_ref: (1, DIM)
    # ln*_ref: (1, DIM)       LayerNorm affine params
    # attn_acc: VMEM scratch (N, INNER)  -- merged head outputs
    n = x_ref.shape[1]
    d = dim_head
    scale = float(d) ** -0.5
    inv_rest = 1.0 / float(n - 1)

    x = x_ref[0]                                                    # (N, DIM)

    # ---------------- PreNorm 1 ------------------------------------------------
    xn = _layernorm(x, ln1g_ref[...], ln1b_ref[...])

    # ---------------- multi-head attention + G_Block ---------------------------
    for h in range(heads):                                          # static unroll
        # Per-head projections: full-DIM MXU contraction, leading-axis weight
        # indexing (no sub-128-lane slicing of activations).
        q = jnp.dot(xn, wq_ref[h], preferred_element_type=jnp.float32)   # (N, D)
        k = jnp.dot(xn, wk_ref[h], preferred_element_type=jnp.float32)   # (N, D)
        v = jnp.dot(xn, wv_ref[h], preferred_element_type=jnp.float32)   # (N, D)

        dots = jnp.dot(q, k.T, preferred_element_type=jnp.float32) * scale  # (N, N)
        dots = dots - jnp.max(dots, axis=-1, keepdims=True)         # stable softmax
        e = jnp.exp(dots)
        s = jnp.sum(e, axis=-1, keepdims=True)
        r = pl.reciprocal(s, approx=True)                           # EUP vrcp
        r = r * (2.0 - s * r)                                       # one Newton step
        p = e * r
        out_h = jnp.dot(p, v, preferred_element_type=jnp.float32)   # (N, D)

        # G_Block (ver=1), exploiting linearity: mean over tokens 1..N-1 first,
        # then the tiny (1,D)@(D,D) matmul + bias.
        mean_rest = (jnp.sum(out_h, axis=0, keepdims=True) - out_h[0:1, :]) * inv_rest
        g = jnp.dot(mean_rest, wphi_ref[...],
                    preferred_element_type=jnp.float32) + bphi_ref[...]      # (1, D)

        # Write the head slab into the merged scratch at a static column offset;
        # only the cls row (row 0) gets the global attribute added.
        attn_acc[:, h * d:(h + 1) * d] = out_h
        attn_acc[0:1, h * d:(h + 1) * d] = out_h[0:1, :] + g

    attn_out = jnp.dot(attn_acc[...], wout_ref[...],
                       preferred_element_type=jnp.float32) + bout_ref[...]   # (N, DIM)
    x = x + attn_out                                                # residual 1

    # ---------------- PreNorm 2 + FeedForward ----------------------------------
    xn2 = _layernorm(x, ln2g_ref[...], ln2b_ref[...])
    hdn = jnp.dot(xn2, w1_ref[...], preferred_element_type=jnp.float32) + b1_ref[...]
    hdn = _gelu(hdn)
    ff = jnp.dot(hdn, w2_ref[...], preferred_element_type=jnp.float32) + b2_ref[...]
    o_ref[0] = x + ff                                               # residual 2


# ------------------------------- wrappers --------------------------------------
def g_attention_ff_layer(x, lp, *, heads, dim_head):
    """One fused Transformer layer. x: (B, N, DIM) f32. lp: PyTorch-layout params."""
    b, n, dim = x.shape
    d = dim_head
    inner = heads * d
    mlp_dim = lp["w1"].shape[0]

    # Split fused qkv (3*INNER, DIM) into per-head (H, DIM, D) stacks so that
    # x @ wq3[h] == x @ Wq[h*d:(h+1)*d].T  (head order matches 'b n (h d)').
    w_q, w_k, w_v = jnp.split(lp["w_qkv"], 3, axis=0)               # (INNER, DIM) each

    def per_head(w):
        return w.reshape(heads, d, dim).transpose(0, 2, 1)          # (H, DIM, D)

    args = (
        x,
        lp["ln1_g"].reshape(1, dim), lp["ln1_b"].reshape(1, dim),
        per_head(w_q), per_head(w_k), per_head(w_v),
        lp["w_phi"].T, lp["b_phi"].reshape(1, d),
        lp["w_out"].T, lp["b_out"].reshape(1, dim),
        lp["ln2_g"].reshape(1, dim), lp["ln2_b"].reshape(1, dim),
        lp["w1"].T, lp["b1"].reshape(1, mlp_dim),
        lp["w2"].T, lp["b2"].reshape(1, dim),
    )

    in_specs = [
        pl.BlockSpec((1, n, dim), lambda i: (i, 0, 0)),             # x
        pl.BlockSpec((1, dim), lambda i: (0, 0)),                   # ln1 gamma
        pl.BlockSpec((1, dim), lambda i: (0, 0)),                   # ln1 beta
        pl.BlockSpec((heads, dim, d), lambda i: (0, 0, 0)),         # Wq stack
        pl.BlockSpec((heads, dim, d), lambda i: (0, 0, 0)),         # Wk stack
        pl.BlockSpec((heads, dim, d), lambda i: (0, 0, 0)),         # Wv stack
        pl.BlockSpec((d, d), lambda i: (0, 0)),                     # Wphi^T
        pl.BlockSpec((1, d), lambda i: (0, 0)),                     # bphi
        pl.BlockSpec((inner, dim), lambda i: (0, 0)),               # Wout^T
        pl.BlockSpec((1, dim), lambda i: (0, 0)),                   # bout
        pl.BlockSpec((1, dim), lambda i: (0, 0)),                   # ln2 gamma
        pl.BlockSpec((1, dim), lambda i: (0, 0)),                   # ln2 beta
        pl.BlockSpec((dim, mlp_dim), lambda i: (0, 0)),             # W1^T
        pl.BlockSpec((1, mlp_dim), lambda i: (0, 0)),               # b1
        pl.BlockSpec((mlp_dim, dim), lambda i: (0, 0)),             # W2^T
        pl.BlockSpec((1, dim), lambda i: (0, 0)),                   # b2
    ]

    kernel = functools.partial(transformer_layer_kernel, heads=heads, dim_head=dim_head)

    return pl.pallas_call(
        kernel,
        out_shape=jax.ShapeDtypeStruct((b, n, dim), jnp.float32),
        grid_spec=pltpu.PrefetchScalarGridSpec(
            num_scalar_prefetch=0,
            grid=(b,),
            in_specs=in_specs,
            out_specs=pl.BlockSpec((1, n, dim), lambda i: (i, 0, 0)),
            scratch_shapes=[pltpu.VMEM((n, inner), jnp.float32)],   # merged heads
        ),
        compiler_params=pltpu.CompilerParams(
            dimension_semantics=("parallel",),          # batch steps -> both v7x TCs
            vmem_limit_bytes=32 * 1024 * 1024,          # explicit (v5e default is 16 MiB)
        ),
    )(*args)


def transformer_forward(x, layers, *, heads, dim_head):
    for lp in layers:
        x = g_attention_ff_layer(x, lp, heads=heads, dim_head=dim_head)
    return x


# --------------------------- pure-JAX reference --------------------------------
def _layernorm_ref(x, g, b, eps=1e-5):
    mu = x.mean(axis=-1, keepdims=True)
    var = ((x - mu) ** 2).mean(axis=-1, keepdims=True)
    return (x - mu) / jnp.sqrt(var + eps) * g + b


def transformer_ref(x, layers, *, heads, dim_head):
    b, n, dim = x.shape
    inner = heads * dim_head
    for lp in layers:
        # PreNorm + G_Attention (ver = 1)
        xn = _layernorm_ref(x, lp["ln1_g"], lp["ln1_b"])
        qkv = xn @ lp["w_qkv"].T
        q, k, v = jnp.split(qkv, 3, axis=-1)

        def split_heads(t):
            return t.reshape(b, n, heads, dim_head).transpose(0, 2, 1, 3)

        q, k, v = map(split_heads, (q, k, v))                        # (B, H, N, D)
        dots = jnp.einsum("bhid,bhjd->bhij", q, k) * (dim_head ** -0.5)
        att = jax.nn.softmax(dots, axis=-1)
        out = jnp.einsum("bhij,bhjd->bhid", att, v)                  # (B, H, N, D)

        phi = out[:, :, 1:] @ lp["w_phi"].T + lp["b_phi"]
        g = phi.mean(axis=-2, keepdims=True)                         # (B, H, 1, D)
        cls_tok = out[:, :, :1] + g
        cat = jnp.concatenate([cls_tok, out[:, :, 1:]], axis=-2)
        merged = cat.transpose(0, 2, 1, 3).reshape(b, n, inner)
        x = x + (merged @ lp["w_out"].T + lp["b_out"])

        # PreNorm + FeedForward (exact GELU)
        xn2 = _layernorm_ref(x, lp["ln2_g"], lp["ln2_b"])
        hdn = xn2 @ lp["w1"].T + lp["b1"]
        hdn = 0.5 * hdn * (1.0 + jax_erf(hdn / jnp.sqrt(2.0)))
        x = x + (hdn @ lp["w2"].T + lp["b2"])
    return x


# ------------------------------- init helpers -----------------------------------
def xavier_normal(key, shape):
    fan_out, fan_in = shape
    std = (2.0 / (fan_in + fan_out)) ** 0.5
    return jax.random.normal(key, shape, dtype=jnp.float32) * std


def init_layer_params(key, dim, heads, dim_head, mlp_dim):
    inner = heads * dim_head
    ks = jax.random.split(key, 12)
    # PyTorch Linear layout: (out_features, in_features).  Biases are randomized
    # (rather than the module's zero init) to exercise every bias path.
    return dict(
        ln1_g=1.0 + 0.1 * jax.random.normal(ks[0], (dim,), jnp.float32),
        ln1_b=0.1 * jax.random.normal(ks[1], (dim,), jnp.float32),
        w_qkv=xavier_normal(ks[2], (3 * inner, dim)),
        w_phi=xavier_normal(ks[3], (dim_head, dim_head)),
        b_phi=0.05 * jax.random.normal(ks[4], (dim_head,), jnp.float32),
        w_out=xavier_normal(ks[5], (dim, inner)),
        b_out=0.05 * jax.random.normal(ks[6], (dim,), jnp.float32),
        ln2_g=1.0 + 0.1 * jax.random.normal(ks[7], (dim,), jnp.float32),
        ln2_b=0.1 * jax.random.normal(ks[8], (dim,), jnp.float32),
        w1=xavier_normal(ks[9], (mlp_dim, dim)),
        b1=0.05 * jax.random.normal(ks[10], (mlp_dim,), jnp.float32),
        w2=xavier_normal(ks[11], (dim, mlp_dim)),
        b2=0.05 * jax.random.normal(jax.random.fold_in(key, 99), (dim,), jnp.float32),
    )


if __name__ == "__main__":
    # Small shapes consistent with the module (token 0 is the cls token).
    B, N, DIM = 2, 8, 32
    HEADS, DIM_HEAD = 4, 8
    MLP_DIM = 64
    DEPTH = 2

    key = jax.random.PRNGKey(0)
    kx, kp = jax.random.split(key)
    x = jax.random.normal(kx, (B, N, DIM), dtype=jnp.float32)
    layers = [init_layer_params(k, DIM, HEADS, DIM_HEAD, MLP_DIM)
              for k in jax.random.split(kp, DEPTH)]

    y = transformer_forward(x, layers, heads=HEADS, dim_head=DIM_HEAD)
    y = jax.block_until_ready(y)

    y_ref = transformer_ref(x, layers, heads=HEADS, dim_head=DIM_HEAD)
    # Tolerance covers the EUP approx-reciprocal (+1 Newton step), the 1.5e-7
    # erf approximation in the in-kernel GELU, and f32 reassociation.
    np.testing.assert_allclose(np.asarray(y), np.asarray(y_ref), rtol=1e-4, atol=1e-4)

    print("KERNEL_OK")
</pallas_src>

<mosaic_0001>
module attributes {stable_mosaic.version = 11 : i64} {
  func.func @transformer_layer_kernel(%arg0: i32, %arg1: memref<1x8x32xf32, #tpu.memory_space<vmem>>, %arg2: memref<1x32xf32, #tpu.memory_space<vmem>>, %arg3: memref<1x32xf32, #tpu.memory_space<vmem>>, %arg4: memref<4x32x8xf32, #tpu.memory_space<vmem>>, %arg5: memref<4x32x8xf32, #tpu.memory_space<vmem>>, %arg6: memref<4x32x8xf32, #tpu.memory_space<vmem>>, %arg7: memref<8x8xf32, #tpu.memory_space<vmem>>, %arg8: memref<1x8xf32, #tpu.memory_space<vmem>>, %arg9: memref<32x32xf32, #tpu.memory_space<vmem>>, %arg10: memref<1x32xf32, #tpu.memory_space<vmem>>, %arg11: memref<1x32xf32, #tpu.memory_space<vmem>>, %arg12: memref<1x32xf32, #tpu.memory_space<vmem>>, %arg13: memref<32x64xf32, #tpu.memory_space<vmem>>, %arg14: memref<1x64xf32, #tpu.memory_space<vmem>>, %arg15: memref<64x32xf32, #tpu.memory_space<vmem>>, %arg16: memref<1x32xf32, #tpu.memory_space<vmem>>, %arg17: memref<1x8x32xf32, #tpu.memory_space<vmem>>, %arg18: memref<8x32xf32, #tpu.memory_space<vmem>>) attributes {dimension_semantics = [#tpu.dimension_semantics<parallel>], iteration_bounds = array<i64: 2>, scalar_prefetch = 0 : i64, scratch_operands = 1 : i64, tpu.core_type = #tpu.core_type<tc>, window_params = [{transform_indices = @transform_0, window_bounds = array<i64: 1, 8, 32>}, {pipeline_mode = #tpu.pipeline_mode<synchronous>, transform_indices = @transform_1, window_bounds = array<i64: 1, 32>}, {pipeline_mode = #tpu.pipeline_mode<synchronous>, transform_indices = @transform_2, window_bounds = array<i64: 1, 32>}, {pipeline_mode = #tpu.pipeline_mode<synchronous>, transform_indices = @transform_3, window_bounds = array<i64: 4, 32, 8>}, {pipeline_mode = #tpu.pipeline_mode<synchronous>, transform_indices = @transform_4, window_bounds = array<i64: 4, 32, 8>}, {pipeline_mode = #tpu.pipeline_mode<synchronous>, transform_indices = @transform_5, window_bounds = array<i64: 4, 32, 8>}, {pipeline_mode = #tpu.pipeline_mode<synchronous>, transform_indices = @transform_6, window_bounds = array<i64: 8, 8>}, {pipeline_mode = #tpu.pipeline_mode<synchronous>, transform_indices = @transform_7, window_bounds = array<i64: 1, 8>}, {pipeline_mode = #tpu.pipeline_mode<synchronous>, transform_indices = @transform_8, window_bounds = array<i64: 32, 32>}, {pipeline_mode = #tpu.pipeline_mode<synchronous>, transform_indices = @transform_9, window_bounds = array<i64: 1, 32>}, {pipeline_mode = #tpu.pipeline_mode<synchronous>, transform_indices = @transform_10, window_bounds = array<i64: 1, 32>}, {pipeline_mode = #tpu.pipeline_mode<synchronous>, transform_indices = @transform_11, window_bounds = array<i64: 1, 32>}, {pipeline_mode = #tpu.pipeline_mode<synchronous>, transform_indices = @transform_12, window_bounds = array<i64: 32, 64>}, {pipeline_mode = #tpu.pipeline_mode<synchronous>, transform_indices = @transform_13, window_bounds = array<i64: 1, 64>}, {pipeline_mode = #tpu.pipeline_mode<synchronous>, transform_indices = @transform_14, window_bounds = array<i64: 64, 32>}, {pipeline_mode = #tpu.pipeline_mode<synchronous>, transform_indices = @transform_15, window_bounds = array<i64: 1, 32>}, {transform_indices = @transform_16, window_bounds = array<i64: 1, 8, 32>}]} {
    %c0 = arith.constant 0 : index
    %c0_0 = arith.constant 0 : index
    %c0_1 = arith.constant 0 : index
    %0 = vector.load %arg1[%c0, %c0_0, %c0_1] : memref<1x8x32xf32, #tpu.memory_space<vmem>>, vector<1x8x32xf32>
    %1 = vector.shape_cast %0 : vector<1x8x32xf32> to vector<8x32xf32>
    %c0_2 = arith.constant 0 : index
    %c0_3 = arith.constant 0 : index
    %2 = vector.load %arg2[%c0_2, %c0_3] : memref<1x32xf32, #tpu.memory_space<vmem>>, vector<1x32xf32>
    %c0_4 = arith.constant 0 : index
    %c0_5 = arith.constant 0 : index
    %3 = vector.load %arg3[%c0_4, %c0_5] : memref<1x32xf32, #tpu.memory_space<vmem>>, vector<1x32xf32>
    %cst = arith.constant dense<0.000000e+00> : vector<8xf32>
    %4 = vector.multi_reduction <add>, %1, %cst [1] : vector<8x32xf32> to vector<8xf32>
    %5 = vector.shape_cast %4 : vector<8xf32> to vector<8x1xf32>
    %cst_6 = arith.constant 3.200000e+01 : f32
    %6 = vector.broadcast %cst_6 : f32 to vector<8x1xf32>
    %7 = arith.divf %5, %6 : vector<8x1xf32>
    %8 = vector.broadcast %7 : vector<8x1xf32> to vector<8x32xf32>
    %9 = arith.subf %1, %8 : vector<8x32xf32>
    %10 = arith.mulf %9, %9 : vector<8x32xf32>
    %cst_7 = arith.constant dense<0.000000e+00> : vector<8xf32>
    %11 = vector.multi_reduction <add>, %10, %cst_7 [1] : vector<8x32xf32> to vector<8xf32>
    %12 = vector.shape_cast %11 : vector<8xf32> to vector<8x1xf32>
    %cst_8 = arith.constant 3.200000e+01 : f32
    %13 = vector.broadcast %cst_8 : f32 to vector<8x1xf32>
    %14 = arith.divf %12, %13 : vector<8x1xf32>
    %cst_9 = arith.constant 9.99999974E-6 : f32
    %15 = vector.broadcast %cst_9 : f32 to vector<8x1xf32>
    %16 = arith.addf %14, %15 : vector<8x1xf32>
    %17 = math.rsqrt %16 : vector<8x1xf32>
    %18 = vector.broadcast %17 : vector<8x1xf32> to vector<8x32xf32>
    %19 = arith.mulf %9, %18 : vector<8x32xf32>
    %20 = vector.broadcast %2 : vector<1x32xf32> to vector<8x32xf32>
    %21 = arith.mulf %19, %20 : vector<8x32xf32>
    %22 = vector.broadcast %3 : vector<1x32xf32> to vector<8x32xf32>
    %23 = arith.addf %21, %22 : vector<8x32xf32>
    %c0_10 = arith.constant 0 : index
    %c0_11 = arith.constant 0 : index
    %c0_12 = arith.constant 0 : index
    %24 = vector.load %arg4[%c0_10, %c0_11, %c0_12] : memref<4x32x8xf32, #tpu.memory_space<vmem>>, vector<1x32x8xf32>
    %25 = vector.shape_cast %24 : vector<1x32x8xf32> to vector<32x8xf32>
    %cst_13 = arith.constant dense<0.000000e+00> : vector<8x8xf32>
    %26 = tpu.matmul %23, %25, %cst_13 {dimension_numbers = #tpu.dot_dimension_numbers<[1], [0], [0], [1], [0, 0, 1, 1], [], []>} : vector<8x32xf32>, vector<32x8xf32>, vector<8x8xf32> -> vector<8x8xf32>
    %c0_14 = arith.constant 0 : index
    %c0_15 = arith.constant 0 : index
    %c0_16 = arith.constant 0 : index
    %27 = vector.load %arg5[%c0_14, %c0_15, %c0_16] : memref<4x32x8xf32, #tpu.memory_space<vmem>>, vector<1x32x8xf32>
    %28 = vector.shape_cast %27 : vector<1x32x8xf32> to vector<32x8xf32>
    %cst_17 = arith.constant dense<0.000000e+00> : vector<8x8xf32>
    %29 = tpu.matmul %23, %28, %cst_17 {dimension_numbers = #tpu.dot_dimension_numbers<[1], [0], [0], [1], [0, 0, 1, 1], [], []>} : vector<8x32xf32>, vector<32x8xf32>, vector<8x8xf32> -> vector<8x8xf32>
    %c0_18 = arith.constant 0 : index
    %c0_19 = arith.constant 0 : index
    %c0_20 = arith.constant 0 : index
    %30 = vector.load %arg6[%c0_18, %c0_19, %c0_20] : memref<4x32x8xf32, #tpu.memory_space<vmem>>, vector<1x32x8xf32>
    %31 = vector.shape_cast %30 : vector<1x32x8xf32> to vector<32x8xf32>
    %cst_21 = arith.constant dense<0.000000e+00> : vector<8x8xf32>
    %32 = tpu.matmul %23, %31, %cst_21 {dimension_numbers = #tpu.dot_dimension_numbers<[1], [0], [0], [1], [0, 0, 1, 1], [], []>} : vector<8x32xf32>, vector<32x8xf32>, vector<8x8xf32> -> vector<8x8xf32>
    %33 = tpu.transpose %29, [1, 0] : vector<8x8xf32> -> vector<8x8xf32>
    %cst_22 = arith.constant dense<0.000000e+00> : vector<8x8xf32>
    %34 = tpu.matmul %26, %33, %cst_22 {dimension_numbers = #tpu.dot_dimension_numbers<[1], [0], [0], [1], [0, 0, 1, 1], [], []>} : vector<8x8xf32>, vector<8x8xf32>, vector<8x8xf32> -> vector<8x8xf32>
    %cst_23 = arith.constant 0.353553385 : f32
    %35 = vector.broadcast %cst_23 : f32 to vector<8x8xf32>
    %36 = arith.mulf %34, %35 : vector<8x8xf32>
    %cst_24 = arith.constant dense<0xFF800000> : vector<8xf32>
    %37 = vector.multi_reduction <maximumf>, %36, %cst_24 [1] : vector<8x8xf32> to vector<8xf32>
    %38 = vector.shape_cast %37 : vector<8xf32> to vector<8x1xf32>
    %39 = vector.broadcast %38 : vector<8x1xf32> to vector<8x8xf32>
    %40 = arith.subf %36, %39 : vector<8x8xf32>
    %41 = math.exp %40 : vector<8x8xf32>
    %cst_25 = arith.constant dense<0.000000e+00> : vector<8xf32>
    %42 = vector.multi_reduction <add>, %41, %cst_25 [1] : vector<8x8xf32> to vector<8xf32>
    %43 = vector.shape_cast %42 : vector<8xf32> to vector<8x1xf32>
    %44 = tpu.reciprocal %43 {approx = true} : vector<8x1xf32> -> vector<8x1xf32>
    %45 = arith.mulf %43, %44 : vector<8x1xf32>
    %cst_26 = arith.constant 2.000000e+00 : f32
    %46 = vector.broadcast %cst_26 : f32 to vector<8x1xf32>
    %47 = arith.subf %46, %45 : vector<8x1xf32>
    %48 = arith.mulf %44, %47 : vector<8x1xf32>
    %49 = vector.broadcast %48 : vector<8x1xf32> to vector<8x8xf32>
    %50 = arith.mulf %41, %49 : vector<8x8xf32>
    %cst_27 = arith.constant dense<0.000000e+00> : vector<8x8xf32>
    %51 = tpu.matmul %50, %32, %cst_27 {dimension_numbers = #tpu.dot_dimension_numbers<[1], [0], [0], [1], [0, 0, 1, 1], [], []>} : vector<8x8xf32>, vector<8x8xf32>, vector<8x8xf32> -> vector<8x8xf32>
    %cst_28 = arith.constant dense<0.000000e+00> : vector<8xf32>
    %52 = vector.multi_reduction <add>, %51, %cst_28 [0] : vector<8x8xf32> to vector<8xf32>
    %53 = vector.shape_cast %52 : vector<8xf32> to vector<1x8xf32>
    %54 = vector.extract_strided_slice %51 {offsets = [0, 0], sizes = [1, 8], strides = [1, 1]} : vector<8x8xf32> to vector<1x8xf32>
    %55 = arith.subf %53, %54 : vector<1x8xf32>
    %cst_29 = arith.constant 0.142857149 : f32
    %56 = vector.broadcast %cst_29 : f32 to vector<1x8xf32>
    %57 = arith.mulf %55, %56 : vector<1x8xf32>
    %c0_30 = arith.constant 0 : index
    %c0_31 = arith.constant 0 : index
    %58 = vector.load %arg7[%c0_30, %c0_31] : memref<8x8xf32, #tpu.memory_space<vmem>>, vector<8x8xf32>
    %cst_32 = arith.constant dense<0.000000e+00> : vector<1x8xf32>
    %59 = tpu.matmul %57, %58, %cst_32 {dimension_numbers = #tpu.dot_dimension_numbers<[1], [0], [0], [1], [0, 0, 1, 1], [], []>} : vector<1x8xf32>, vector<8x8xf32>, vector<1x8xf32> -> vector<1x8xf32>
    %c0_33 = arith.constant 0 : index
    %c0_34 = arith.constant 0 : index
    %60 = vector.load %arg8[%c0_33, %c0_34] : memref<1x8xf32, #tpu.memory_space<vmem>>, vector<1x8xf32>
    %61 = arith.addf %59, %60 : vector<1x8xf32>
    %c0_35 = arith.constant 0 : index
    %c0_36 = arith.constant 0 : index
    %62 = vector.load %arg18[%c0_35, %c0_36] : memref<8x32xf32, #tpu.memory_space<vmem>>, vector<8x8xf32>
    tpu.vector_store %arg18[%c0_35, %c0_36], %51 {strides = array<i32>} : memref<8x32xf32, #tpu.memory_space<vmem>>, vector<8x8xf32>,
    %63 = vector.extract_strided_slice %51 {offsets = [0, 0], sizes = [1, 8], strides = [1, 1]} : vector<8x8xf32> to vector<1x8xf32>
    %64 = arith.addf %63, %61 : vector<1x8xf32>
    %c0_37 = arith.constant 0 : index
    %c0_38 = arith.constant 0 : index
    %65 = vector.load %arg18[%c0_37, %c0_38] : memref<8x32xf32, #tpu.memory_space<vmem>>, vector<1x8xf32>
    tpu.vector_store %arg18[%c0_37, %c0_38], %64 {strides = array<i32>} : memref<8x32xf32, #tpu.memory_space<vmem>>, vector<1x8xf32>,
    %c1 = arith.constant 1 : index
    %c0_39 = arith.constant 0 : index
    %c0_40 = arith.constant 0 : index
    %66 = vector.load %arg4[%c1, %c0_39, %c0_40] : memref<4x32x8xf32, #tpu.memory_space<vmem>>, vector<1x32x8xf32>
    %67 = vector.shape_cast %66 : vector<1x32x8xf32> to vector<32x8xf32>
    %cst_41 = arith.constant dense<0.000000e+00> : vector<8x8xf32>
    %68 = tpu.matmul %23, %67, %cst_41 {dimension_numbers = #tpu.dot_dimension_numbers<[1], [0], [0], [1], [0, 0, 1, 1], [], []>} : vector<8x32xf32>, vector<32x8xf32>, vector<8x8xf32> -> vector<8x8xf32>
    %c1_42 = arith.constant 1 : index
    %c0_43 = arith.constant 0 : index
    %c0_44 = arith.constant 0 : index
    %69 = vector.load %arg5[%c1_42, %c0_43, %c0_44] : memref<4x32x8xf32, #tpu.memory_space<vmem>>, vector<1x32x8xf32>
    %70 = vector.shape_cast %69 : vector<1x32x8xf32> to vector<32x8xf32>
    %cst_45 = arith.constant dense<0.000000e+00> : vector<8x8xf32>
    %71 = tpu.matmul %23, %70, %cst_45 {dimension_numbers = #tpu.dot_dimension_numbers<[1], [0], [0], [1], [0, 0, 1, 1], [], []>} : vector<8x32xf32>, vector<32x8xf32>, vector<8x8xf32> -> vector<8x8xf32>
    %c1_46 = arith.constant 1 : index
    %c0_47 = arith.constant 0 : index
    %c0_48 = arith.constant 0 : index
    %72 = vector.load %arg6[%c1_46, %c0_47, %c0_48] : memref<4x32x8xf32, #tpu.memory_space<vmem>>, vector<1x32x8xf32>
    %73 = vector.shape_cast %72 : vector<1x32x8xf32> to vector<32x8xf32>
    %cst_49 = arith.constant dense<0.000000e+00> : vector<8x8xf32>
    %74 = tpu.matmul %23, %73, %cst_49 {dimension_numbers = #tpu.dot_dimension_numbers<[1], [0], [0], [1], [0, 0, 1, 1], [], []>} : vector<8x32xf32>, vector<32x8xf32>, vector<8x8xf32> -> vector<8x8xf32>
    %75 = tpu.transpose %71, [1, 0] : vector<8x8xf32> -> vector<8x8xf32>
    %cst_50 = arith.constant dense<0.000000e+00> : vector<8x8xf32>
    %76 = tpu.matmul %68, %75, %cst_50 {dimension_numbers = #tpu.dot_dimension_numbers<[1], [0], [0], [1], [0, 0, 1, 1], [], []>} : vector<8x8xf32>, vector<8x8xf32>, vector<8x8xf32> -> vector<8x8xf32>
    %cst_51 = arith.constant 0.353553385 : f32
    %77 = vector.broadcast %cst_51 : f32 to vector<8x8xf32>
    %78 = arith.mulf %76, %77 : vector<8x8xf32>
    %cst_52 = arith.constant dense<0xFF800000> : vector<8xf32>
    %79 = vector.multi_reduction <maximumf>, %78, %cst_52 [1] : vector<8x8xf32> to vector<8xf32>
    %80 = vector.shape_cast %79 : vector<8xf32> to vector<8x1xf32>
    %81 = vector.broadcast %80 : vector<8x1xf32> to vector<8x8xf32>
    %82 = arith.subf %78, %81 : vector<8x8xf32>
    %83 = math.exp %82 : vector<8x8xf32>
    %cst_53 = arith.constant dense<0.000000e+00> : vector<8xf32>
    %84 = vector.multi_reduction <add>, %83, %cst_53 [1] : vector<8x8xf32> to vector<8xf32>
    %85 = vector.shape_cast %84 : vector<8xf32> to vector<8x1xf32>
    %86 = tpu.reciprocal %85 {approx = true} : vector<8x1xf32> -> vector<8x1xf32>
    %87 = arith.mulf %85, %86 : vector<8x1xf32>
    %cst_54 = arith.constant 2.000000e+00 : f32
    %88 = vector.broadcast %cst_54 : f32 to vector<8x1xf32>
    %89 = arith.subf %88, %87 : vector<8x1xf32>
    %90 = arith.mulf %86, %89 : vector<8x1xf32>
    %91 = vector.broadcast %90 : vector<8x1xf32> to vector<8x8xf32>
    %92 = arith.mulf %83, %91 : vector<8x8xf32>
    %cst_55 = arith.constant dense<0.000000e+00> : vector<8x8xf32>
    %93 = tpu.matmul %92, %74, %cst_55 {dimension_numbers = #tpu.dot_dimension_numbers<[1], [0], [0], [1], [0, 0, 1, 1], [], []>} : vector<8x8xf32>, vector<8x8xf32>, vector<8x8xf32> -> vector<8x8xf32>
    %cst_56 = arith.constant dense<0.000000e+00> : vector<8xf32>
    %94 = vector.multi_reduction <add>, %93, %cst_56 [0] : vector<8x8xf32> to vector<8xf32>
    %95 = vector.shape_cast %94 : vector<8xf32> to vector<1x8xf32>
    %96 = vector.extract_strided_slice %93 {offsets = [0, 0], sizes = [1, 8], strides = [1, 1]} : vector<8x8xf32> to vector<1x8xf32>
    %97 = arith.subf %95, %96 : vector<1x8xf32>
    %cst_57 = arith.constant 0.142857149 : f32
    %98 = vector.broadcast %cst_57 : f32 to vector<1x8xf32>
    %99 = arith.mulf %97, %98 : vector<1x8xf32>
    %c0_58 = arith.constant 0 : index
    %c0_59 = arith.constant 0 : index
    %100 = vector.load %arg7[%c0_58, %c0_59] : memref<8x8xf32, #tpu.memory_space<vmem>>, vector<8x8xf32>
    %cst_60 = arith.constant dense<0.000000e+00> : vector<1x8xf32>
    %101 = tpu.matmul %99, %100, %cst_60 {dimension_numbers = #tpu.dot_dimension_numbers<[1], [0], [0], [1], [0, 0, 1, 1], [], []>} : vector<1x8xf32>, vector<8x8xf32>, vector<1x8xf32> -> vector<1x8xf32>
    %c0_61 = arith.constant 0 : index
    %c0_62 = arith.constant 0 : index
    %102 = vector.load %arg8[%c0_61, %c0_62] : memref<1x8xf32, #tpu.memory_space<vmem>>, vector<1x8xf32>
    %103 = arith.addf %101, %102 : vector<1x8xf32>
    %c0_63 = arith.constant 0 : index
    %c8 = arith.constant 8 : index
    %104 = vector.load %arg18[%c0_63, %c8] : memref<8x32xf32, #tpu.memory_space<vmem>>, vector<8x8xf32>
    tpu.vector_store %arg18[%c0_63, %c8], %93 {strides = array<i32>} : memref<8x32xf32, #tpu.memory_space<vmem>>, vector<8x8xf32>,
    %105 = vector.extract_strided_slice %93 {offsets = [0, 0], sizes = [1, 8], strides = [1, 1]} : vector<8x8xf32> to vector<1x8xf32>
    %106 = arith.addf %105, %103 : vector<1x8xf32>
    %c0_64 = arith.constant 0 : index
    %c8_65 = arith.constant 8 : index
    %107 = vector.load %arg18[%c0_64, %c8_65] : memref<8x32xf32, #tpu.memory_space<vmem>>, vector<1x8xf32>
    tpu.vector_store %arg18[%c0_64, %c8_65], %106 {strides = array<i32>} : memref<8x32xf32, #tpu.memory_space<vmem>>, vector<1x8xf32>,
    %c2 = arith.constant 2 : index
    %c0_66 = arith.constant 0 : index
    %c0_67 = arith.constant 0 : index
    %108 = vector.load %arg4[%c2, %c0_66, %c0_67] : memref<4x32x8xf32, #tpu.memory_space<vmem>>, vector<1x32x8xf32>
    %109 = vector.shape_cast %108 : vector<1x32x8xf32> to vector<32x8xf32>
    %cst_68 = arith.constant dense<0.000000e+00> : vector<8x8xf32>
    %110 = tpu.matmul %23, %109, %cst_68 {dimension_numbers = #tpu.dot_dimension_numbers<[1], [0], [0], [1], [0, 0, 1, 1], [], []>} : vector<8x32xf32>, vector<32x8xf32>, vector<8x8xf32> -> vector<8x8xf32>
    %c2_69 = arith.constant 2 : index
    %c0_70 = arith.constant 0 : index
    %c0_71 = arith.constant 0 : index
    %111 = vector.load %arg5[%c2_69, %c0_70, %c0_71] : memref<4x32x8xf32, #tpu.memory_space<vmem>>, vector<1x32x8xf32>
    %112 = vector.shape_cast %111 : vector<1x32x8xf32> to vector<32x8xf32>
    %cst_72 = arith.constant dense<0.000000e+00> : vector<8x8xf32>
    %113 = tpu.matmul %23, %112, %cst_72 {dimension_numbers = #tpu.dot_dimension_numbers<[1], [0], [0], [1], [0, 0, 1, 1], [], []>} : vector<8x32xf32>, vector<32x8xf32>, vector<8x8xf32> -> vector<8x8xf32>
    %c2_73 = arith.constant 2 : index
    %c0_74 = arith.constant 0 : index
    %c0_75 = arith.constant 0 : index
    %114 = vector.load %arg6[%c2_73, %c0_74, %c0_75] : memref<4x32x8xf32, #tpu.memory_space<vmem>>, vector<1x32x8xf32>
    %115 = vector.shape_cast %114 : vector<1x32x8xf32> to vector<32x8xf32>
    %cst_76 = arith.constant dense<0.000000e+00> : vector<8x8xf32>
    %116 = tpu.matmul %23, %115, %cst_76 {dimension_numbers = #tpu.dot_dimension_numbers<[1], [0], [0], [1], [0, 0, 1, 1], [], []>} : vector<8x32xf32>, vector<32x8xf32>, vector<8x8xf32> -> vector<8x8xf32>
    %117 = tpu.transpose %113, [1, 0] : vector<8x8xf32> -> vector<8x8xf32>
    %cst_77 = arith.constant dense<0.000000e+00> : vector<8x8xf32>
    %118 = tpu.matmul %110, %117, %cst_77 {dimension_numbers = #tpu.dot_dimension_numbers<[1], [0], [0], [1], [0, 0, 1, 1], [], []>} : vector<8x8xf32>, vector<8x8xf32>, vector<8x8xf32> -> vector<8x8xf32>
    %cst_78 = arith.constant 0.353553385 : f32
    %119 = vector.broadcast %cst_78 : f32 to vector<8x8xf32>
    %120 = arith.mulf %118, %119 : vector<8x8xf32>
    %cst_79 = arith.constant dense<0xFF800000> : vector<8xf32>
    %121 = vector.multi_reduction <maximumf>, %120, %cst_79 [1] : vector<8x8xf32> to vector<8xf32>
    %122 = vector.shape_cast %121 : vector<8xf32> to vector<8x1xf32>
    %123 = vector.broadcast %122 : vector<8x1xf32> to vector<8x8xf32>
    %124 = arith.subf %120, %123 : vector<8x8xf32>
    %125 = math.exp %124 : vector<8x8xf32>
    %cst_80 = arith.constant dense<0.000000e+00> : vector<8xf32>
    %126 = vector.multi_reduction <add>, %125, %cst_80 [1] : vector<8x8xf32> to vector<8xf32>
    %127 = vector.shape_cast %126 : vector<8xf32> to vector<8x1xf32>
    %128 = tpu.reciprocal %127 {approx = true} : vector<8x1xf32> -> vector<8x1xf32>
    %129 = arith.mulf %127, %128 : vector<8x1xf32>
    %cst_81 = arith.constant 2.000000e+00 : f32
    %130 = vector.broadcast %cst_81 : f32 to vector<8x1xf32>
    %131 = arith.subf %130, %129 : vector<8x1xf32>
    %132 = arith.mulf %128, %131 : vector<8x1xf32>
    %133 = vector.broadcast %132 : vector<8x1xf32> to vector<8x8xf32>
    %134 = arith.mulf %125, %133 : vector<8x8xf32>
    %cst_82 = arith.constant dense<0.000000e+00> : vector<8x8xf32>
    %135 = tpu.matmul %134, %116, %cst_82 {dimension_numbers = #tpu.dot_dimension_numbers<[1], [0], [0], [1], [0, 0, 1, 1], [], []>} : vector<8x8xf32>, vector<8x8xf32>, vector<8x8xf32> -> vector<8x8xf32>
    %cst_83 = arith.constant dense<0.000000e+00> : vector<8xf32>
    %136 = vector.multi_reduction <add>, %135, %cst_83 [0] : vector<8x8xf32> to vector<8xf32>
    %137 = vector.shape_cast %136 : vector<8xf32> to vector<1x8xf32>
    %138 = vector.extract_strided_slice %135 {offsets = [0, 0], sizes = [1, 8], strides = [1, 1]} : vector<8x8xf32> to vector<1x8xf32>
    %139 = arith.subf %137, %138 : vector<1x8xf32>
    %cst_84 = arith.constant 0.142857149 : f32
    %140 = vector.broadcast %cst_84 : f32 to vector<1x8xf32>
    %141 = arith.mulf %139, %140 : vector<1x8xf32>
    %c0_85 = arith.constant 0 : index
    %c0_86 = arith.constant 0 : index
    %142 = vector.load %arg7[%c0_85, %c0_86] : memref<8x8xf32, #tpu.memory_space<vmem>>, vector<8x8xf32>
    %cst_87 = arith.constant dense<0.000000e+00> : vector<1x8xf32>
    %143 = tpu.matmul %141, %142, %cst_87 {dimension_numbers = #tpu.dot_dimension_numbers<[1], [0], [0], [1], [0, 0, 1, 1], [], []>} : vector<1x8xf32>, vector<8x8xf32>, vector<1x8xf32> -> vector<1x8xf32>
    %c0_88 = arith.constant 0 : index
    %c0_89 = arith.constant 0 : index
    %144 = vector.load %arg8[%c0_88, %c0_89] : memref<1x8xf32, #tpu.memory_space<vmem>>, vector<1x8xf32>
    %145 = arith.addf %143, %144 : vector<1x8xf32>
    %c0_90 = arith.constant 0 : index
    %c16 = arith.constant 16 : index
    %146 = vector.load %arg18[%c0_90, %c16] : memref<8x32xf32, #tpu.memory_space<vmem>>, vector<8x8xf32>
    tpu.vector_store %arg18[%c0_90, %c16], %135 {strides = array<i32>} : memref<8x32xf32, #tpu.memory_space<vmem>>, vector<8x8xf32>,
    %147 = vector.extract_strided_slice %135 {offsets = [0, 0], sizes = [1, 8], strides = [1, 1]} : vector<8x8xf32> to vector<1x8xf32>
    %148 = arith.addf %147, %145 : vector<1x8xf32>
    %c0_91 = arith.constant 0 : index
    %c16_92 = arith.constant 16 : index
    %149 = vector.load %arg18[%c0_91, %c16_92] : memref<8x32xf32, #tpu.memory_space<vmem>>, vector<1x8xf32>
    tpu.vector_store %arg18[%c0_91, %c16_92], %148 {strides = array<i32>} : memref<8x32xf32, #tpu.memory_space<vmem>>, vector<1x8xf32>,
    %c3 = arith.constant 3 : index
    %c0_93 = arith.constant 0 : index
    %c0_94 = arith.constant 0 : index
    %150 = vector.load %arg4[%c3, %c0_93, %c0_94] : memref<4x32x8xf32, #tpu.memory_space<vmem>>, vector<1x32x8xf32>
    %151 = vector.shape_cast %150 : vector<1x32x8xf32> to vector<32x8xf32>
    %cst_95 = arith.constant dense<0.000000e+00> : vector<8x8xf32>
    %152 = tpu.matmul %23, %151, %cst_95 {dimension_numbers = #tpu.dot_dimension_numbers<[1], [0], [0], [1], [0, 0, 1, 1], [], []>} : vector<8x32xf32>, vector<32x8xf32>, vector<8x8xf32> -> vector<8x8xf32>
    %c3_96 = arith.constant 3 : index
    %c0_97 = arith.constant 0 : index
    %c0_98 = arith.constant 0 : index
    %153 = vector.load %arg5[%c3_96, %c0_97, %c0_98] : memref<4x32x8xf32, #tpu.memory_space<vmem>>, vector<1x32x8xf32>
    %154 = vector.shape_cast %153 : vector<1x32x8xf32> to vector<32x8xf32>
    %cst_99 = arith.constant dense<0.000000e+00> : vector<8x8xf32>
    %155 = tpu.matmul %23, %154, %cst_99 {dimension_numbers = #tpu.dot_dimension_numbers<[1], [0], [0], [1], [0, 0, 1, 1], [], []>} : vector<8x32xf32>, vector<32x8xf32>, vector<8x8xf32> -> vector<8x8xf32>
    %c3_100 = arith.constant 3 : index
    %c0_101 = arith.constant 0 : index
    %c0_102 = arith.constant 0 : index
    %156 = vector.load %arg6[%c3_100, %c0_101, %c0_102] : memref<4x32x8xf32, #tpu.memory_space<vmem>>, vector<1x32x8xf32>
    %157 = vector.shape_cast %156 : vector<1x32x8xf32> to vector<32x8xf32>
    %cst_103 = arith.constant dense<0.000000e+00> : vector<8x8xf32>
    %158 = tpu.matmul %23, %157, %cst_103 {dimension_numbers = #tpu.dot_dimension_numbers<[1], [0], [0], [1], [0, 0, 1, 1], [], []>} : vector<8x32xf32>, vector<32x8xf32>, vector<8x8xf32> -> vector<8x8xf32>
    %159 = tpu.transpose %155, [1, 0] : vector<8x8xf32> -> vector<8x8xf32>
    %cst_104 = arith.constant dense<0.000000e+00> : vector<8x8xf32>
    %160 = tpu.matmul %152, %159, %cst_104 {dimension_numbers = #tpu.dot_dimension_numbers<[1], [0], [0], [1], [0, 0, 1, 1], [], []>} : vector<8x8xf32>, vector<8x8xf32>, vector<8x8xf32> -> vector<8x8xf32>
    %cst_105 = arith.constant 0.353553385 : f32
    %161 = vector.broadcast %cst_105 : f32 to vector<8x8xf32>
    %162 = arith.mulf %160, %161 : vector<8x8xf32>
    %cst_106 = arith.constant dense<0xFF800000> : vector<8xf32>
    %163 = vector.multi_reduction <maximumf>, %162, %cst_106 [1] : vector<8x8xf32> to vector<8xf32>
    %164 = vector.shape_cast %163 : vector<8xf32> to vector<8x1xf32>
    %165 = vector.broadcast %164 : vector<8x1xf32> to vector<8x8xf32>
    %166 = arith.subf %162, %165 : vector<8x8xf32>
    %167 = math.exp %166 : vector<8x8xf32>
    %cst_107 = arith.constant dense<0.000000e+00> : vector<8xf32>
    %168 = vector.multi_reduction <add>, %167, %cst_107 [1] : vector<8x8xf32> to vector<8xf32>
    %169 = vector.shape_cast %168 : vector<8xf32> to vector<8x1xf32>
    %170 = tpu.reciprocal %169 {approx = true} : vector<8x1xf32> -> vector<8x1xf32>
    %171 = arith.mulf %169, %170 : vector<8x1xf32>
    %cst_108 = arith.constant 2.000000e+00 : f32
    %172 = vector.broadcast %cst_108 : f32 to vector<8x1xf32>
    %173 = arith.subf %172, %171 : vector<8x1xf32>
    %174 = arith.mulf %170, %173 : vector<8x1xf32>
    %175 = vector.broadcast %174 : vector<8x1xf32> to vector<8x8xf32>
    %176 = arith.mulf %167, %175 : vector<8x8xf32>
    %cst_109 = arith.constant dense<0.000000e+00> : vector<8x8xf32>
    %177 = tpu.matmul %176, %158, %cst_109 {dimension_numbers = #tpu.dot_dimension_numbers<[1], [0], [0], [1], [0, 0, 1, 1], [], []>} : vector<8x8xf32>, vector<8x8xf32>, vector<8x8xf32> -> vector<8x8xf32>
    %cst_110 = arith.constant dense<0.000000e+00> : vector<8xf32>
    %178 = vector.multi_reduction <add>, %177, %cst_110 [0] : vector<8x8xf32> to vector<8xf32>
    %179 = vector.shape_cast %178 : vector<8xf32> to vector<1x8xf32>
    %180 = vector.extract_strided_slice %177 {offsets = [0, 0], sizes = [1, 8], strides = [1, 1]} : vector<8x8xf32> to vector<1x8xf32>
    %181 = arith.subf %179, %180 : vector<1x8xf32>
    %cst_111 = arith.constant 0.142857149 : f32
    %182 = vector.broadcast %cst_111 : f32 to vector<1x8xf32>
    %183 = arith.mulf %181, %182 : vector<1x8xf32>
    %c0_112 = arith.constant 0 : index
    %c0_113 = arith.constant 0 : index
    %184 = vector.load %arg7[%c0_112, %c0_113] : memref<8x8xf32, #tpu.memory_space<vmem>>, vector<8x8xf32>
    %cst_114 = arith.constant dense<0.000000e+00> : vector<1x8xf32>
    %185 = tpu.matmul %183, %184, %cst_114 {dimension_numbers = #tpu.dot_dimension_numbers<[1], [0], [0], [1], [0, 0, 1, 1], [], []>} : vector<1x8xf32>, vector<8x8xf32>, vector<1x8xf32> -> vector<1x8xf32>
    %c0_115 = arith.constant 0 : index
    %c0_116 = arith.constant 0 : index
    %186 = vector.load %arg8[%c0_115, %c0_116] : memref<1x8xf32, #tpu.memory_space<vmem>>, vector<1x8xf32>
    %187 = arith.addf %185, %186 : vector<1x8xf32>
    %c0_117 = arith.constant 0 : index
    %c24 = arith.constant 24 : index
    %188 = vector.load %arg18[%c0_117, %c24] : memref<8x32xf32, #tpu.memory_space<vmem>>, vector<8x8xf32>
    tpu.vector_store %arg18[%c0_117, %c24], %177 {strides = array<i32>} : memref<8x32xf32, #tpu.memory_space<vmem>>, vector<8x8xf32>,
    %189 = vector.extract_strided_slice %177 {offsets = [0, 0], sizes = [1, 8], strides = [1, 1]} : vector<8x8xf32> to vector<1x8xf32>
    %190 = arith.addf %189, %187 : vector<1x8xf32>
    %c0_118 = arith.constant 0 : index
    %c24_119 = arith.constant 24 : index
    %191 = vector.load %arg18[%c0_118, %c24_119] : memref<8x32xf32, #tpu.memory_space<vmem>>, vector<1x8xf32>
    tpu.vector_store %arg18[%c0_118, %c24_119], %190 {strides = array<i32>} : memref<8x32xf32, #tpu.memory_space<vmem>>, vector<1x8xf32>,
    %c0_120 = arith.constant 0 : index
    %c0_121 = arith.constant 0 : index
    %192 = vector.load %arg18[%c0_120, %c0_121] : memref<8x32xf32, #tpu.memory_space<vmem>>, vector<8x32xf32>
    %c0_122 = arith.constant 0 : index
    %c0_123 = arith.constant 0 : index
    %193 = vector.load %arg9[%c0_122, %c0_123] : memref<32x32xf32, #tpu.memory_space<vmem>>, vector<32x32xf32>
    %cst_124 = arith.constant dense<0.000000e+00> : vector<8x32xf32>
    %194 = tpu.matmul %192, %193, %cst_124 {dimension_numbers = #tpu.dot_dimension_numbers<[1], [0], [0], [1], [0, 0, 1, 1], [], []>} : vector<8x32xf32>, vector<32x32xf32>, vector<8x32xf32> -> vector<8x32xf32>
    %c0_125 = arith.constant 0 : index
    %c0_126 = arith.constant 0 : index
    %195 = vector.load %arg10[%c0_125, %c0_126] : memref<1x32xf32, #tpu.memory_space<vmem>>, vector<1x32xf32>
    %196 = vector.broadcast %195 : vector<1x32xf32> to vector<8x32xf32>
    %197 = arith.addf %194, %196 : vector<8x32xf32>
    %198 = arith.addf %1, %197 : vector<8x32xf32>
    %c0_127 = arith.constant 0 : index
    %c0_128 = arith.constant 0 : index
    %199 = vector.load %arg11[%c0_127, %c0_128] : memref<1x32xf32, #tpu.memory_space<vmem>>, vector<1x32xf32>
    %c0_129 = arith.constant 0 : index
    %c0_130 = arith.constant 0 : index
    %200 = vector.load %arg12[%c0_129, %c0_130] : memref<1x32xf32, #tpu.memory_space<vmem>>, vector<1x32xf32>
    %cst_131 = arith.constant dense<0.000000e+00> : vector<8xf32>
    %201 = vector.multi_reduction <add>, %198, %cst_131 [1] : vector<8x32xf32> to vector<8xf32>
    %202 = vector.shape_cast %201 : vector<8xf32> to vector<8x1xf32>
    %cst_132 = arith.constant 3.200000e+01 : f32
    %203 = vector.broadcast %cst_132 : f32 to vector<8x1xf32>
    %204 = arith.divf %202, %203 : vector<8x1xf32>
    %205 = vector.broadcast %204 : vector<8x1xf32> to vector<8x32xf32>
    %206 = arith.subf %198, %205 : vector<8x32xf32>
    %207 = arith.mulf %206, %206 : vector<8x32xf32>
    %cst_133 = arith.constant dense<0.000000e+00> : vector<8xf32>
    %208 = vector.multi_reduction <add>, %207, %cst_133 [1] : vector<8x32xf32> to vector<8xf32>
    %209 = vector.shape_cast %208 : vector<8xf32> to vector<8x1xf32>
    %cst_134 = arith.constant 3.200000e+01 : f32
    %210 = vector.broadcast %cst_134 : f32 to vector<8x1xf32>
    %211 = arith.divf %209, %210 : vector<8x1xf32>
    %cst_135 = arith.constant 9.99999974E-6 : f32
    %212 = vector.broadcast %cst_135 : f32 to vector<8x1xf32>
    %213 = arith.addf %211, %212 : vector<8x1xf32>
    %214 = math.rsqrt %213 : vector<8x1xf32>
    %215 = vector.broadcast %214 : vector<8x1xf32> to vector<8x32xf32>
    %216 = arith.mulf %206, %215 : vector<8x32xf32>
    %217 = vector.broadcast %199 : vector<1x32xf32> to vector<8x32xf32>
    %218 = arith.mulf %216, %217 : vector<8x32xf32>
    %219 = vector.broadcast %200 : vector<1x32xf32> to vector<8x32xf32>
    %220 = arith.addf %218, %219 : vector<8x32xf32>
    %c0_136 = arith.constant 0 : index
    %c0_137 = arith.constant 0 : index
    %221 = vector.load %arg13[%c0_136, %c0_137] : memref<32x64xf32, #tpu.memory_space<vmem>>, vector<32x64xf32>
    %cst_138 = arith.constant dense<0.000000e+00> : vector<8x64xf32>
    %222 = tpu.matmul %220, %221, %cst_138 {dimension_numbers = #tpu.dot_dimension_numbers<[1], [0], [0], [1], [0, 0, 1, 1], [], []>} : vector<8x32xf32>, vector<32x64xf32>, vector<8x64xf32> -> vector<8x64xf32>
    %c0_139 = arith.constant 0 : index
    %c0_140 = arith.constant 0 : index
    %223 = vector.load %arg14[%c0_139, %c0_140] : memref<1x64xf32, #tpu.memory_space<vmem>>, vector<1x64xf32>
    %224 = vector.broadcast %223 : vector<1x64xf32> to vector<8x64xf32>
    %225 = arith.addf %222, %224 : vector<8x64xf32>
    %cst_141 = arith.constant 5.000000e-01 : f32
    %226 = vector.broadcast %cst_141 : f32 to vector<8x64xf32>
    %227 = arith.mulf %226, %225 : vector<8x64xf32>
    %cst_142 = arith.constant 0.707106769 : f32
    %228 = vector.broadcast %cst_142 : f32 to vector<8x64xf32>
    %229 = arith.mulf %225, %228 : vector<8x64xf32>
    %230 = math.absf %229 : vector<8x64xf32>
    %cst_143 = arith.constant 0.327591091 : f32
    %231 = vector.broadcast %cst_143 : f32 to vector<8x64xf32>
    %232 = arith.mulf %231, %230 : vector<8x64xf32>
    %cst_144 = arith.constant 1.000000e+00 : f32
    %233 = vector.broadcast %cst_144 : f32 to vector<8x64xf32>
    %234 = arith.addf %233, %232 : vector<8x64xf32>
    %cst_145 = arith.constant 1.000000e+00 : f32
    %235 = vector.broadcast %cst_145 : f32 to vector<8x64xf32>
    %236 = arith.divf %235, %234 : vector<8x64xf32>
    %cst_146 = arith.constant 1.06140542 : f32
    %237 = vector.broadcast %cst_146 : f32 to vector<8x64xf32>
    %238 = arith.mulf %236, %237 : vector<8x64xf32>
    %cst_147 = arith.constant -1.45315206 : f32
    %239 = vector.broadcast %cst_147 : f32 to vector<8x64xf32>
    %240 = arith.addf %239, %238 : vector<8x64xf32>
    %241 = arith.mulf %236, %240 : vector<8x64xf32>
    %cst_148 = arith.constant 1.42141378 : f32
    %242 = vector.broadcast %cst_148 : f32 to vector<8x64xf32>
    %243 = arith.addf %242, %241 : vector<8x64xf32>
    %244 = arith.mulf %236, %243 : vector<8x64xf32>
    %cst_149 = arith.constant -0.284496725 : f32
    %245 = vector.broadcast %cst_149 : f32 to vector<8x64xf32>
    %246 = arith.addf %245, %244 : vector<8x64xf32>
    %247 = arith.mulf %236, %246 : vector<8x64xf32>
    %cst_150 = arith.constant 0.254829586 : f32
    %248 = vector.broadcast %cst_150 : f32 to vector<8x64xf32>
    %249 = arith.addf %248, %247 : vector<8x64xf32>
    %250 = arith.mulf %236, %249 : vector<8x64xf32>
    %cst_151 = arith.constant 0.000000e+00 : f32
    %251 = vector.broadcast %cst_151 : f32 to vector<8x64xf32>
    %252 = arith.subf %251, %230 : vector<8x64xf32>
    %253 = arith.mulf %252, %230 : vector<8x64xf32>
    %254 = math.exp %253 : vector<8x64xf32>
    %255 = arith.mulf %250, %254 : vector<8x64xf32>
    %cst_152 = arith.constant 1.000000e+00 : f32
    %256 = vector.broadcast %cst_152 : f32 to vector<8x64xf32>
    %257 = arith.subf %256, %255 : vector<8x64xf32>
    %cst_153 = arith.constant 0.000000e+00 : f32
    %258 = vector.broadcast %cst_153 : f32 to vector<8x64xf32>
    %259 = arith.cmpf oge, %229, %258 : vector<8x64xf32>
    %cst_154 = arith.constant 0.000000e+00 : f32
    %260 = vector.broadcast %cst_154 : f32 to vector<8x64xf32>
    %261 = arith.subf %260, %257 : vector<8x64xf32>
    %262 = arith.select %259, %257, %261 : vector<8x64xi1>, vector<8x64xf32>
    %cst_155 = arith.constant 1.000000e+00 : f32
    %263 = vector.broadcast %cst_155 : f32 to vector<8x64xf32>
    %264 = arith.addf %263, %262 : vector<8x64xf32>
    %265 = arith.mulf %227, %264 : vector<8x64xf32>
    %c0_156 = arith.constant 0 : index
    %c0_157 = arith.constant 0 : index
    %266 = vector.load %arg15[%c0_156, %c0_157] : memref<64x32xf32, #tpu.memory_space<vmem>>, vector<64x32xf32>
    %cst_158 = arith.constant dense<0.000000e+00> : vector<8x32xf32>
    %267 = tpu.matmul %265, %266, %cst_158 {dimension_numbers = #tpu.dot_dimension_numbers<[1], [0], [0], [1], [0, 0, 1, 1], [], []>} : vector<8x64xf32>, vector<64x32xf32>, vector<8x32xf32> -> vector<8x32xf32>
    %c0_159 = arith.constant 0 : index
    %c0_160 = arith.constant 0 : index
    %268 = vector.load %arg16[%c0_159, %c0_160] : memref<1x32xf32, #tpu.memory_space<vmem>>, vector<1x32xf32>
    %269 = vector.broadcast %268 : vector<1x32xf32> to vector<8x32xf32>
    %270 = arith.addf %267, %269 : vector<8x32xf32>
    %271 = arith.addf %198, %270 : vector<8x32xf32>
    %c0_161 = arith.constant 0 : index
    %c0_162 = arith.constant 0 : index
    %c0_163 = arith.constant 0 : index
    %272 = vector.load %arg17[%c0_161, %c0_162, %c0_163] : memref<1x8x32xf32, #tpu.memory_space<vmem>>, vector<1x8x32xf32>
    %273 = vector.shape_cast %272 : vector<1x8x32xf32> to vector<8x32xf32>
    %274 = vector.shape_cast %271 : vector<8x32xf32> to vector<1x8x32xf32>
    tpu.vector_store %arg17[%c0_161, %c0_162, %c0_163], %274 {strides = array<i32>} : memref<1x8x32xf32, #tpu.memory_space<vmem>>, vector<1x8x32xf32>,
    return
  }
  func.func @transform_0(%arg0: i32) -> (i32, i32, i32) {
    %c0_i32 = arith.constant 0 : i32
    %c0_i32_0 = arith.constant 0 : i32
    %c0_i32_1 = arith.constant 0 : i32
    return %arg0, %c0_i32, %c0_i32_0 : i32, i32, i32
  }
  func.func @transform_1(%arg0: i32) -> (i32, i32) {
    %c0_i32 = arith.constant 0 : i32
    %c0_i32_0 = arith.constant 0 : i32
    %c0_i32_1 = arith.constant 0 : i32
    return %c0_i32, %c0_i32_0 : i32, i32
  }
  func.func @transform_2(%arg0: i32) -> (i32, i32) {
    %c0_i32 = arith.constant 0 : i32
    %c0_i32_0 = arith.constant 0 : i32
    %c0_i32_1 = arith.constant 0 : i32
    return %c0_i32, %c0_i32_0 : i32, i32
  }
  func.func @transform_3(%arg0: i32) -> (i32, i32, i32) {
    %c0_i32 = arith.constant 0 : i32
    %c0_i32_0 = arith.constant 0 : i32
    %c0_i32_1 = arith.constant 0 : i32
    %c0_i32_2 = arith.constant 0 : i32
    return %c0_i32, %c0_i32_0, %c0_i32_1 : i32, i32, i32
  }
  func.func @transform_4(%arg0: i32) -> (i32, i32, i32) {
    %c0_i32 = arith.constant 0 : i32
    %c0_i32_0 = arith.constant 0 : i32
    %c0_i32_1 = arith.constant 0 : i32
    %c0_i32_2 = arith.constant 0 : i32
    return %c0_i32, %c0_i32_0, %c0_i32_1 : i32, i32, i32
  }
  func.func @transform_5(%arg0: i32) -> (i32, i32, i32) {
    %c0_i32 = arith.constant 0 : i32
    %c0_i32_0 = arith.constant 0 : i32
    %c0_i32_1 = arith.constant 0 : i32
    %c0_i32_2 = arith.constant 0 : i32
    return %c0_i32, %c0_i32_0, %c0_i32_1 : i32, i32, i32
  }
  func.func @transform_6(%arg0: i32) -> (i32, i32) {
    %c0_i32 = arith.constant 0 : i32
    %c0_i32_0 = arith.constant 0 : i32
    %c0_i32_1 = arith.constant 0 : i32
    return %c0_i32, %c0_i32_0 : i32, i32
  }
  func.func @transform_7(%arg0: i32) -> (i32, i32) {
    %c0_i32 = arith.constant 0 : i32
    %c0_i32_0 = arith.constant 0 : i32
    %c0_i32_1 = arith.constant 0 : i32
    return %c0_i32, %c0_i32_0 : i32, i32
  }
  func.func @transform_8(%arg0: i32) -> (i32, i32) {
    %c0_i32 = arith.constant 0 : i32
    %c0_i32_0 = arith.constant 0 : i32
    %c0_i32_1 = arith.constant 0 : i32
    return %c0_i32, %c0_i32_0 : i32, i32
  }
  func.func @transform_9(%arg0: i32) -> (i32, i32) {
    %c0_i32 = arith.constant 0 : i32
    %c0_i32_0 = arith.constant 0 : i32
    %c0_i32_1 = arith.constant 0 : i32
    return %c0_i32, %c0_i32_0 : i32, i32
  }
  func.func @transform_10(%arg0: i32) -> (i32, i32) {
    %c0_i32 = arith.constant 0 : i32
    %c0_i32_0 = arith.constant 0 : i32
    %c0_i32_1 = arith.constant 0 : i32
    return %c0_i32, %c0_i32_0 : i32, i32
  }
  func.func @transform_11(%arg0: i32) -> (i32, i32) {
    %c0_i32 = arith.constant 0 : i32
    %c0_i32_0 = arith.constant 0 : i32
    %c0_i32_1 = arith.constant 0 : i32
    return %c0_i32, %c0_i32_0 : i32, i32
  }
  func.func @transform_12(%arg0: i32) -> (i32, i32) {
    %c0_i32 = arith.constant 0 : i32
    %c0_i32_0 = arith.constant 0 : i32
    %c0_i32_1 = arith.constant 0 : i32
    return %c0_i32, %c0_i32_0 : i32, i32
  }
  func.func @transform_13(%arg0: i32) -> (i32, i32) {
    %c0_i32 = arith.constant 0 : i32
    %c0_i32_0 = arith.constant 0 : i32
    %c0_i32_1 = arith.constant 0 : i32
    return %c0_i32, %c0_i32_0 : i32, i32
  }
  func.func @transform_14(%arg0: i32) -> (i32, i32) {
    %c0_i32 = arith.constant 0 : i32
    %c0_i32_0 = arith.constant 0 : i32
    %c0_i32_1 = arith.constant 0 : i32
    return %c0_i32, %c0_i32_0 : i32, i32
  }
  func.func @transform_15(%arg0: i32) -> (i32, i32) {
    %c0_i32 = arith.constant 0 : i32
    %c0_i32_0 = arith.constant 0 : i32
    %c0_i32_1 = arith.constant 0 : i32
    return %c0_i32, %c0_i32_0 : i32, i32
  }
  func.func @transform_16(%arg0: i32) -> (i32, i32, i32) {
    %c0_i32 = arith.constant 0 : i32
    %c0_i32_0 = arith.constant 0 : i32
    %c0_i32_1 = arith.constant 0 : i32
    return %arg0, %c0_i32, %c0_i32_0 : i32, i32, i32
  }
}

</mosaic_0001>

<llo_original>
// kernel: tpu_custom_call.1
$region0: #{tpu_custom_call.1}
  #allocation0 [shape = 'u32[]', space=smem, size = 0x4, offset = 0x4, fixed_abs, tag = 'smem constant byte address 0x4 - core index']
  #allocation1 [shape = 'u32[144,128]{1,0:T(1,128)}', space=vmem, size = 0x12000, scoped, tag = 'internal scratch']
  #allocation2 [shape = 'f32[8,32]{1,0:T(8,128)}', space=vmem, size = 0x1000, scoped, tag = 'scratch operand']
  %s0 = inlined_call_operand.vmem [shape: f32[2,8,32], index: 0, kind: input, shape index: {}]
  %s1 = inlined_call_operand.vmem [shape: f32[1,32], index: 1, kind: input, shape index: {}]
  %s2 = inlined_call_operand.vmem [shape: f32[1,32], index: 2, kind: input, shape index: {}]
  %s3 = inlined_call_operand.vmem [shape: f32[4,32,8], index: 3, kind: input, shape index: {}]
  %s4 = inlined_call_operand.vmem [shape: f32[4,32,8], index: 4, kind: input, shape index: {}]
  %s5 = inlined_call_operand.vmem [shape: f32[4,32,8], index: 5, kind: input, shape index: {}]
  %s6 = inlined_call_operand.vmem [shape: f32[8,8], index: 6, kind: input, shape index: {}]
  %s7 = inlined_call_operand.vmem [shape: f32[1,8], index: 7, kind: input, shape index: {}]
  %s8 = inlined_call_operand.vmem [shape: f32[32,32], index: 8, kind: input, shape index: {}]
  %s9 = inlined_call_operand.vmem [shape: f32[1,32], index: 9, kind: input, shape index: {}]
  %s10 = inlined_call_operand.vmem [shape: f32[1,32], index: 10, kind: input, shape index: {}]
  %s11 = inlined_call_operand.vmem [shape: f32[1,32], index: 11, kind: input, shape index: {}]
  %s12 = inlined_call_operand.vmem [shape: f32[32,64], index: 12, kind: input, shape index: {}]
  %s13 = inlined_call_operand.vmem [shape: f32[1,64], index: 13, kind: input, shape index: {}]
  %s14 = inlined_call_operand.vmem [shape: f32[64,32], index: 14, kind: input, shape index: {}]
  %s15 = inlined_call_operand.vmem [shape: f32[1,32], index: 15, kind: input, shape index: {}]
  %s16 = inlined_call_operand.hbm [shape: f32[2,8,32], index: 16, kind: output, shape index: {}]
  %s17 = sld [smem:[#allocation0]]
  $region97: #{tpu_custom_call.1} parent=0
    _
  %s19 = ssub.s32 1, %s17
  %s20 = scalar_select 0, %s19, %s17
  $region1: #{tpu_custom_call.1} parent=0
    #allocation3 [shape = 'u8[8192]{0}', space=vmem, size = 0x2000, scoped, tag = 'output window, operand 0']
    #allocation4 [shape = 's32[2]{0}', space=sflag, size = 0x8, scoped, tag = 'scoped memory for tpu_custom_call.1']
    %21 = vsyncpa [#allocation4], 0
    %s22 = scalar_lea.sflag [#allocation4], 1
    %23 = vsyncpa %s22, 0
    loop: start=0, step=1, limit=4
    $region2: #{tpu_custom_call.1} parent=1 // loop_pre_header
      _
    $region3: #{tpu_custom_call.1} parent=1 // loop_header
      %s25 = sphi 0, %s29
      %p26 = scmp.ge.s32.totalorder %s25, 4
      %s35 = sphi 0, %s37
      %s38 = sphi 0, %s35
      %s39 = sphi 0, %s38
      %s55 = sphi 0, %s39
      %s59 = sphi 0, %s59
      %s61 = sphi 0, %s59
      %s62 = sphi 0, %s61
      %s76 = sphi 0, %s62
      %s80 = sphi 0, %s80
      %s82 = sphi 0, %s80
      %s83 = sphi 0, %s82
      %s97 = sphi 0, %s83
      %s101 = sphi 0, %s101
      %s103 = sphi 0, %s101
      %s104 = sphi 0, %s103
      %s118 = sphi 0, %s104
      %s122 = sphi 0, %s122
      %s124 = sphi 0, %s122
      %s125 = sphi 0, %s124
      %s139 = sphi 0, %s125
      %s143 = sphi 0, %s143
      %s145 = sphi 0, %s143
      %s146 = sphi 0, %s145
      %s160 = sphi 0, %s146
      %s164 = sphi 0, %s164
      %s166 = sphi 0, %s164
      %s167 = sphi 0, %s166
      %s181 = sphi 0, %s167
      %s185 = sphi 0, %s185
      %s187 = sphi 0, %s185
      %s188 = sphi 0, %s187
      %s202 = sphi 0, %s188
      %s206 = sphi 0, %s206
      %s208 = sphi 0, %s206
      %s209 = sphi 0, %s208
      %s223 = sphi 0, %s209
      %s227 = sphi 0, %s227
      %s229 = sphi 0, %s227
      %s230 = sphi 0, %s229
      %s244 = sphi 0, %s230
      %s248 = sphi 0, %s248
      %s250 = sphi 0, %s248
      %s251 = sphi 0, %s250
      %s265 = sphi 0, %s251
      %s269 = sphi 0, %s269
      %s271 = sphi 0, %s269
      %s272 = sphi 0, %s271
      %s286 = sphi 0, %s272
      %s290 = sphi 0, %s290
      %s292 = sphi 0, %s290
      %s293 = sphi 0, %s292
      %s307 = sphi 0, %s293
      %s311 = sphi 0, %s311
      %s313 = sphi 0, %s311
      %s314 = sphi 0, %s313
      %s328 = sphi 0, %s314
      %s332 = sphi 0, %s332
      %s334 = sphi 0, %s332
      %s335 = sphi 0, %s334
      %s349 = sphi 0, %s335
      %s353 = sphi 0, %s353
      %s355 = sphi 0, %s353
      %s356 = sphi 0, %s355
      %s370 = sphi 0, %s356
      %s376 = sphi 0, %s378
      %s379 = sphi 0, %s376
      %s380 = sphi 0, %s379
      %s396 = sphi 0, %s380
    $region4: #{tpu_custom_call.1} parent=1 // loop_header_branch
      %28 = sbr.rel (%p26) target = $region8
    $region5: #{tpu_custom_call.1} parent=1 // loop_body
      %s30 = ssub.s32 %s25, 1
      %s31 = ssub.s32 %s25, 2
      %s32 = sadd.s32 %s25, 1
      %s33 = ssub.s32 %s25, %s32
      %p34 = scmp.eq.s32.totalorder %s33, 0
      %s36 = sadd.s32 %s35, 1
      %s37 = scalar_select %p34, %s35, %s36
      %p40 = pneg %p34
      %p41 = scmp.eq.s32.totalorder %s25, 1
      %p42 = por %p40, %p41
      %p43 = scmp.ne.s32.totalorder %s35, %s38
      %p44 = scmp.eq.s32.totalorder %s25, 0
      %p45 = por %p43, %p44
      %p46 = scmp.ne.s32.totalorder %s35, %s38
      %p47 = scmp.eq.s32.totalorder %s30, 1
      %p48 = por %p46, %p47
      %p49 = scmp.ne.s32.totalorder %s38, %s39
      %p50 = scmp.eq.s32.totalorder %s30, 0
      %p51 = por %p49, %p50
      %p52 = scmp.ne.s32.totalorder %s38, %s39
      %p53 = scmp.eq.s32.totalorder %s31, 1
      %p54 = por %p52, %p53
      %p56 = scmp.ne.s32.totalorder %s39, %s55
      %p57 = scmp.eq.s32.totalorder %s31, 0
      %p58 = por %p56, %p57
      %s60 = sadd.s32 %s59, 1
      %p63 = scmp.eq.s32.totalorder %s25, 1
      %p64 = scmp.ne.s32.totalorder %s59, %s61
      %p65 = scmp.eq.s32.totalorder %s25, 0
      %p66 = por %p64, %p65
      %p67 = scmp.ne.s32.totalorder %s59, %s61
      %p68 = scmp.eq.s32.totalorder %s30, 1
      %p69 = por %p67, %p68
      %p70 = scmp.ne.s32.totalorder %s61, %s62
      %p71 = scmp.eq.s32.totalorder %s30, 0
      %p72 = por %p70, %p71
      %p73 = scmp.ne.s32.totalorder %s61, %s62
      %p74 = scmp.eq.s32.totalorder %s31, 1
      %p75 = por %p73, %p74
      %p77 = scmp.ne.s32.totalorder %s62, %s76
      %p78 = scmp.eq.s32.totalorder %s31, 0
      %p79 = por %p77, %p78
      %s81 = sadd.s32 %s80, 1
      %p84 = scmp.eq.s32.totalorder %s25, 1
      %p85 = scmp.ne.s32.totalorder %s80, %s82
      %p86 = scmp.eq.s32.totalorder %s25, 0
      %p87 = por %p85, %p86
      %p88 = scmp.ne.s32.totalorder %s80, %s82
      %p89 = scmp.eq.s32.totalorder %s30, 1
      %p90 = por %p88, %p89
      %p91 = scmp.ne.s32.totalorder %s82, %s83
      %p92 = scmp.eq.s32.totalorder %s30, 0
      %p93 = por %p91, %p92
      %p94 = scmp.ne.s32.totalorder %s82, %s83
      %p95 = scmp.eq.s32.totalorder %s31, 1
      %p96 = por %p94, %p95
      %p98 = scmp.ne.s32.totalorder %s83, %s97
      %p99 = scmp.eq.s32.totalorder %s31, 0
      %p100 = por %p98, %p99
      %s102 = sadd.s32 %s101, 1
      %p105 = scmp.eq.s32.totalorder %s25, 1
      %p106 = scmp.ne.s32.totalorder %s101, %s103
      %p107 = scmp.eq.s32.totalorder %s25, 0
      %p108 = por %p106, %p107
      %p109 = scmp.ne.s32.totalorder %s101, %s103
      %p110 = scmp.eq.s32.totalorder %s30, 1
      %p111 = por %p109, %p110
      %p112 = scmp.ne.s32.totalorder %s103, %s104
      %p113 = scmp.eq.s32.totalorder %s30, 0
      %p114 = por %p112, %p113
      %p115 = scmp.ne.s32.totalorder %s103, %s104
      %p116 = scmp.eq.s32.totalorder %s31, 1
      %p117 = por %p115, %p116
      %p119 = scmp.ne.s32.totalorder %s104, %s118
      %p120 = scmp.eq.s32.totalorder %s31, 0
      %p121 = por %p119, %p120
      %s123 = sadd.s32 %s122, 1
      %p126 = scmp.eq.s32.totalorder %s25, 1
      %p127 = scmp.ne.s32.totalorder %s122, %s124
      %p128 = scmp.eq.s32.totalorder %s25, 0
      %p129 = por %p127, %p128
      %p130 = scmp.ne.s32.totalorder %s122, %s124
      %p131 = scmp.eq.s32.totalorder %s30, 1
      %p132 = por %p130, %p131
      %p133 = scmp.ne.s32.totalorder %s124, %s125
      %p134 = scmp.eq.s32.totalorder %s30, 0
      %p135 = por %p133, %p134
      %p136 = scmp.ne.s32.totalorder %s124, %s125
      %p137 = scmp.eq.s32.totalorder %s31, 1
      %p138 = por %p136, %p137
      %p140 = scmp.ne.s32.totalorder %s125, %s139
      %p141 = scmp.eq.s32.totalorder %s31, 0
      %p142 = por %p140, %p141
      %s144 = sadd.s32 %s143, 1
      %p147 = scmp.eq.s32.totalorder %s25, 1
      %p148 = scmp.ne.s32.totalorder %s143, %s145
      %p149 = scmp.eq.s32.totalorder %s25, 0
      %p150 = por %p148, %p149
      %p151 = scmp.ne.s32.totalorder %s143, %s145
      %p152 = scmp.eq.s32.totalorder %s30, 1
      %p153 = por %p151, %p152
      %p154 = scmp.ne.s32.totalorder %s145, %s146
      %p155 = scmp.eq.s32.totalorder %s30, 0
      %p156 = por %p154, %p155
      %p157 = scmp.ne.s32.totalorder %s145, %s146
      %p158 = scmp.eq.s32.totalorder %s31, 1
      %p159 = por %p157, %p158
      %p161 = scmp.ne.s32.totalorder %s146, %s160
      %p162 = scmp.eq.s32.totalorder %s31, 0
      %p163 = por %p161, %p162
      %s165 = sadd.s32 %s164, 1
      %p168 = scmp.eq.s32.totalorder %s25, 1
      %p169 = scmp.ne.s32.totalorder %s164, %s166
      %p170 = scmp.eq.s32.totalorder %s25, 0
      %p171 = por %p169, %p170
      %p172 = scmp.ne.s32.totalorder %s164, %s166
      %p173 = scmp.eq.s32.totalorder %s30, 1
      %p174 = por %p172, %p173
      %p175 = scmp.ne.s32.totalorder %s166, %s167
      %p176 = scmp.eq.s32.totalorder %s30, 0
      %p177 = por %p175, %p176
      %p178 = scmp.ne.s32.totalorder %s166, %s167
      %p179 = scmp.eq.s32.totalorder %s31, 1
      %p180 = por %p178, %p179
      %p182 = scmp.ne.s32.totalorder %s167, %s181
      %p183 = scmp.eq.s32.totalorder %s31, 0
      %p184 = por %p182, %p183
      %s186 = sadd.s32 %s185, 1
      %p189 = scmp.eq.s32.totalorder %s25, 1
      %p190 = scmp.ne.s32.totalorder %s185, %s187
      %p191 = scmp.eq.s32.totalorder %s25, 0
      %p192 = por %p190, %p191
      %p193 = scmp.ne.s32.totalorder %s185, %s187
      %p194 = scmp.eq.s32.totalorder %s30, 1
      %p195 = por %p193, %p194
      %p196 = scmp.ne.s32.totalorder %s187, %s188
      %p197 = scmp.eq.s32.totalorder %s30, 0
      %p198 = por %p196, %p197
      %p199 = scmp.ne.s32.totalorder %s187, %s188
      %p200 = scmp.eq.s32.totalorder %s31, 1
      %p201 = por %p199, %p200
      %p203 = scmp.ne.s32.totalorder %s188, %s202
      %p204 = scmp.eq.s32.totalorder %s31, 0
      %p205 = por %p203, %p204
      %s207 = sadd.s32 %s206, 1
      %p210 = scmp.eq.s32.totalorder %s25, 1
      %p211 = scmp.ne.s32.totalorder %s206, %s208
      %p212 = scmp.eq.s32.totalorder %s25, 0
      %p213 = por %p211, %p212
      %p214 = scmp.ne.s32.totalorder %s206, %s208
      %p215 = scmp.eq.s32.totalorder %s30, 1
      %p216 = por %p214, %p215
      %p217 = scmp.ne.s32.totalorder %s208, %s209
      %p218 = scmp.eq.s32.totalorder %s30, 0
      %p219 = por %p217, %p218
      %p220 = scmp.ne.s32.totalorder %s208, %s209
      %p221 = scmp.eq.s32.totalorder %s31, 1
      %p222 = por %p220, %p221
      %p224 = scmp.ne.s32.totalorder %s209, %s223
      %p225 = scmp.eq.s32.totalorder %s31, 0
      %p226 = por %p224, %p225
      %s228 = sadd.s32 %s227, 1
      %p231 = scmp.eq.s32.totalorder %s25, 1
      %p232 = scmp.ne.s32.totalorder %s227, %s229
      %p233 = scmp.eq.s32.totalorder %s25, 0
      %p234 = por %p232, %p233
      %p235 = scmp.ne.s32.totalorder %s227, %s229
      %p236 = scmp.eq.s32.totalorder %s30, 1
      %p237 = por %p235, %p236
      %p238 = scmp.ne.s32.totalorder %s229, %s230
      %p239 = scmp.eq.s32.totalorder %s30, 0
      %p240 = por %p238, %p239
      %p241 = scmp.ne.s32.totalorder %s229, %s230
      %p242 = scmp.eq.s32.totalorder %s31, 1
      %p243 = por %p241, %p242
      %p245 = scmp.ne.s32.totalorder %s230, %s244
      %p246 = scmp.eq.s32.totalorder %s31, 0
      %p247 = por %p245, %p246
      %s249 = sadd.s32 %s248, 1
      %p252 = scmp.eq.s32.totalorder %s25, 1
      %p253 = scmp.ne.s32.totalorder %s248, %s250
      %p254 = scmp.eq.s32.totalorder %s25, 0
      %p255 = por %p253, %p254
      %p256 = scmp.ne.s32.totalorder %s248, %s250
      %p257 = scmp.eq.s32.totalorder %s30, 1
      %p258 = por %p256, %p257
      %p259 = scmp.ne.s32.totalorder %s250, %s251
      %p260 = scmp.eq.s32.totalorder %s30, 0
      %p261 = por %p259, %p260
      %p262 = scmp.ne.s32.totalorder %s250, %s251
      %p263 = scmp.eq.s32.totalorder %s31, 1
      %p264 = por %p262, %p263
      %p266 = scmp.ne.s32.totalorder %s251, %s265
      %p267 = scmp.eq.s32.totalorder %s31, 0
      %p268 = por %p266, %p267
      %s270 = sadd.s32 %s269, 1
      %p273 = scmp.eq.s32.totalorder %s25, 1
      %p274 = scmp.ne.s32.totalorder %s269, %s271
      %p275 = scmp.eq.s32.totalorder %s25, 0
      %p276 = por %p274, %p275
      %p277 = scmp.ne.s32.totalorder %s269, %s271
      %p278 = scmp.eq.s32.totalorder %s30, 1
      %p279 = por %p277, %p278
      %p280 = scmp.ne.s32.totalorder %s271, %s272
      %p281 = scmp.eq.s32.totalorder %s30, 0
      %p282 = por %p280, %p281
      %p283 = scmp.ne.s32.totalorder %s271, %s272
      %p284 = scmp.eq.s32.totalorder %s31, 1
      %p285 = por %p283, %p284
      %p287 = scmp.ne.s32.totalorder %s272, %s286
      %p288 = scmp.eq.s32.totalorder %s31, 0
      %p289 = por %p287, %p288
      %s291 = sadd.s32 %s290, 1
      %p294 = scmp.eq.s32.totalorder %s25, 1
      %p295 = scmp.ne.s32.totalorder %s290, %s292
      %p296 = scmp.eq.s32.totalorder %s25, 0
      %p297 = por %p295, %p296
      %p298 = scmp.ne.s32.totalorder %s290, %s292
      %p299 = scmp.eq.s32.totalorder %s30, 1
      %p300 = por %p298, %p299
      %p301 = scmp.ne.s32.totalorder %s292, %s293
      %p302 = scmp.eq.s32.totalorder %s30, 0
      %p303 = por %p301, %p302
      %p304 = scmp.ne.s32.totalorder %s292, %s293
      %p305 = scmp.eq.s32.totalorder %s31, 1
      %p306 = por %p304, %p305
      %p308 = scmp.ne.s32.totalorder %s293, %s307
      %p309 = scmp.eq.s32.totalorder %s31, 0
      %p310 = por %p308, %p309
      %s312 = sadd.s32 %s311, 1
      %p315 = scmp.eq.s32.totalorder %s25, 1
      %p316 = scmp.ne.s32.totalorder %s311, %s313
      %p317 = scmp.eq.s32.totalorder %s25, 0
      %p318 = por %p316, %p317
      %p319 = scmp.ne.s32.totalorder %s311, %s313
      %p320 = scmp.eq.s32.totalorder %s30, 1
      %p321 = por %p319, %p320
      %p322 = scmp.ne.s32.totalorder %s313, %s314
      %p323 = scmp.eq.s32.totalorder %s30, 0
      %p324 = por %p322, %p323
      %p325 = scmp.ne.s32.totalorder %s313, %s314
      %p326 = scmp.eq.s32.totalorder %s31, 1
      %p327 = por %p325, %p326
      %p329 = scmp.ne.s32.totalorder %s314, %s328
      %p330 = scmp.eq.s32.totalorder %s31, 0
      %p331 = por %p329, %p330
      %s333 = sadd.s32 %s332, 1
      %p336 = scmp.eq.s32.totalorder %s25, 1
      %p337 = scmp.ne.s32.totalorder %s332, %s334
      %p338 = scmp.eq.s32.totalorder %s25, 0
      %p339 = por %p337, %p338
      %p340 = scmp.ne.s32.totalorder %s332, %s334
      %p341 = scmp.eq.s32.totalorder %s30, 1
      %p342 = por %p340, %p341
      %p343 = scmp.ne.s32.totalorder %s334, %s335
      %p344 = scmp.eq.s32.totalorder %s30, 0
      %p345 = por %p343, %p344
      %p346 = scmp.ne.s32.totalorder %s334, %s335
      %p347 = scmp.eq.s32.totalorder %s31, 1
      %p348 = por %p346, %p347
      %p350 = scmp.ne.s32.totalorder %s335, %s349
      %p351 = scmp.eq.s32.totalorder %s31, 0
      %p352 = por %p350, %p351
      %s354 = sadd.s32 %s353, 1
      %p357 = scmp.eq.s32.totalorder %s25, 1
      %p358 = scmp.ne.s32.totalorder %s353, %s355
      %p359 = scmp.eq.s32.totalorder %s25, 0
      %p360 = por %p358, %p359
      %p361 = scmp.ne.s32.totalorder %s353, %s355
      %p362 = scmp.eq.s32.totalorder %s30, 1
      %p363 = por %p361, %p362
      %p364 = scmp.ne.s32.totalorder %s355, %s356
      %p365 = scmp.eq.s32.totalorder %s30, 0
      %p366 = por %p364, %p365
      %p367 = scmp.ne.s32.totalorder %s355, %s356
      %p368 = scmp.eq.s32.totalorder %s31, 1
      %p369 = por %p367, %p368
      %p371 = scmp.ne.s32.totalorder %s356, %s370
      %p372 = scmp.eq.s32.totalorder %s31, 0
      %p373 = por %p371, %p372
      %s374 = ssub.s32 %s25, %s32
      %p375 = scmp.eq.s32.totalorder %s374, 0
      %s377 = sadd.s32 %s376, 1
      %s378 = scalar_select %p375, %s376, %s377
      %p381 = pneg %p375
      %p382 = scmp.eq.s32.totalorder %s25, 1
      %p383 = por %p381, %p382
      %p384 = scmp.ne.s32.totalorder %s376, %s379
      %p385 = scmp.eq.s32.totalorder %s25, 0
      %p386 = por %p384, %p385
      %p387 = scmp.ne.s32.totalorder %s376, %s379
      %p388 = scmp.eq.s32.totalorder %s30, 1
      %p389 = por %p387, %p388
      %p390 = scmp.ne.s32.totalorder %s379, %s380
      %p391 = scmp.eq.s32.totalorder %s30, 0
      %p392 = por %p390, %p391
      %p393 = scmp.ne.s32.totalorder %s379, %s380
      %p394 = scmp.eq.s32.totalorder %s31, 1
      %p395 = por %p393, %p394
      %p397 = scmp.ne.s32.totalorder %s380, %s396
      %p398 = scmp.eq.s32.totalorder %s31, 0
      %p399 = por %p397, %p398
      %p400 = scmp.le.s32.totalorder 1, %s25
      %p401 = scmp.lt.s32.totalorder %s25, 3
      %p402 = pnand %p400, %p401
      %p403 = pneg %p402
      // Predicated region
      $region9: #{tpu_custom_call.1} parent=5 // pred_check
        _
      $region10: #{tpu_custom_call.1} parent=5 // pred_check_branch
        %405 = sbr.rel (%p402) target = $region12
      $region11: #{tpu_custom_call.1} parent=5 // pred_region
        %s406 = ssub.s32 %s25, 1
        // Predicated region
        $region13: #{tpu_custom_call.1} parent=11 // pred_check
          %p407 = pneg %p72
        $region14: #{tpu_custom_call.1} parent=11 // pred_check_branch
          %409 = sbr.rel (%p407) target = $region16
        $region15: #{tpu_custom_call.1} parent=11 // pred_region
          _
        $region16: #{tpu_custom_call.1} parent=11 // pred_fallthru
          _
        // Predicated region
        $region17: #{tpu_custom_call.1} parent=11 // pred_check
          %p410 = pneg %p93
        $region18: #{tpu_custom_call.1} parent=11 // pred_check_branch
          %412 = sbr.rel (%p410) target = $region20
        $region19: #{tpu_custom_call.1} parent=11 // pred_region
          _
        $region20: #{tpu_custom_call.1} parent=11 // pred_fallthru
          _
        // Predicated region
        $region21: #{tpu_custom_call.1} parent=11 // pred_check
          %p413 = pneg %p114
        $region22: #{tpu_custom_call.1} parent=11 // pred_check_branch
          %415 = sbr.rel (%p413) target = $region24
        $region23: #{tpu_custom_call.1} parent=11 // pred_region
          _
        $region24: #{tpu_custom_call.1} parent=11 // pred_fallthru
          _
        // Predicated region
        $region25: #{tpu_custom_call.1} parent=11 // pred_check
          %p416 = pneg %p135
        $region26: #{tpu_custom_call.1} parent=11 // pred_check_branch
          %418 = sbr.rel (%p416) target = $region28
        $region27: #{tpu_custom_call.1} parent=11 // pred_region
          _
        $region28: #{tpu_custom_call.1} parent=11 // pred_fallthru
          _
        // Predicated region
        $region29: #{tpu_custom_call.1} parent=11 // pred_check
          %p419 = pneg %p156
        $region30: #{tpu_custom_call.1} parent=11 // pred_check_branch
          %421 = sbr.rel (%p419) target = $region32
        $region31: #{tpu_custom_call.1} parent=11 // pred_region
          _
        $region32: #{tpu_custom_call.1} parent=11 // pred_fallthru
          _
        // Predicated region
        $region33: #{tpu_custom_call.1} parent=11 // pred_check
          %p422 = pneg %p177
        $region34: #{tpu_custom_call.1} parent=11 // pred_check_branch
          %424 = sbr.rel (%p422) target = $region36
        $region35: #{tpu_custom_call.1} parent=11 // pred_region
          _
        $region36: #{tpu_custom_call.1} parent=11 // pred_fallthru
          _
        // Predicated region
        $region37: #{tpu_custom_call.1} parent=11 // pred_check
          %p425 = pneg %p198
        $region38: #{tpu_custom_call.1} parent=11 // pred_check_branch
          %427 = sbr.rel (%p425) target = $region40
        $region39: #{tpu_custom_call.1} parent=11 // pred_region
          _
        $region40: #{tpu_custom_call.1} parent=11 // pred_fallthru
          _
        // Predicated region
        $region41: #{tpu_custom_call.1} parent=11 // pred_check
          %p428 = pneg %p219
        $region42: #{tpu_custom_call.1} parent=11 // pred_check_branch
          %430 = sbr.rel (%p428) target = $region44
        $region43: #{tpu_custom_call.1} parent=11 // pred_region
          _
        $region44: #{tpu_custom_call.1} parent=11 // pred_fallthru
          _
        // Predicated region
        $region45: #{tpu_custom_call.1} parent=11 // pred_check
          %p431 = pneg %p240
        $region46: #{tpu_custom_call.1} parent=11 // pred_check_branch
          %433 = sbr.rel (%p431) target = $region48
        $region47: #{tpu_custom_call.1} parent=11 // pred_region
          _
        $region48: #{tpu_custom_call.1} parent=11 // pred_fallthru
          _
        // Predicated region
        $region49: #{tpu_custom_call.1} parent=11 // pred_check
          %p434 = pneg %p261
        $region50: #{tpu_custom_call.1} parent=11 // pred_check_branch
          %436 = sbr.rel (%p434) target = $region52
        $region51: #{tpu_custom_call.1} parent=11 // pred_region
          _
        $region52: #{tpu_custom_call.1} parent=11 // pred_fallthru
          _
        // Predicated region
        $region53: #{tpu_custom_call.1} parent=11 // pred_check
          %p437 = pneg %p282
        $region54: #{tpu_custom_call.1} parent=11 // pred_check_branch
          %439 = sbr.rel (%p437) target = $region56
        $region55: #{tpu_custom_call.1} parent=11 // pred_region
          _
        $region56: #{tpu_custom_call.1} parent=11 // pred_fallthru
          _
        // Predicated region
        $region57: #{tpu_custom_call.1} parent=11 // pred_check
          %p440 = pneg %p303
        $region58: #{tpu_custom_call.1} parent=11 // pred_check_branch
          %442 = sbr.rel (%p440) target = $region60
        $region59: #{tpu_custom_call.1} parent=11 // pred_region
          _
        $region60: #{tpu_custom_call.1} parent=11 // pred_fallthru
          _
        // Predicated region
        $region61: #{tpu_custom_call.1} parent=11 // pred_check
          %p443 = pneg %p324
        $region62: #{tpu_custom_call.1} parent=11 // pred_check_branch
          %445 = sbr.rel (%p443) target = $region64
        $region63: #{tpu_custom_call.1} parent=11 // pred_region
          _
        $region64: #{tpu_custom_call.1} parent=11 // pred_fallthru
          _
        // Predicated region
        $region65: #{tpu_custom_call.1} parent=11 // pred_check
          %p446 = pneg %p345
        $region66: #{tpu_custom_call.1} parent=11 // pred_check_branch
          %448 = sbr.rel (%p446) target = $region68
        $region67: #{tpu_custom_call.1} parent=11 // pred_region
          _
        $region68: #{tpu_custom_call.1} parent=11 // pred_fallthru
          _
        // Predicated region
        $region69: #{tpu_custom_call.1} parent=11 // pred_check
          %p449 = pneg %p366
        $region70: #{tpu_custom_call.1} parent=11 // pred_check_branch
          %451 = sbr.rel (%p449) target = $region72
        $region71: #{tpu_custom_call.1} parent=11 // pred_region
          _
        $region72: #{tpu_custom_call.1} parent=11 // pred_fallthru
          _
      $region12: #{tpu_custom_call.1} parent=5 // pred_fallthru
        _
      %p452 = scmp.lt.s32.totalorder %s25, 2
      // Predicated region
      $region73: #{tpu_custom_call.1} parent=5 // pred_check
        %p453 = pneg %p452
      $region74: #{tpu_custom_call.1} parent=5 // pred_check_branch
        %455 = sbr.rel (%p453) target = $region76
      $region75: #{tpu_custom_call.1} parent=5 // pred_region
        // Predicated region
        $region77: #{tpu_custom_call.1} parent=75 // pred_check
          %p456 = pneg %p45
        $region78: #{tpu_custom_call.1} parent=75 // pred_check_branch
          %458 = sbr.rel (%p456) target = $region80
        $region79: #{tpu_custom_call.1} parent=75 // pred_region
          %p459 = scmp.lt.s32.totalorder %s25, 1
          %s460 = scalar_select %p459, %s25, 1
          %s461 = smul.addr %s460, 8
          %s462 = scalar_lea.vmem %s0, %s461
        $region80: #{tpu_custom_call.1} parent=75 // pred_fallthru
          _
      $region76: #{tpu_custom_call.1} parent=5 // pred_fallthru
        _
      %p463 = scmp.le.s32.totalorder 1, %s25
      %p464 = scmp.lt.s32.totalorder %s25, 3
      %p465 = pnand %p463, %p464
      %p466 = pneg %p465
      // Predicated region
      $region81: #{tpu_custom_call.1} parent=5 // pred_check
        _
      $region82: #{tpu_custom_call.1} parent=5 // pred_check_branch
        %468 = sbr.rel (%p465) target = $region84
      $region83: #{tpu_custom_call.1} parent=5 // pred_region
        %s469 = ssub.s32 %s25, 1
        %p470 = scmp.lt.s32.totalorder %s30, 1
        %s471 = scalar_select %p470, %s30, 1
        %s472 = smul.addr %s471, 8
        %s473 = scalar_lea.vmem %s0, %s472
        %p474 = pneg %p51
        %p475 = pneg %p48
        %p476 = pneg %p72
        %p477 = pneg %p69
        %p478 = pneg %p93
        %p479 = pneg %p90
        %p480 = pneg %p114
        %p481 = pneg %p111
        %p482 = pneg %p135
        %p483 = pneg %p132
        %p484 = pneg %p156
        %p485 = pneg %p153
        %p486 = pneg %p177
        %p487 = pneg %p174
        %p488 = pneg %p198
        %p489 = pneg %p195
        %p490 = pneg %p219
        %p491 = pneg %p216
        %p492 = pneg %p240
        %p493 = pneg %p237
        %p494 = pneg %p261
        %p495 = pneg %p258
        %p496 = pneg %p282
        %p497 = pneg %p279
        %p498 = pneg %p303
        %p499 = pneg %p300
        %p500 = pneg %p324
        %p501 = pneg %p321
        %p502 = pneg %p345
        %p503 = pneg %p342
        %p504 = pneg %p366
        %p505 = pneg %p363
        %p506 = pneg %p392
        %p507 = pneg %p389
        %s508 = sand.u32 %s379, 1
        %s509 = scalar_lea.sflag [#allocation4], %s508
        %s510 = sand.u32 %s379, 1
        %s511 = smul.addr %s510, 8
        %s512 = scalar_lea.vmem [#allocation3], %s511
        %p513 = scmp.lt.s32.totalorder %s30, 1
        %s514 = scalar_select %p513, %s30, 1
        %s515 = smul.addr %s514, 8
        %s516 = scalar_lea.vmem %s0, %s515
        %v517 = vld [vmem:[%s516] sm:$0xff]
        %v518 = vld [vmem:[%s1] sm:$0x1]
        %v519 = vld [vmem:[%s2] sm:$0x1]
        %vm520 = vcmask 261120
        %v521 = vsel %vm520, %v517, 0.0
        %522 = vadd.xlane.f32.xlu0 %v521
        %v523 = vpop.xlane.xlu0 %522
        %v524 = vrcp.pop 32.0
        %v525 = vmul.f32 %v523, %v524
        %v526 = vsub.f32 %v517, %v525
        %v527 = vmul.f32 %v526, %v526
        %v528 = vsel %vm520, %v527, 0.0
        %529 = vadd.xlane.f32.xlu0 %v528
        %v530 = vpop.xlane.xlu0 %529
        %v531 = vmul.f32 %v530, %v524
        %v532 = vadd.f32 %v531, 1e-05
        %v533 = vrsqrt.pop %v532
        %v534 = vmul.f32 %v526, %v533
        %v536 = vlaneseq
        %v537 = vshrl.u32 %v536, 7
        %v538 = vsub.s32 0, %v537
        %v539 = vrot.slane %v518, %v538
        %v541 = vmul.f32 %v534, %v539
        %v543 = vlaneseq
        %v544 = vshrl.u32 %v543, 7
        %v545 = vsub.s32 0, %v544
        %v546 = vrot.slane %v519, %v545
        %v548 = vadd.f32 %v541, %v546
        %v549 = vld [vmem:[%s3] sm:$0xff]
        %v550 = vld [vmem:[%s3 + $0x8] sm:$0xff]
        %v551 = vld [vmem:[%s3 + $0x10] sm:$0xff]
        %v552 = vld [vmem:[%s3 + $0x18] sm:$0xff]
        %v554 = vsel %vm520, %v548, 0
        %556 = vmatprep.subr.mxu0 0.0
        %557 = vmatpush1.msra.mxu0 %v549
        %558 = vmatprep.subr.mxu0 0.0
        %559 = vmatpush1.msra.mxu0 %v550
        %560 = vmatprep.subr.mxu0 0.0
        %561 = vmatpush1.msra.mxu0 %v551
        %562 = vmatprep.subr.mxu0 0.0
        %563 = vmatpush1.msra.mxu0 %v552
        %564 = vmatprep.subr.mxu0 0.0
        %565 = vmatpush1.msra.mxu0 0.0
        %566 = vmatprep.subr.mxu0 0.0
        %567 = vmatpush1.msra.mxu0 0.0
        %568 = vmatprep.subr.mxu0 0.0
        %569 = vmatpush1.msra.mxu0 0.0
        %570 = vmatprep.subr.mxu0 0.0
        %571 = vmatpush1.msra.mxu0 0.0
        %572 = vmatprep.subr.mxu0 0.0
        %573 = vmatpush1.msra.mxu0 0.0
        %574 = vmatprep.subr.mxu0 0.0
        %575 = vmatpush1.msra.mxu0 0.0
        %576 = vmatprep.subr.mxu0 0.0
        %577 = vmatpush1.msra.mxu0 0.0
        %578 = vmatprep.subr.mxu0 0.0
        %579 = vmatpush1.msra.mxu0 0.0
        %580 = vmatprep.subr.mxu0 0.0
        %581 = vmatpush1.msra.mxu0 0.0
        %582 = vmatprep.subr.mxu0 0.0
        %583 = vmatpush1.msra.mxu0 0.0
        %584 = vmatprep.subr.mxu0 0.0
        %585 = vmatpush1.msra.mxu0 0.0
        %586 = vmatprep.subr.mxu0 0.0
        %587 = vmatpush1.msra.mxu0 0.0
        %588 = vmatprep.subr.mxu0 0.0
        %589 = vmatpush1.msra.mxu0 0.0
        %590 = vmatprep.subr.mxu0 0.0
        %591 = vmatpush1.msra.mxu0 0.0
        %592 = vmatprep.subr.mxu0 0.0
        %593 = vmatpush1.msra.mxu0 0.0
        %594 = vmatprep.subr.mxu0 0.0
        %595 = vmatpush1.msra.mxu0 0.0
        %596 = vmatprep.subr.mxu0 0.0
        %597 = vmatpush1.msra.mxu0 0.0
        %598 = vmatprep.subr.mxu0 0.0
        %599 = vmatpush1.msra.mxu0 0.0
        %600 = vmatprep.subr.mxu0 0.0
        %601 = vmatpush1.msra.mxu0 0.0
        %602 = vmatprep.subr.mxu0 0.0
        %603 = vmatpush1.msra.mxu0 0.0
        %604 = vmatprep.subr.mxu0 0.0
        %605 = vmatpush1.msra.mxu0 0.0
        %606 = vmatprep.subr.mxu0 0.0
        %607 = vmatpush1.msra.mxu0 0.0
        %608 = vmatprep.subr.mxu0 0.0
        %609 = vmatpush1.msra.mxu0 0.0
        %610 = vmatprep.subr.mxu0 0.0
        %611 = vmatpush1.msra.mxu0 0.0
        %612 = vmatprep.subr.mxu0 0.0
        %613 = vmatpush1.msra.mxu0 0.0
        %614 = vmatprep.subr.mxu0 0.0
        %615 = vmatpush1.msra.mxu0 0.0
        %616 = vmatprep.subr.mxu0 0.0
        %617 = vmatpush1.msra.mxu0 0.0
        %618 = vmatprep.subr.mxu0 0.0
        %619 = vmatpush1.msra.mxu0 0.0
        %620 = vmatprep.mubr.f32.mxu0 0.0
        %621 = vmatmul.mubr.f32.gmra.mrb[0].mxu0 %v554
        %v622 = vpop.f32.mrb[0].mxu0
        %v623 = vadd.f32 0.0, %v622
        %v624 = vpop.f32.mrb[0].mxu0
        %625 = vdwg.mxu0
        %v626 = vld [vmem:[%s4] sm:$0xff]
        %v627 = vld [vmem:[%s4 + $0x8] sm:$0xff]
        %v628 = vld [vmem:[%s4 + $0x10] sm:$0xff]
        %v629 = vld [vmem:[%s4 + $0x18] sm:$0xff]
        %630 = vmatprep.subr.mxu0 0.0
        %631 = vmatpush1.msra.mxu0 %v626
        %632 = vmatprep.subr.mxu0 0.0
        %633 = vmatpush1.msra.mxu0 %v627
        %634 = vmatprep.subr.mxu0 0.0
        %635 = vmatpush1.msra.mxu0 %v628
        %636 = vmatprep.subr.mxu0 0.0
        %637 = vmatpush1.msra.mxu0 %v629
        %638 = vmatprep.subr.mxu0 0.0
        %639 = vmatpush1.msra.mxu0 0.0
        %640 = vmatprep.subr.mxu0 0.0
        %641 = vmatpush1.msra.mxu0 0.0
        %642 = vmatprep.subr.mxu0 0.0
        %643 = vmatpush1.msra.mxu0 0.0
        %644 = vmatprep.subr.mxu0 0.0
        %645 = vmatpush1.msra.mxu0 0.0
        %646 = vmatprep.subr.mxu0 0.0
        %647 = vmatpush1.msra.mxu0 0.0
        %648 = vmatprep.subr.mxu0 0.0
        %649 = vmatpush1.msra.mxu0 0.0
        %650 = vmatprep.subr.mxu0 0.0
        %651 = vmatpush1.msra.mxu0 0.0
        %652 = vmatprep.subr.mxu0 0.0
        %653 = vmatpush1.msra.mxu0 0.0
        %654 = vmatprep.subr.mxu0 0.0
        %655 = vmatpush1.msra.mxu0 0.0
        %656 = vmatprep.subr.mxu0 0.0
        %657 = vmatpush1.msra.mxu0 0.0
        %658 = vmatprep.subr.mxu0 0.0
        %659 = vmatpush1.msra.mxu0 0.0
        %660 = vmatprep.subr.mxu0 0.0
        %661 = vmatpush1.msra.mxu0 0.0
        %662 = vmatprep.subr.mxu0 0.0
        %663 = vmatpush1.msra.mxu0 0.0
        %664 = vmatprep.subr.mxu0 0.0
        %665 = vmatpush1.msra.mxu0 0.0
        %666 = vmatprep.subr.mxu0 0.0
        %667 = vmatpush1.msra.mxu0 0.0
        %668 = vmatprep.subr.mxu0 0.0
        %669 = vmatpush1.msra.mxu0 0.0
        %670 = vmatprep.subr.mxu0 0.0
        %671 = vmatpush1.msra.mxu0 0.0
        %672 = vmatprep.subr.mxu0 0.0
        %673 = vmatpush1.msra.mxu0 0.0
        %674 = vmatprep.subr.mxu0 0.0
        %675 = vmatpush1.msra.mxu0 0.0
        %676 = vmatprep.subr.mxu0 0.0
        %677 = vmatpush1.msra.mxu0 0.0
        %678 = vmatprep.subr.mxu0 0.0
        %679 = vmatpush1.msra.mxu0 0.0
        %680 = vmatprep.subr.mxu0 0.0
        %681 = vmatpush1.msra.mxu0 0.0
        %682 = vmatprep.subr.mxu0 0.0
        %683 = vmatpush1.msra.mxu0 0.0
        %684 = vmatprep.subr.mxu0 0.0
        %685 = vmatpush1.msra.mxu0 0.0
        %686 = vmatprep.subr.mxu0 0.0
        %687 = vmatpush1.msra.mxu0 0.0
        %688 = vmatprep.subr.mxu0 0.0
        %689 = vmatpush1.msra.mxu0 0.0
        %690 = vmatprep.subr.mxu0 0.0
        %691 = vmatpush1.msra.mxu0 0.0
        %692 = vmatprep.subr.mxu0 0.0
        %693 = vmatpush1.msra.mxu0 0.0
        %694 = vmatprep.mubr.f32.mxu0 0.0
        %695 = vmatmul.mubr.f32.gmra.mrb[0].mxu0 %v554
        %v696 = vpop.f32.mrb[0].mxu0
        %v697 = vadd.f32 0.0, %v696
        %v698 = vpop.f32.mrb[0].mxu0
        %699 = vdwg.mxu0
        %v700 = vld [vmem:[%s5] sm:$0xff]
        %v701 = vld [vmem:[%s5 + $0x8] sm:$0xff]
        %v702 = vld [vmem:[%s5 + $0x10] sm:$0xff]
        %v703 = vld [vmem:[%s5 + $0x18] sm:$0xff]
        %704 = vmatprep.subr.mxu0 0.0
        %705 = vmatpush1.msra.mxu0 %v700
        %706 = vmatprep.subr.mxu0 0.0
        %707 = vmatpush1.msra.mxu0 %v701
        %708 = vmatprep.subr.mxu0 0.0
        %709 = vmatpush1.msra.mxu0 %v702
        %710 = vmatprep.subr.mxu0 0.0
        %711 = vmatpush1.msra.mxu0 %v703
        %712 = vmatprep.subr.mxu0 0.0
        %713 = vmatpush1.msra.mxu0 0.0
        %714 = vmatprep.subr.mxu0 0.0
        %715 = vmatpush1.msra.mxu0 0.0
        %716 = vmatprep.subr.mxu0 0.0
        %717 = vmatpush1.msra.mxu0 0.0
        %718 = vmatprep.subr.mxu0 0.0
        %719 = vmatpush1.msra.mxu0 0.0
        %720 = vmatprep.subr.mxu0 0.0
        %721 = vmatpush1.msra.mxu0 0.0
        %722 = vmatprep.subr.mxu0 0.0
        %723 = vmatpush1.msra.mxu0 0.0
        %724 = vmatprep.subr.mxu0 0.0
        %725 = vmatpush1.msra.mxu0 0.0
        %726 = vmatprep.subr.mxu0 0.0
        %727 = vmatpush1.msra.mxu0 0.0
        %728 = vmatprep.subr.mxu0 0.0
        %729 = vmatpush1.msra.mxu0 0.0
        %730 = vmatprep.subr.mxu0 0.0
        %731 = vmatpush1.msra.mxu0 0.0
        %732 = vmatprep.subr.mxu0 0.0
        %733 = vmatpush1.msra.mxu0 0.0
        %734 = vmatprep.subr.mxu0 0.0
        %735 = vmatpush1.msra.mxu0 0.0
        %736 = vmatprep.subr.mxu0 0.0
        %737 = vmatpush1.msra.mxu0 0.0
        %738 = vmatprep.subr.mxu0 0.0
        %739 = vmatpush1.msra.mxu0 0.0
        %740 = vmatprep.subr.mxu0 0.0
        %741 = vmatpush1.msra.mxu0 0.0
        %742 = vmatprep.subr.mxu0 0.0
        %743 = vmatpush1.msra.mxu0 0.0
        %744 = vmatprep.subr.mxu0 0.0
        %745 = vmatpush1.msra.mxu0 0.0
        %746 = vmatprep.subr.mxu0 0.0
        %747 = vmatpush1.msra.mxu0 0.0
        %748 = vmatprep.subr.mxu0 0.0
        %749 = vmatpush1.msra.mxu0 0.0
        %750 = vmatprep.subr.mxu0 0.0
        %751 = vmatpush1.msra.mxu0 0.0
        %752 = vmatprep.subr.mxu0 0.0
        %753 = vmatpush1.msra.mxu0 0.0
        %754 = vmatprep.subr.mxu0 0.0
        %755 = vmatpush1.msra.mxu0 0.0
        %756 = vmatprep.subr.mxu0 0.0
        %757 = vmatpush1.msra.mxu0 0.0
        %758 = vmatprep.subr.mxu0 0.0
        %759 = vmatpush1.msra.mxu0 0.0
        %760 = vmatprep.subr.mxu0 0.0
        %761 = vmatpush1.msra.mxu0 0.0
        %762 = vmatprep.subr.mxu0 0.0
        %763 = vmatpush1.msra.mxu0 0.0
        %764 = vmatprep.subr.mxu0 0.0
        %765 = vmatpush1.msra.mxu0 0.0
        %766 = vmatprep.subr.mxu0 0.0
        %767 = vmatpush1.msra.mxu0 0.0
        %768 = vmatprep.mubr.f32.mxu0 0.0
        %769 = vmatmul.mubr.f32.gmra.mrb[0].mxu0 %v554
        %v770 = vpop.f32.mrb[0].mxu0
        %v771 = vadd.f32 0.0, %v770
        %v772 = vpop.f32.mrb[0].mxu0
        %773 = vdwg.mxu0
        %vm774 = vcmask 64512
        %v776 = vsel %vm774, %v623, 0
        %v779 = vsel %vm774, %v697, 0
        %781 = vmatprep.subr.mxu0 0.0
        %782 = vmatpush1.xpose.msra.mxu0 %v779
        %783 = vmatprep.subr.mxu0 0.0
        %784 = vmatpush1.xpose.msra.mxu0 0.0
        %785 = vmatprep.subr.mxu0 0.0
        %786 = vmatpush1.xpose.msra.mxu0 0.0
        %787 = vmatprep.subr.mxu0 0.0
        %788 = vmatpush1.xpose.msra.mxu0 0.0
        %789 = vmatprep.subr.mxu0 0.0
        %790 = vmatpush1.xpose.msra.mxu0 0.0
        %791 = vmatprep.subr.mxu0 0.0
        %792 = vmatpush1.xpose.msra.mxu0 0.0
        %793 = vmatprep.subr.mxu0 0.0
        %794 = vmatpush1.xpose.msra.mxu0 0.0
        %795 = vmatprep.subr.mxu0 0.0
        %796 = vmatpush1.xpose.msra.mxu0 0.0
        %797 = vmatprep.subr.mxu0 0.0
        %798 = vmatpush1.xpose.msra.mxu0 0.0
        %799 = vmatprep.subr.mxu0 0.0
        %800 = vmatpush1.xpose.msra.mxu0 0.0
        %801 = vmatprep.subr.mxu0 0.0
        %802 = vmatpush1.xpose.msra.mxu0 0.0
        %803 = vmatprep.subr.mxu0 0.0
        %804 = vmatpush1.xpose.msra.mxu0 0.0
        %805 = vmatprep.subr.mxu0 0.0
        %806 = vmatpush1.xpose.msra.mxu0 0.0
        %807 = vmatprep.subr.mxu0 0.0
        %808 = vmatpush1.xpose.msra.mxu0 0.0
        %809 = vmatprep.subr.mxu0 0.0
        %810 = vmatpush1.xpose.msra.mxu0 0.0
        %811 = vmatprep.subr.mxu0 0.0
        %812 = vmatpush1.xpose.msra.mxu0 0.0
        %813 = vmatprep.subr.mxu0 0.0
        %814 = vmatpush1.xpose.msra.mxu0 0.0
        %815 = vmatprep.subr.mxu0 0.0
        %816 = vmatpush1.xpose.msra.mxu0 0.0
        %817 = vmatprep.subr.mxu0 0.0
        %818 = vmatpush1.xpose.msra.mxu0 0.0
        %819 = vmatprep.subr.mxu0 0.0
        %820 = vmatpush1.xpose.msra.mxu0 0.0
        %821 = vmatprep.subr.mxu0 0.0
        %822 = vmatpush1.xpose.msra.mxu0 0.0
        %823 = vmatprep.subr.mxu0 0.0
        %824 = vmatpush1.xpose.msra.mxu0 0.0
        %825 = vmatprep.subr.mxu0 0.0
        %826 = vmatpush1.xpose.msra.mxu0 0.0
        %827 = vmatprep.subr.mxu0 0.0
        %828 = vmatpush1.xpose.msra.mxu0 0.0
        %829 = vmatprep.subr.mxu0 0.0
        %830 = vmatpush1.xpose.msra.mxu0 0.0
        %831 = vmatprep.subr.mxu0 0.0
        %832 = vmatpush1.xpose.msra.mxu0 0.0
        %833 = vmatprep.subr.mxu0 0.0
        %834 = vmatpush1.xpose.msra.mxu0 0.0
        %835 = vmatprep.subr.mxu0 0.0
        %836 = vmatpush1.xpose.msra.mxu0 0.0
        %837 = vmatprep.subr.mxu0 0.0
        %838 = vmatpush1.xpose.msra.mxu0 0.0
        %839 = vmatprep.subr.mxu0 0.0
        %840 = vmatpush1.xpose.msra.mxu0 0.0
        %841 = vmatprep.subr.mxu0 0.0
        %842 = vmatpush1.xpose.msra.mxu0 0.0
        %843 = vmatprep.subr.mxu0 0.0
        %844 = vmatpush1.xpose.msra.mxu0 0.0
        %845 = vmatprep.mubr.f32.mxu0 0.0
        %846 = vmatmul.mubr.f32.gmra.mrb[0].mxu0 %v776
        %v847 = vpop.f32.mrb[0].mxu0
        %v848 = vadd.f32 0.0, %v847
        %v849 = vpop.f32.mrb[0].mxu0
        %850 = vdwg.mxu0
        %v851 = vmul.f32 %v848, 0.35355338
        %v852 = vsel %vm774, %v851, -inf
        %853 = vmax.xlane.f32.xlu0 %v852
        %v854 = vpop.xlane.xlu0 %853
        %v855 = vsub.f32 %v851, %v854
        %v856 = vmul.f32 %v855, 1.442695
        %v857 = vpow.pop %v856
        %v858 = vsel %vm774, %v857, 0.0
        %859 = vadd.xlane.f32.xlu0 %v858
        %v860 = vpop.xlane.xlu0 %859
        %v861 = vrcp.pop %v860
        %v862 = vmul.f32 %v860, %v861
        %v863 = vsub.f32 2.0, %v862
        %v864 = vmul.f32 %v861, %v863
        %v865 = vmul.f32 %v857, %v864
        %v867 = vsel %vm774, %v865, 0
        %869 = vmatprep.subr.mxu0 0.0
        %870 = vmatpush1.msra.mxu0 %v771
        %871 = vmatprep.subr.mxu0 0.0
        %872 = vmatpush1.msra.mxu0 0.0
        %873 = vmatprep.subr.mxu0 0.0
        %874 = vmatpush1.msra.mxu0 0.0
        %875 = vmatprep.subr.mxu0 0.0
        %876 = vmatpush1.msra.mxu0 0.0
        %877 = vmatprep.subr.mxu0 0.0
        %878 = vmatpush1.msra.mxu0 0.0
        %879 = vmatprep.subr.mxu0 0.0
        %880 = vmatpush1.msra.mxu0 0.0
        %881 = vmatprep.subr.mxu0 0.0
        %882 = vmatpush1.msra.mxu0 0.0
        %883 = vmatprep.subr.mxu0 0.0
        %884 = vmatpush1.msra.mxu0 0.0
        %885 = vmatprep.subr.mxu0 0.0
        %886 = vmatpush1.msra.mxu0 0.0
        %887 = vmatprep.subr.mxu0 0.0
        %888 = vmatpush1.msra.mxu0 0.0
        %889 = vmatprep.subr.mxu0 0.0
        %890 = vmatpush1.msra.mxu0 0.0
        %891 = vmatprep.subr.mxu0 0.0
        %892 = vmatpush1.msra.mxu0 0.0
        %893 = vmatprep.subr.mxu0 0.0
        %894 = vmatpush1.msra.mxu0 0.0
        %895 = vmatprep.subr.mxu0 0.0
        %896 = vmatpush1.msra.mxu0 0.0
        %897 = vmatprep.subr.mxu0 0.0
        %898 = vmatpush1.msra.mxu0 0.0
        %899 = vmatprep.subr.mxu0 0.0
        %900 = vmatpush1.msra.mxu0 0.0
        %901 = vmatprep.subr.mxu0 0.0
        %902 = vmatpush1.msra.mxu0 0.0
        %903 = vmatprep.subr.mxu0 0.0
        %904 = vmatpush1.msra.mxu0 0.0
        %905 = vmatprep.subr.mxu0 0.0
        %906 = vmatpush1.msra.mxu0 0.0
        %907 = vmatprep.subr.mxu0 0.0
        %908 = vmatpush1.msra.mxu0 0.0
        %909 = vmatprep.subr.mxu0 0.0
        %910 = vmatpush1.msra.mxu0 0.0
        %911 = vmatprep.subr.mxu0 0.0
        %912 = vmatpush1.msra.mxu0 0.0
        %913 = vmatprep.subr.mxu0 0.0
        %914 = vmatpush1.msra.mxu0 0.0
        %915 = vmatprep.subr.mxu0 0.0
        %916 = vmatpush1.msra.mxu0 0.0
        %917 = vmatprep.subr.mxu0 0.0
        %918 = vmatpush1.msra.mxu0 0.0
        %919 = vmatprep.subr.mxu0 0.0
        %920 = vmatpush1.msra.mxu0 0.0
        %921 = vmatprep.subr.mxu0 0.0
        %922 = vmatpush1.msra.mxu0 0.0
        %923 = vmatprep.subr.mxu0 0.0
        %924 = vmatpush1.msra.mxu0 0.0
        %925 = vmatprep.subr.mxu0 0.0
        %926 = vmatpush1.msra.mxu0 0.0
        %927 = vmatprep.subr.mxu0 0.0
        %928 = vmatpush1.msra.mxu0 0.0
        %929 = vmatprep.subr.mxu0 0.0
        %930 = vmatpush1.msra.mxu0 0.0
        %931 = vmatprep.subr.mxu0 0.0
        %932 = vmatpush1.msra.mxu0 0.0
        %933 = vmatprep.mubr.f32.mxu0 0.0
        %934 = vmatmul.mubr.f32.gmra.mrb[0].mxu0 %v867
        %v935 = vpop.f32.mrb[0].mxu0
        %v936 = vadd.f32 0.0, %v935
        %v937 = vpop.f32.mrb[0].mxu0
        %938 = vdwg.mxu0
        %v939 = vsel %vm774, %v936, 0.0
        %v940 = vrot.slane %v939, 4
        %v941 = vadd.f32 %v939, %v940
        %v942 = vrot.slane %v941, 2
        %v943 = vadd.f32 %v941, %v942
        %v944 = vrot.slane %v943, 1
        %v945 = vadd.f32 %v943, %v944
        %v946 = vsub.f32 %v945, %v936
        %v947 = vmul.f32 %v946, 0.14285715
        %v948 = vld [vmem:[%s6] sm:$0xff]
        %v949 = vld [vmem:[%s7] sm:$0x1]
        %v951 = vsel %vm774, %v947, 0
        %953 = vmatprep.subr.mxu0 0.0
        %954 = vmatpush1.msra.mxu0 %v948
        %955 = vmatprep.subr.mxu0 0.0
        %956 = vmatpush1.msra.mxu0 0.0
        %957 = vmatprep.subr.mxu0 0.0
        %958 = vmatpush1.msra.mxu0 0.0
        %959 = vmatprep.subr.mxu0 0.0
        %960 = vmatpush1.msra.mxu0 0.0
        %961 = vmatprep.subr.mxu0 0.0
        %962 = vmatpush1.msra.mxu0 0.0
        %963 = vmatprep.subr.mxu0 0.0
        %964 = vmatpush1.msra.mxu0 0.0
        %965 = vmatprep.subr.mxu0 0.0
        %966 = vmatpush1.msra.mxu0 0.0
        %967 = vmatprep.subr.mxu0 0.0
        %968 = vmatpush1.msra.mxu0 0.0
        %969 = vmatprep.subr.mxu0 0.0
        %970 = vmatpush1.msra.mxu0 0.0
        %971 = vmatprep.subr.mxu0 0.0
        %972 = vmatpush1.msra.mxu0 0.0
        %973 = vmatprep.subr.mxu0 0.0
        %974 = vmatpush1.msra.mxu0 0.0
        %975 = vmatprep.subr.mxu0 0.0
        %976 = vmatpush1.msra.mxu0 0.0
        %977 = vmatprep.subr.mxu0 0.0
        %978 = vmatpush1.msra.mxu0 0.0
        %979 = vmatprep.subr.mxu0 0.0
        %980 = vmatpush1.msra.mxu0 0.0
        %981 = vmatprep.subr.mxu0 0.0
        %982 = vmatpush1.msra.mxu0 0.0
        %983 = vmatprep.subr.mxu0 0.0
        %984 = vmatpush1.msra.mxu0 0.0
        %985 = vmatprep.subr.mxu0 0.0
        %986 = vmatpush1.msra.mxu0 0.0
        %987 = vmatprep.subr.mxu0 0.0
        %988 = vmatpush1.msra.mxu0 0.0
        %989 = vmatprep.subr.mxu0 0.0
        %990 = vmatpush1.msra.mxu0 0.0
        %991 = vmatprep.subr.mxu0 0.0
        %992 = vmatpush1.msra.mxu0 0.0
        %993 = vmatprep.subr.mxu0 0.0
        %994 = vmatpush1.msra.mxu0 0.0
        %995 = vmatprep.subr.mxu0 0.0
        %996 = vmatpush1.msra.mxu0 0.0
        %997 = vmatprep.subr.mxu0 0.0
        %998 = vmatpush1.msra.mxu0 0.0
        %999 = vmatprep.subr.mxu0 0.0
        %1000 = vmatpush1.msra.mxu0 0.0
        %1001 = vmatprep.subr.mxu0 0.0
        %1002 = vmatpush1.msra.mxu0 0.0
        %1003 = vmatprep.subr.mxu0 0.0
        %1004 = vmatpush1.msra.mxu0 0.0
        %1005 = vmatprep.subr.mxu0 0.0
        %1006 = vmatpush1.msra.mxu0 0.0
        %1007 = vmatprep.subr.mxu0 0.0
        %1008 = vmatpush1.msra.mxu0 0.0
        %1009 = vmatprep.subr.mxu0 0.0
        %1010 = vmatpush1.msra.mxu0 0.0
        %1011 = vmatprep.subr.mxu0 0.0
        %1012 = vmatpush1.msra.mxu0 0.0
        %1013 = vmatprep.subr.mxu0 0.0
        %1014 = vmatpush1.msra.mxu0 0.0
        %1015 = vmatprep.subr.mxu0 0.0
        %1016 = vmatpush1.msra.mxu0 0.0
        %1017 = vmatprep.mubr.f32.mxu0 0.0
        %1018 = vmatmul.mubr.f32.gmra.mrb[0].mxu0 %v951
        %v1019 = vpop.f32.mrb[0].mxu0
        %v1020 = vadd.f32 %v949, %v1019
        %v1021 = vpop.f32.mrb[0].mxu0
        %1022 = vdwg.mxu0
        %1023 = vst.msk [vmem:[#allocation2] sm:$0xff] %vm774, %v936
        %v1024 = vadd.f32 %v936, %v1020
        %vm1025 = vcmask 57344
        %1026 = vst.msk [vmem:[#allocation2] sm:$0x1] %vm1025, %v1024
        %s1027 = scalar_lea.vmem %s3, 32
        %v1028 = vld [vmem:[%s1027] sm:$0xff]
        %v1029 = vld [vmem:[%s1027 + $0x8] sm:$0xff]
        %v1030 = vld [vmem:[%s1027 + $0x10] sm:$0xff]
        %v1031 = vld [vmem:[%s1027 + $0x18] sm:$0xff]
        %1032 = vmatprep.subr.mxu0 0.0
        %1033 = vmatpush1.msra.mxu0 %v1028
        %1034 = vmatprep.subr.mxu0 0.0
        %1035 = vmatpush1.msra.mxu0 %v1029
        %1036 = vmatprep.subr.mxu0 0.0
        %1037 = vmatpush1.msra.mxu0 %v1030
        %1038 = vmatprep.subr.mxu0 0.0
        %1039 = vmatpush1.msra.mxu0 %v1031
        %1040 = vmatprep.subr.mxu0 0.0
        %1041 = vmatpush1.msra.mxu0 0.0
        %1042 = vmatprep.subr.mxu0 0.0
        %1043 = vmatpush1.msra.mxu0 0.0
        %1044 = vmatprep.subr.mxu0 0.0
        %1045 = vmatpush1.msra.mxu0 0.0
        %1046 = vmatprep.subr.mxu0 0.0
        %1047 = vmatpush1.msra.mxu0 0.0
        %1048 = vmatprep.subr.mxu0 0.0
        %1049 = vmatpush1.msra.mxu0 0.0
        %1050 = vmatprep.subr.mxu0 0.0
        %1051 = vmatpush1.msra.mxu0 0.0
        %1052 = vmatprep.subr.mxu0 0.0
        %1053 = vmatpush1.msra.mxu0 0.0
        %1054 = vmatprep.subr.mxu0 0.0
        %1055 = vmatpush1.msra.mxu0 0.0
        %1056 = vmatprep.subr.mxu0 0.0
        %1057 = vmatpush1.msra.mxu0 0.0
        %1058 = vmatprep.subr.mxu0 0.0
        %1059 = vmatpush1.msra.mxu0 0.0
        %1060 = vmatprep.subr.mxu0 0.0
        %1061 = vmatpush1.msra.mxu0 0.0
        %1062 = vmatprep.subr.mxu0 0.0
        %1063 = vmatpush1.msra.mxu0 0.0
        %1064 = vmatprep.subr.mxu0 0.0
        %1065 = vmatpush1.msra.mxu0 0.0
        %1066 = vmatprep.subr.mxu0 0.0
        %1067 = vmatpush1.msra.mxu0 0.0
        %1068 = vmatprep.subr.mxu0 0.0
        %1069 = vmatpush1.msra.mxu0 0.0
        %1070 = vmatprep.subr.mxu0 0.0
        %1071 = vmatpush1.msra.mxu0 0.0
        %1072 = vmatprep.subr.mxu0 0.0
        %1073 = vmatpush1.msra.mxu0 0.0
        %1074 = vmatprep.subr.mxu0 0.0
        %1075 = vmatpush1.msra.mxu0 0.0
        %1076 = vmatprep.subr.mxu0 0.0
        %1077 = vmatpush1.msra.mxu0 0.0
        %1078 = vmatprep.subr.mxu0 0.0
        %1079 = vmatpush1.msra.mxu0 0.0
        %1080 = vmatprep.subr.mxu0 0.0
        %1081 = vmatpush1.msra.mxu0 0.0
        %1082 = vmatprep.subr.mxu0 0.0
        %1083 = vmatpush1.msra.mxu0 0.0
        %1084 = vmatprep.subr.mxu0 0.0
        %1085 = vmatpush1.msra.mxu0 0.0
        %1086 = vmatprep.subr.mxu0 0.0
        %1087 = vmatpush1.msra.mxu0 0.0
        %1088 = vmatprep.subr.mxu0 0.0
        %1089 = vmatpush1.msra.mxu0 0.0
        %1090 = vmatprep.subr.mxu0 0.0
        %1091 = vmatpush1.msra.mxu0 0.0
        %1092 = vmatprep.subr.mxu0 0.0
        %1093 = vmatpush1.msra.mxu0 0.0
        %1094 = vmatprep.subr.mxu0 0.0
        %1095 = vmatpush1.msra.mxu0 0.0
        %1096 = vmatprep.mubr.f32.mxu0 0.0
        %1097 = vmatmul.mubr.f32.gmra.mrb[0].mxu0 %v554
        %v1098 = vpop.f32.mrb[0].mxu0
        %v1099 = vadd.f32 0.0, %v1098
        %v1100 = vpop.f32.mrb[0].mxu0
        %1101 = vdwg.mxu0
        %s1102 = scalar_lea.vmem %s4, 32
        %v1103 = vld [vmem:[%s1102] sm:$0xff]
        %v1104 = vld [vmem:[%s1102 + $0x8] sm:$0xff]
        %v1105 = vld [vmem:[%s1102 + $0x10] sm:$0xff]
        %v1106 = vld [vmem:[%s1102 + $0x18] sm:$0xff]
        %1107 = vmatprep.subr.mxu0 0.0
        %1108 = vmatpush1.msra.mxu0 %v1103
        %1109 = vmatprep.subr.mxu0 0.0
        %1110 = vmatpush1.msra.mxu0 %v1104
        %1111 = vmatprep.subr.mxu0 0.0
        %1112 = vmatpush1.msra.mxu0 %v1105
        %1113 = vmatprep.subr.mxu0 0.0
        %1114 = vmatpush1.msra.mxu0 %v1106
        %1115 = vmatprep.subr.mxu0 0.0
        %1116 = vmatpush1.msra.mxu0 0.0
        %1117 = vmatprep.subr.mxu0 0.0
        %1118 = vmatpush1.msra.mxu0 0.0
        %1119 = vmatprep.subr.mxu0 0.0
        %1120 = vmatpush1.msra.mxu0 0.0
        %1121 = vmatprep.subr.mxu0 0.0
        %1122 = vmatpush1.msra.mxu0 0.0
        %1123 = vmatprep.subr.mxu0 0.0
        %1124 = vmatpush1.msra.mxu0 0.0
        %1125 = vmatprep.subr.mxu0 0.0
        %1126 = vmatpush1.msra.mxu0 0.0
        %1127 = vmatprep.subr.mxu0 0.0
        %1128 = vmatpush1.msra.mxu0 0.0
        %1129 = vmatprep.subr.mxu0 0.0
        %1130 = vmatpush1.msra.mxu0 0.0
        %1131 = vmatprep.subr.mxu0 0.0
        %1132 = vmatpush1.msra.mxu0 0.0
        %1133 = vmatprep.subr.mxu0 0.0
        %1134 = vmatpush1.msra.mxu0 0.0
        %1135 = vmatprep.subr.mxu0 0.0
        %1136 = vmatpush1.msra.mxu0 0.0
        %1137 = vmatprep.subr.mxu0 0.0
        %1138 = vmatpush1.msra.mxu0 0.0
        %1139 = vmatprep.subr.mxu0 0.0
        %1140 = vmatpush1.msra.mxu0 0.0
        %1141 = vmatprep.subr.mxu0 0.0
        %1142 = vmatpush1.msra.mxu0 0.0
        %1143 = vmatprep.subr.mxu0 0.0
        %1144 = vmatpush1.msra.mxu0 0.0
        %1145 = vmatprep.subr.mxu0 0.0
        %1146 = vmatpush1.msra.mxu0 0.0
        %1147 = vmatprep.subr.mxu0 0.0
        %1148 = vmatpush1.msra.mxu0 0.0
        %1149 = vmatprep.subr.mxu0 0.0
        %1150 = vmatpush1.msra.mxu0 0.0
        %1151 = vmatprep.subr.mxu0 0.0
        %1152 = vmatpush1.msra.mxu0 0.0
        %1153 = vmatprep.subr.mxu0 0.0
        %1154 = vmatpush1.msra.mxu0 0.0
        %1155 = vmatprep.subr.mxu0 0.0
        %1156 = vmatpush1.msra.mxu0 0.0
        %1157 = vmatprep.subr.mxu0 0.0
        %1158 = vmatpush1.msra.mxu0 0.0
        %1159 = vmatprep.subr.mxu0 0.0
        %1160 = vmatpush1.msra.mxu0 0.0
        %1161 = vmatprep.subr.mxu0 0.0
        %1162 = vmatpush1.msra.mxu0 0.0
        %1163 = vmatprep.subr.mxu0 0.0
        %1164 = vmatpush1.msra.mxu0 0.0
        %1165 = vmatprep.subr.mxu0 0.0
        %1166 = vmatpush1.msra.mxu0 0.0
        %1167 = vmatprep.subr.mxu0 0.0
        %1168 = vmatpush1.msra.mxu0 0.0
        %1169 = vmatprep.subr.mxu0 0.0
        %1170 = vmatpush1.msra.mxu0 0.0
        %1171 = vmatprep.mubr.f32.mxu0 0.0
        %1172 = vmatmul.mubr.f32.gmra.mrb[0].mxu0 %v554
        %v1173 = vpop.f32.mrb[0].mxu0
        %v1174 = vadd.f32 0.0, %v1173
        %v1175 = vpop.f32.mrb[0].mxu0
        %1176 = vdwg.mxu0
        %s1177 = scalar_lea.vmem %s5, 32
        %v1178 = vld [vmem:[%s1177] sm:$0xff]
        %v1179 = vld [vmem:[%s1177 + $0x8] sm:$0xff]
        %v1180 = vld [vmem:[%s1177 + $0x10] sm:$0xff]
        %v1181 = vld [vmem:[%s1177 + $0x18] sm:$0xff]
        %1182 = vmatprep.subr.mxu0 0.0
        %1183 = vmatpush1.msra.mxu0 %v1178
        %1184 = vmatprep.subr.mxu0 0.0
        %1185 = vmatpush1.msra.mxu0 %v1179
        %1186 = vmatprep.subr.mxu0 0.0
        %1187 = vmatpush1.msra.mxu0 %v1180
        %1188 = vmatprep.subr.mxu0 0.0
        %1189 = vmatpush1.msra.mxu0 %v1181
        %1190 = vmatprep.subr.mxu0 0.0
        %1191 = vmatpush1.msra.mxu0 0.0
        %1192 = vmatprep.subr.mxu0 0.0
        %1193 = vmatpush1.msra.mxu0 0.0
        %1194 = vmatprep.subr.mxu0 0.0
        %1195 = vmatpush1.msra.mxu0 0.0
        %1196 = vmatprep.subr.mxu0 0.0
        %1197 = vmatpush1.msra.mxu0 0.0
        %1198 = vmatprep.subr.mxu0 0.0
        %1199 = vmatpush1.msra.mxu0 0.0
        %1200 = vmatprep.subr.mxu0 0.0
        %1201 = vmatpush1.msra.mxu0 0.0
        %1202 = vmatprep.subr.mxu0 0.0
        %1203 = vmatpush1.msra.mxu0 0.0
        %1204 = vmatprep.subr.mxu0 0.0
        %1205 = vmatpush1.msra.mxu0 0.0
        %1206 = vmatprep.subr.mxu0 0.0
        %1207 = vmatpush1.msra.mxu0 0.0
        %1208 = vmatprep.subr.mxu0 0.0
        %1209 = vmatpush1.msra.mxu0 0.0
        %1210 = vmatprep.subr.mxu0 0.0
        %1211 = vmatpush1.msra.mxu0 0.0
        %1212 = vmatprep.subr.mxu0 0.0
        %1213 = vmatpush1.msra.mxu0 0.0
        %1214 = vmatprep.subr.mxu0 0.0
        %1215 = vmatpush1.msra.mxu0 0.0
        %1216 = vmatprep.subr.mxu0 0.0
        %1217 = vmatpush1.msra.mxu0 0.0
        %1218 = vmatprep.subr.mxu0 0.0
        %1219 = vmatpush1.msra.mxu0 0.0
        %1220 = vmatprep.subr.mxu0 0.0
        %1221 = vmatpush1.msra.mxu0 0.0
        %1222 = vmatprep.subr.mxu0 0.0
        %1223 = vmatpush1.msra.mxu0 0.0
        %1224 = vmatprep.subr.mxu0 0.0
        %1225 = vmatpush1.msra.mxu0 0.0
        %1226 = vmatprep.subr.mxu0 0.0
        %1227 = vmatpush1.msra.mxu0 0.0
        %1228 = vmatprep.subr.mxu0 0.0
        %1229 = vmatpush1.msra.mxu0 0.0
        %1230 = vmatprep.subr.mxu0 0.0
        %1231 = vmatpush1.msra.mxu0 0.0
        %1232 = vmatprep.subr.mxu0 0.0
        %1233 = vmatpush1.msra.mxu0 0.0
        %1234 = vmatprep.subr.mxu0 0.0
        %1235 = vmatpush1.msra.mxu0 0.0
        %1236 = vmatprep.subr.mxu0 0.0
        %1237 = vmatpush1.msra.mxu0 0.0
        %1238 = vmatprep.subr.mxu0 0.0
        %1239 = vmatpush1.msra.mxu0 0.0
        %1240 = vmatprep.subr.mxu0 0.0
        %1241 = vmatpush1.msra.mxu0 0.0
        %1242 = vmatprep.subr.mxu0 0.0
        %1243 = vmatpush1.msra.mxu0 0.0
        %1244 = vmatprep.subr.mxu0 0.0
        %1245 = vmatpush1.msra.mxu0 0.0
        %1246 = vmatprep.mubr.f32.mxu0 0.0
        %1247 = vmatmul.mubr.f32.gmra.mrb[0].mxu0 %v554
        %v1248 = vpop.f32.mrb[0].mxu0
        %v1249 = vadd.f32 0.0, %v1248
        %v1250 = vpop.f32.mrb[0].mxu0
        %1251 = vdwg.mxu0
        %v1253 = vsel %vm774, %v1099, 0
        %v1256 = vsel %vm774, %v1174, 0
        %1258 = vmatprep.subr.mxu0 0.0
        %1259 = vmatpush1.xpose.msra.mxu0 %v1256
        %1260 = vmatprep.subr.mxu0 0.0
        %1261 = vmatpush1.xpose.msra.mxu0 0.0
        %1262 = vmatprep.subr.mxu0 0.0
        %1263 = vmatpush1.xpose.msra.mxu0 0.0
        %1264 = vmatprep.subr.mxu0 0.0
        %1265 = vmatpush1.xpose.msra.mxu0 0.0
        %1266 = vmatprep.subr.mxu0 0.0
        %1267 = vmatpush1.xpose.msra.mxu0 0.0
        %1268 = vmatprep.subr.mxu0 0.0
        %1269 = vmatpush1.xpose.msra.mxu0 0.0
        %1270 = vmatprep.subr.mxu0 0.0
        %1271 = vmatpush1.xpose.msra.mxu0 0.0
        %1272 = vmatprep.subr.mxu0 0.0
        %1273 = vmatpush1.xpose.msra.mxu0 0.0
        %1274 = vmatprep.subr.mxu0 0.0
        %1275 = vmatpush1.xpose.msra.mxu0 0.0
        %1276 = vmatprep.subr.mxu0 0.0
        %1277 = vmatpush1.xpose.msra.mxu0 0.0
        %1278 = vmatprep.subr.mxu0 0.0
        %1279 = vmatpush1.xpose.msra.mxu0 0.0
        %1280 = vmatprep.subr.mxu0 0.0
        %1281 = vmatpush1.xpose.msra.mxu0 0.0
        %1282 = vmatprep.subr.mxu0 0.0
        %1283 = vmatpush1.xpose.msra.mxu0 0.0
        %1284 = vmatprep.subr.mxu0 0.0
        %1285 = vmatpush1.xpose.msra.mxu0 0.0
        %1286 = vmatprep.subr.mxu0 0.0
        %1287 = vmatpush1.xpose.msra.mxu0 0.0
        %1288 = vmatprep.subr.mxu0 0.0
        %1289 = vmatpush1.xpose.msra.mxu0 0.0
        %1290 = vmatprep.subr.mxu0 0.0
        %1291 = vmatpush1.xpose.msra.mxu0 0.0
        %1292 = vmatprep.subr.mxu0 0.0
        %1293 = vmatpush1.xpose.msra.mxu0 0.0
        %1294 = vmatprep.subr.mxu0 0.0
        %1295 = vmatpush1.xpose.msra.mxu0 0.0
        %1296 = vmatprep.subr.mxu0 0.0
        %1297 = vmatpush1.xpose.msra.mxu0 0.0
        %1298 = vmatprep.subr.mxu0 0.0
        %1299 = vmatpush1.xpose.msra.mxu0 0.0
        %1300 = vmatprep.subr.mxu0 0.0
        %1301 = vmatpush1.xpose.msra.mxu0 0.0
        %1302 = vmatprep.subr.mxu0 0.0
        %1303 = vmatpush1.xpose.msra.mxu0 0.0
        %1304 = vmatprep.subr.mxu0 0.0
        %1305 = vmatpush1.xpose.msra.mxu0 0.0
        %1306 = vmatprep.subr.mxu0 0.0
        %1307 = vmatpush1.xpose.msra.mxu0 0.0
        %1308 = vmatprep.subr.mxu0 0.0
        %1309 = vmatpush1.xpose.msra.mxu0 0.0
        %1310 = vmatprep.subr.mxu0 0.0
        %1311 = vmatpush1.xpose.msra.mxu0 0.0
        %1312 = vmatprep.subr.mxu0 0.0
        %1313 = vmatpush1.xpose.msra.mxu0 0.0
        %1314 = vmatprep.subr.mxu0 0.0
        %1315 = vmatpush1.xpose.msra.mxu0 0.0
        %1316 = vmatprep.subr.mxu0 0.0
        %1317 = vmatpush1.xpose.msra.mxu0 0.0
        %1318 = vmatprep.subr.mxu0 0.0
        %1319 = vmatpush1.xpose.msra.mxu0 0.0
        %1320 = vmatprep.subr.mxu0 0.0
        %1321 = vmatpush1.xpose.msra.mxu0 0.0
        %1322 = vmatprep.mubr.f32.mxu0 0.0
        %1323 = vmatmul.mubr.f32.gmra.mrb[0].mxu0 %v1253
        %v1324 = vpop.f32.mrb[0].mxu0
        %v1325 = vadd.f32 0.0, %v1324
        %v1326 = vpop.f32.mrb[0].mxu0
        %1327 = vdwg.mxu0
        %v1328 = vmul.f32 %v1325, 0.35355338
        %v1329 = vsel %vm774, %v1328, -inf
        %1330 = vmax.xlane.f32.xlu0 %v1329
        %v1331 = vpop.xlane.xlu0 %1330
        %v1332 = vsub.f32 %v1328, %v1331
        %v1333 = vmul.f32 %v1332, 1.442695
        %v1334 = vpow.pop %v1333
        %v1335 = vsel %vm774, %v1334, 0.0
        %1336 = vadd.xlane.f32.xlu0 %v1335
        %v1337 = vpop.xlane.xlu0 %1336
        %v1338 = vrcp.pop %v1337
        %v1339 = vmul.f32 %v1337, %v1338
        %v1340 = vsub.f32 2.0, %v1339
        %v1341 = vmul.f32 %v1338, %v1340
        %v1342 = vmul.f32 %v1334, %v1341
        %v1344 = vsel %vm774, %v1342, 0
        %1346 = vmatprep.subr.mxu0 0.0
        %1347 = vmatpush1.msra.mxu0 %v1249
        %1348 = vmatprep.subr.mxu0 0.0
        %1349 = vmatpush1.msra.mxu0 0.0
        %1350 = vmatprep.subr.mxu0 0.0
        %1351 = vmatpush1.msra.mxu0 0.0
        %1352 = vmatprep.subr.mxu0 0.0
        %1353 = vmatpush1.msra.mxu0 0.0
        %1354 = vmatprep.subr.mxu0 0.0
        %1355 = vmatpush1.msra.mxu0 0.0
        %1356 = vmatprep.subr.mxu0 0.0
        %1357 = vmatpush1.msra.mxu0 0.0
        %1358 = vmatprep.subr.mxu0 0.0
        %1359 = vmatpush1.msra.mxu0 0.0
        %1360 = vmatprep.subr.mxu0 0.0
        %1361 = vmatpush1.msra.mxu0 0.0
        %1362 = vmatprep.subr.mxu0 0.0
        %1363 = vmatpush1.msra.mxu0 0.0
        %1364 = vmatprep.subr.mxu0 0.0
        %1365 = vmatpush1.msra.mxu0 0.0
        %1366 = vmatprep.subr.mxu0 0.0
        %1367 = vmatpush1.msra.mxu0 0.0
        %1368 = vmatprep.subr.mxu0 0.0
        %1369 = vmatpush1.msra.mxu0 0.0
        %1370 = vmatprep.subr.mxu0 0.0
        %1371 = vmatpush1.msra.mxu0 0.0
        %1372 = vmatprep.subr.mxu0 0.0
        %1373 = vmatpush1.msra.mxu0 0.0
        %1374 = vmatprep.subr.mxu0 0.0
        %1375 = vmatpush1.msra.mxu0 0.0
        %1376 = vmatprep.subr.mxu0 0.0
        %1377 = vmatpush1.msra.mxu0 0.0
        %1378 = vmatprep.subr.mxu0 0.0
        %1379 = vmatpush1.msra.mxu0 0.0
        %1380 = vmatprep.subr.mxu0 0.0
        %1381 = vmatpush1.msra.mxu0 0.0
        %1382 = vmatprep.subr.mxu0 0.0
        %1383 = vmatpush1.msra.mxu0 0.0
        %1384 = vmatprep.subr.mxu0 0.0
        %1385 = vmatpush1.msra.mxu0 0.0
        %1386 = vmatprep.subr.mxu0 0.0
        %1387 = vmatpush1.msra.mxu0 0.0
        %1388 = vmatprep.subr.mxu0 0.0
        %1389 = vmatpush1.msra.mxu0 0.0
        %1390 = vmatprep.subr.mxu0 0.0
        %1391 = vmatpush1.msra.mxu0 0.0
        %1392 = vmatprep.subr.mxu0 0.0
        %1393 = vmatpush1.msra.mxu0 0.0
        %1394 = vmatprep.subr.mxu0 0.0
        %1395 = vmatpush1.msra.mxu0 0.0
        %1396 = vmatprep.subr.mxu0 0.0
        %1397 = vmatpush1.msra.mxu0 0.0
        %1398 = vmatprep.subr.mxu0 0.0
        %1399 = vmatpush1.msra.mxu0 0.0
        %1400 = vmatprep.subr.mxu0 0.0
        %1401 = vmatpush1.msra.mxu0 0.0
        %1402 = vmatprep.subr.mxu0 0.0
        %1403 = vmatpush1.msra.mxu0 0.0
        %1404 = vmatprep.subr.mxu0 0.0
        %1405 = vmatpush1.msra.mxu0 0.0
        %1406 = vmatprep.subr.mxu0 0.0
        %1407 = vmatpush1.msra.mxu0 0.0
        %1408 = vmatprep.subr.mxu0 0.0
        %1409 = vmatpush1.msra.mxu0 0.0
        %1410 = vmatprep.mubr.f32.mxu0 0.0
        %1411 = vmatmul.mubr.f32.gmra.mrb[0].mxu0 %v1344
        %v1412 = vpop.f32.mrb[0].mxu0
        %v1413 = vadd.f32 0.0, %v1412
        %v1414 = vpop.f32.mrb[0].mxu0
        %1415 = vdwg.mxu0
        %v1416 = vsel %vm774, %v1413, 0.0
        %v1417 = vrot.slane %v1416, 4
        %v1418 = vadd.f32 %v1416, %v1417
        %v1419 = vrot.slane %v1418, 2
        %v1420 = vadd.f32 %v1418, %v1419
        %v1421 = vrot.slane %v1420, 1
        %v1422 = vadd.f32 %v1420, %v1421
        %v1423 = vsub.f32 %v1422, %v1413
        %v1424 = vmul.f32 %v1423, 0.14285715
        %v1425 = vld [vmem:[%s6] sm:$0xff]
        %v1426 = vld [vmem:[%s7] sm:$0x1]
        %v1428 = vsel %vm774, %v1424, 0
        %1430 = vmatprep.subr.mxu0 0.0
        %1431 = vmatpush1.msra.mxu0 %v1425
        %1432 = vmatprep.subr.mxu0 0.0
        %1433 = vmatpush1.msra.mxu0 0.0
        %1434 = vmatprep.subr.mxu0 0.0
        %1435 = vmatpush1.msra.mxu0 0.0
        %1436 = vmatprep.subr.mxu0 0.0
        %1437 = vmatpush1.msra.mxu0 0.0
        %1438 = vmatprep.subr.mxu0 0.0
        %1439 = vmatpush1.msra.mxu0 0.0
        %1440 = vmatprep.subr.mxu0 0.0
        %1441 = vmatpush1.msra.mxu0 0.0
        %1442 = vmatprep.subr.mxu0 0.0
        %1443 = vmatpush1.msra.mxu0 0.0
        %1444 = vmatprep.subr.mxu0 0.0
        %1445 = vmatpush1.msra.mxu0 0.0
        %1446 = vmatprep.subr.mxu0 0.0
        %1447 = vmatpush1.msra.mxu0 0.0
        %1448 = vmatprep.subr.mxu0 0.0
        %1449 = vmatpush1.msra.mxu0 0.0
        %1450 = vmatprep.subr.mxu0 0.0
        %1451 = vmatpush1.msra.mxu0 0.0
        %1452 = vmatprep.subr.mxu0 0.0
        %1453 = vmatpush1.msra.mxu0 0.0
        %1454 = vmatprep.subr.mxu0 0.0
        %1455 = vmatpush1.msra.mxu0 0.0
        %1456 = vmatprep.subr.mxu0 0.0
        %1457 = vmatpush1.msra.mxu0 0.0
        %1458 = vmatprep.subr.mxu0 0.0
        %1459 = vmatpush1.msra.mxu0 0.0
        %1460 = vmatprep.subr.mxu0 0.0
        %1461 = vmatpush1.msra.mxu0 0.0
        %1462 = vmatprep.subr.mxu0 0.0
        %1463 = vmatpush1.msra.mxu0 0.0
        %1464 = vmatprep.subr.mxu0 0.0
        %1465 = vmatpush1.msra.mxu0 0.0
        %1466 = vmatprep.subr.mxu0 0.0
        %1467 = vmatpush1.msra.mxu0 0.0
        %1468 = vmatprep.subr.mxu0 0.0
        %1469 = vmatpush1.msra.mxu0 0.0
        %1470 = vmatprep.subr.mxu0 0.0
        %1471 = vmatpush1.msra.mxu0 0.0
        %1472 = vmatprep.subr.mxu0 0.0
        %1473 = vmatpush1.msra.mxu0 0.0
        %1474 = vmatprep.subr.mxu0 0.0
        %1475 = vmatpush1.msra.mxu0 0.0
        %1476 = vmatprep.subr.mxu0 0.0
        %1477 = vmatpush1.msra.mxu0 0.0
        %1478 = vmatprep.subr.mxu0 0.0
        %1479 = vmatpush1.msra.mxu0 0.0
        %1480 = vmatprep.subr.mxu0 0.0
        %1481 = vmatpush1.msra.mxu0 0.0
        %1482 = vmatprep.subr.mxu0 0.0
        %1483 = vmatpush1.msra.mxu0 0.0
        %1484 = vmatprep.subr.mxu0 0.0
        %1485 = vmatpush1.msra.mxu0 0.0
        %1486 = vmatprep.subr.mxu0 0.0
        %1487 = vmatpush1.msra.mxu0 0.0
        %1488 = vmatprep.subr.mxu0 0.0
        %1489 = vmatpush1.msra.mxu0 0.0
        %1490 = vmatprep.subr.mxu0 0.0
        %1491 = vmatpush1.msra.mxu0 0.0
        %1492 = vmatprep.subr.mxu0 0.0
        %1493 = vmatpush1.msra.mxu0 0.0
        %1494 = vmatprep.mubr.f32.mxu0 0.0
        %1495 = vmatmul.mubr.f32.gmra.mrb[0].mxu0 %v1428
        %v1496 = vpop.f32.mrb[0].mxu0
        %v1497 = vadd.f32 %v1426, %v1496
        %v1498 = vpop.f32.mrb[0].mxu0
        %1499 = vdwg.mxu0
        %1501 = vrot.lane.b32.xlu0 %v1413, 8
        %v1502 = vpop.permute.xlu0 %1501
        %vm1504 = vcmask 130112
        %1505 = vst.msk [vmem:[#allocation2] sm:$0xff] %vm1504, %v1502
        %v1506 = vadd.f32 %v1413, %v1497
        %1508 = vrot.lane.b32.xlu0 %v1506, 8
        %v1509 = vpop.permute.xlu0 %1508
        %vm1511 = vcmask 122944
        %1512 = vst.msk [vmem:[#allocation2] sm:$0x1] %vm1511, %v1509
        %s1513 = scalar_lea.vmem %s3, 64
        %v1514 = vld [vmem:[%s1513] sm:$0xff]
        %v1515 = vld [vmem:[%s1513 + $0x8] sm:$0xff]
        %v1516 = vld [vmem:[%s1513 + $0x10] sm:$0xff]
        %v1517 = vld [vmem:[%s1513 + $0x18] sm:$0xff]
        %1518 = vmatprep.subr.mxu0 0.0
        %1519 = vmatpush1.msra.mxu0 %v1514
        %1520 = vmatprep.subr.mxu0 0.0
        %1521 = vmatpush1.msra.mxu0 %v1515
        %1522 = vmatprep.subr.mxu0 0.0
        %1523 = vmatpush1.msra.mxu0 %v1516
        %1524 = vmatprep.subr.mxu0 0.0
        %1525 = vmatpush1.msra.mxu0 %v1517
        %1526 = vmatprep.subr.mxu0 0.0
        %1527 = vmatpush1.msra.mxu0 0.0
        %1528 = vmatprep.subr.mxu0 0.0
        %1529 = vmatpush1.msra.mxu0 0.0
        %1530 = vmatprep.subr.mxu0 0.0
        %1531 = vmatpush1.msra.mxu0 0.0
        %1532 = vmatprep.subr.mxu0 0.0
        %1533 = vmatpush1.msra.mxu0 0.0
        %1534 = vmatprep.subr.mxu0 0.0
        %1535 = vmatpush1.msra.mxu0 0.0
        %1536 = vmatprep.subr.mxu0 0.0
        %1537 = vmatpush1.msra.mxu0 0.0
        %1538 = vmatprep.subr.mxu0 0.0
        %1539 = vmatpush1.msra.mxu0 0.0
        %1540 = vmatprep.subr.mxu0 0.0
        %1541 = vmatpush1.msra.mxu0 0.0
        %1542 = vmatprep.subr.mxu0 0.0
        %1543 = vmatpush1.msra.mxu0 0.0
        %1544 = vmatprep.subr.mxu0 0.0
        %1545 = vmatpush1.msra.mxu0 0.0
        %1546 = vmatprep.subr.mxu0 0.0
        %1547 = vmatpush1.msra.mxu0 0.0
        %1548 = vmatprep.subr.mxu0 0.0
        %1549 = vmatpush1.msra.mxu0 0.0
        %1550 = vmatprep.subr.mxu0 0.0
        %1551 = vmatpush1.msra.mxu0 0.0
        %1552 = vmatprep.subr.mxu0 0.0
        %1553 = vmatpush1.msra.mxu0 0.0
        %1554 = vmatprep.subr.mxu0 0.0
        %1555 = vmatpush1.msra.mxu0 0.0
        %1556 = vmatprep.subr.mxu0 0.0
        %1557 = vmatpush1.msra.mxu0 0.0
        %1558 = vmatprep.subr.mxu0 0.0
        %1559 = vmatpush1.msra.mxu0 0.0
        %1560 = vmatprep.subr.mxu0 0.0
        %1561 = vmatpush1.msra.mxu0 0.0
        %1562 = vmatprep.subr.mxu0 0.0
        %1563 = vmatpush1.msra.mxu0 0.0
        %1564 = vmatprep.subr.mxu0 0.0
        %1565 = vmatpush1.msra.mxu0 0.0
        %1566 = vmatprep.subr.mxu0 0.0
        %1567 = vmatpush1.msra.mxu0 0.0
        %1568 = vmatprep.subr.mxu0 0.0
        %1569 = vmatpush1.msra.mxu0 0.0
        %1570 = vmatprep.subr.mxu0 0.0
        %1571 = vmatpush1.msra.mxu0 0.0
        %1572 = vmatprep.subr.mxu0 0.0
        %1573 = vmatpush1.msra.mxu0 0.0
        %1574 = vmatprep.subr.mxu0 0.0
        %1575 = vmatpush1.msra.mxu0 0.0
        %1576 = vmatprep.subr.mxu0 0.0
        %1577 = vmatpush1.msra.mxu0 0.0
        %1578 = vmatprep.subr.mxu0 0.0
        %1579 = vmatpush1.msra.mxu0 0.0
        %1580 = vmatprep.subr.mxu0 0.0
        %1581 = vmatpush1.msra.mxu0 0.0
        %1582 = vmatprep.mubr.f32.mxu0 0.0
        %1583 = vmatmul.mubr.f32.gmra.mrb[0].mxu0 %v554
        %v1584 = vpop.f32.mrb[0].mxu0
        %v1585 = vadd.f32 0.0, %v1584
        %v1586 = vpop.f32.mrb[0].mxu0
        %1587 = vdwg.mxu0
        %s1588 = scalar_lea.vmem %s4, 64
        %v1589 = vld [vmem:[%s1588] sm:$0xff]
        %v1590 = vld [vmem:[%s1588 + $0x8] sm:$0xff]
        %v1591 = vld [vmem:[%s1588 + $0x10] sm:$0xff]
        %v1592 = vld [vmem:[%s1588 + $0x18] sm:$0xff]
        %1593 = vmatprep.subr.mxu0 0.0
        %1594 = vmatpush1.msra.mxu0 %v1589
        %1595 = vmatprep.subr.mxu0 0.0
        %1596 = vmatpush1.msra.mxu0 %v1590
        %1597 = vmatprep.subr.mxu0 0.0
        %1598 = vmatpush1.msra.mxu0 %v1591
        %1599 = vmatprep.subr.mxu0 0.0
        %1600 = vmatpush1.msra.mxu0 %v1592
        %1601 = vmatprep.subr.mxu0 0.0
        %1602 = vmatpush1.msra.mxu0 0.0
        %1603 = vmatprep.subr.mxu0 0.0
        %1604 = vmatpush1.msra.mxu0 0.0
        %1605 = vmatprep.subr.mxu0 0.0
        %1606 = vmatpush1.msra.mxu0 0.0
        %1607 = vmatprep.subr.mxu0 0.0
        %1608 = vmatpush1.msra.mxu0 0.0
        %1609 = vmatprep.subr.mxu0 0.0
        %1610 = vmatpush1.msra.mxu0 0.0
        %1611 = vmatprep.subr.mxu0 0.0
        %1612 = vmatpush1.msra.mxu0 0.0
        %1613 = vmatprep.subr.mxu0 0.0
        %1614 = vmatpush1.msra.mxu0 0.0
        %1615 = vmatprep.subr.mxu0 0.0
        %1616 = vmatpush1.msra.mxu0 0.0
        %1617 = vmatprep.subr.mxu0 0.0
        %1618 = vmatpush1.msra.mxu0 0.0
        %1619 = vmatprep.subr.mxu0 0.0
        %1620 = vmatpush1.msra.mxu0 0.0
        %1621 = vmatprep.subr.mxu0 0.0
        %1622 = vmatpush1.msra.mxu0 0.0
        %1623 = vmatprep.subr.mxu0 0.0
        %1624 = vmatpush1.msra.mxu0 0.0
        %1625 = vmatprep.subr.mxu0 0.0
        %1626 = vmatpush1.msra.mxu0 0.0
        %1627 = vmatprep.subr.mxu0 0.0
        %1628 = vmatpush1.msra.mxu0 0.0
        %1629 = vmatprep.subr.mxu0 0.0
        %1630 = vmatpush1.msra.mxu0 0.0
        %1631 = vmatprep.subr.mxu0 0.0
        %1632 = vmatpush1.msra.mxu0 0.0
        %1633 = vmatprep.subr.mxu0 0.0
        %1634 = vmatpush1.msra.mxu0 0.0
        %1635 = vmatprep.subr.mxu0 0.0
        %1636 = vmatpush1.msra.mxu0 0.0
        %1637 = vmatprep.subr.mxu0 0.0
        %1638 = vmatpush1.msra.mxu0 0.0
        %1639 = vmatprep.subr.mxu0 0.0
        %1640 = vmatpush1.msra.mxu0 0.0
        %1641 = vmatprep.subr.mxu0 0.0
        %1642 = vmatpush1.msra.mxu0 0.0
        %1643 = vmatprep.subr.mxu0 0.0
        %1644 = vmatpush1.msra.mxu0 0.0
        %1645 = vmatprep.subr.mxu0 0.0
        %1646 = vmatpush1.msra.mxu0 0.0
        %1647 = vmatprep.subr.mxu0 0.0
        %1648 = vmatpush1.msra.mxu0 0.0
        %1649 = vmatprep.subr.mxu0 0.0
        %1650 = vmatpush1.msra.mxu0 0.0
        %1651 = vmatprep.subr.mxu0 0.0
        %1652 = vmatpush1.msra.mxu0 0.0
        %1653 = vmatprep.subr.mxu0 0.0
        %1654 = vmatpush1.msra.mxu0 0.0
        %1655 = vmatprep.subr.mxu0 0.0
        %1656 = vmatpush1.msra.mxu0 0.0
        %1657 = vmatprep.mubr.f32.mxu0 0.0
        %1658 = vmatmul.mubr.f32.gmra.mrb[0].mxu0 %v554
        %v1659 = vpop.f32.mrb[0].mxu0
        %v1660 = vadd.f32 0.0, %v1659
        %v1661 = vpop.f32.mrb[0].mxu0
        %1662 = vdwg.mxu0
        %s1663 = scalar_lea.vmem %s5, 64
        %v1664 = vld [vmem:[%s1663] sm:$0xff]
        %v1665 = vld [vmem:[%s1663 + $0x8] sm:$0xff]
        %v1666 = vld [vmem:[%s1663 + $0x10] sm:$0xff]
        %v1667 = vld [vmem:[%s1663 + $0x18] sm:$0xff]
        %1668 = vmatprep.subr.mxu0 0.0
        %1669 = vmatpush1.msra.mxu0 %v1664
        %1670 = vmatprep.subr.mxu0 0.0
        %1671 = vmatpush1.msra.mxu0 %v1665
        %1672 = vmatprep.subr.mxu0 0.0
        %1673 = vmatpush1.msra.mxu0 %v1666
        %1674 = vmatprep.subr.mxu0 0.0
        %1675 = vmatpush1.msra.mxu0 %v1667
        %1676 = vmatprep.subr.mxu0 0.0
        %1677 = vmatpush1.msra.mxu0 0.0
        %1678 = vmatprep.subr.mxu0 0.0
        %1679 = vmatpush1.msra.mxu0 0.0
        %1680 = vmatprep.subr.mxu0 0.0
        %1681 = vmatpush1.msra.mxu0 0.0
        %1682 = vmatprep.subr.mxu0 0.0
        %1683 = vmatpush1.msra.mxu0 0.0
        %1684 = vmatprep.subr.mxu0 0.0
        %1685 = vmatpush1.msra.mxu0 0.0
        %1686 = vmatprep.subr.mxu0 0.0
        %1687 = vmatpush1.msra.mxu0 0.0
        %1688 = vmatprep.subr.mxu0 0.0
        %1689 = vmatpush1.msra.mxu0 0.0
        %1690 = vmatprep.subr.mxu0 0.0
        %1691 = vmatpush1.msra.mxu0 0.0
        %1692 = vmatprep.subr.mxu0 0.0
        %1693 = vmatpush1.msra.mxu0 0.0
        %1694 = vmatprep.subr.mxu0 0.0
        %1695 = vmatpush1.msra.mxu0 0.0
        %1696 = vmatprep.subr.mxu0 0.0
        %1697 = vmatpush1.msra.mxu0 0.0
        %1698 = vmatprep.subr.mxu0 0.0
        %1699 = vmatpush1.msra.mxu0 0.0
        %1700 = vmatprep.subr.mxu0 0.0
        %1701 = vmatpush1.msra.mxu0 0.0
        %1702 = vmatprep.subr.mxu0 0.0
        %1703 = vmatpush1.msra.mxu0 0.0
        %1704 = vmatprep.subr.mxu0 0.0
        %1705 = vmatpush1.msra.mxu0 0.0
        %1706 = vmatprep.subr.mxu0 0.0
        %1707 = vmatpush1.msra.mxu0 0.0
        %1708 = vmatprep.subr.mxu0 0.0
        %1709 = vmatpush1.msra.mxu0 0.0
        %1710 = vmatprep.subr.mxu0 0.0
        %1711 = vmatpush1.msra.mxu0 0.0
        %1712 = vmatprep.subr.mxu0 0.0
        %1713 = vmatpush1.msra.mxu0 0.0
        %1714 = vmatprep.subr.mxu0 0.0
        %1715 = vmatpush1.msra.mxu0 0.0
        %1716 = vmatprep.subr.mxu0 0.0
        %1717 = vmatpush1.msra.mxu0 0.0
        %1718 = vmatprep.subr.mxu0 0.0
        %1719 = vmatpush1.msra.mxu0 0.0
        %1720 = vmatprep.subr.mxu0 0.0
        %1721 = vmatpush1.msra.mxu0 0.0
        %1722 = vmatprep.subr.mxu0 0.0
        %1723 = vmatpush1.msra.mxu0 0.0
        %1724 = vmatprep.subr.mxu0 0.0
        %1725 = vmatpush1.msra.mxu0 0.0
        %1726 = vmatprep.subr.mxu0 0.0
        %1727 = vmatpush1.msra.mxu0 0.0
        %1728 = vmatprep.subr.mxu0 0.0
        %1729 = vmatpush1.msra.mxu0 0.0
        %1730 = vmatprep.subr.mxu0 0.0
        %1731 = vmatpush1.msra.mxu0 0.0
        %1732 = vmatprep.mubr.f32.mxu0 0.0
        %1733 = vmatmul.mubr.f32.gmra.mrb[0].mxu0 %v554
        %v1734 = vpop.f32.mrb[0].mxu0
        %v1735 = vadd.f32 0.0, %v1734
        %v1736 = vpop.f32.mrb[0].mxu0
        %1737 = vdwg.mxu0
        %v1739 = vsel %vm774, %v1585, 0
        %v1742 = vsel %vm774, %v1660, 0
        %1744 = vmatprep.subr.mxu0 0.0
        %1745 = vmatpush1.xpose.msra.mxu0 %v1742
        %1746 = vmatprep.subr.mxu0 0.0
        %1747 = vmatpush1.xpose.msra.mxu0 0.0
        %1748 = vmatprep.subr.mxu0 0.0
        %1749 = vmatpush1.xpose.msra.mxu0 0.0
        %1750 = vmatprep.subr.mxu0 0.0
        %1751 = vmatpush1.xpose.msra.mxu0 0.0
        %1752 = vmatprep.subr.mxu0 0.0
        %1753 = vmatpush1.xpose.msra.mxu0 0.0
        %1754 = vmatprep.subr.mxu0 0.0
        %1755 = vmatpush1.xpose.msra.mxu0 0.0
        %1756 = vmatprep.subr.mxu0 0.0
        %1757 = vmatpush1.xpose.msra.mxu0 0.0
        %1758 = vmatprep.subr.mxu0 0.0
        %1759 = vmatpush1.xpose.msra.mxu0 0.0
        %1760 = vmatprep.subr.mxu0 0.0
        %1761 = vmatpush1.xpose.msra.mxu0 0.0
        %1762 = vmatprep.subr.mxu0 0.0
        %1763 = vmatpush1.xpose.msra.mxu0 0.0
        %1764 = vmatprep.subr.mxu0 0.0
        %1765 = vmatpush1.xpose.msra.mxu0 0.0
        %1766 = vmatprep.subr.mxu0 0.0
        %1767 = vmatpush1.xpose.msra.mxu0 0.0
        %1768 = vmatprep.subr.mxu0 0.0
        %1769 = vmatpush1.xpose.msra.mxu0 0.0
        %1770 = vmatprep.subr.mxu0 0.0
        %1771 = vmatpush1.xpose.msra.mxu0 0.0
        %1772 = vmatprep.subr.mxu0 0.0
        %1773 = vmatpush1.xpose.msra.mxu0 0.0
        %1774 = vmatprep.subr.mxu0 0.0
        %1775 = vmatpush1.xpose.msra.mxu0 0.0
        %1776 = vmatprep.subr.mxu0 0.0
        %1777 = vmatpush1.xpose.msra.mxu0 0.0
        %1778 = vmatprep.subr.mxu0 0.0
        %1779 = vmatpush1.xpose.msra.mxu0 0.0
        %1780 = vmatprep.subr.mxu0 0.0
        %1781 = vmatpush1.xpose.msra.mxu0 0.0
        %1782 = vmatprep.subr.mxu0 0.0
        %1783 = vmatpush1.xpose.msra.mxu0 0.0
        %1784 = vmatprep.subr.mxu0 0.0
        %1785 = vmatpush1.xpose.msra.mxu0 0.0
        %1786 = vmatprep.subr.mxu0 0.0
        %1787 = vmatpush1.xpose.msra.mxu0 0.0
        %1788 = vmatprep.subr.mxu0 0.0
        %1789 = vmatpush1.xpose.msra.mxu0 0.0
        %1790 = vmatprep.subr.mxu0 0.0
        %1791 = vmatpush1.xpose.msra.mxu0 0.0
        %1792 = vmatprep.subr.mxu0 0.0
        %1793 = vmatpush1.xpose.msra.mxu0 0.0
        %1794 = vmatprep.subr.mxu0 0.0
        %1795 = vmatpush1.xpose.msra.mxu0 0.0
        %1796 = vmatprep.subr.mxu0 0.0
        %1797 = vmatpush1.xpose.msra.mxu0 0.0
        %1798 = vmatprep.subr.mxu0 0.0
        %1799 = vmatpush1.xpose.msra.mxu0 0.0
        %1800 = vmatprep.subr.mxu0 0.0
        %1801 = vmatpush1.xpose.msra.mxu0 0.0
        %1802 = vmatprep.subr.mxu0 0.0
        %1803 = vmatpush1.xpose.msra.mxu0 0.0
        %1804 = vmatprep.subr.mxu0 0.0
        %1805 = vmatpush1.xpose.msra.mxu0 0.0
        %1806 = vmatprep.subr.mxu0 0.0
        %1807 = vmatpush1.xpose.msra.mxu0 0.0
        %1808 = vmatprep.mubr.f32.mxu0 0.0
        %1809 = vmatmul.mubr.f32.gmra.mrb[0].mxu0 %v1739
        %v1810 = vpop.f32.mrb[0].mxu0
        %v1811 = vadd.f32 0.0, %v1810
        %v1812 = vpop.f32.mrb[0].mxu0
        %1813 = vdwg.mxu0
        %v1814 = vmul.f32 %v1811, 0.35355338
        %v1815 = vsel %vm774, %v1814, -inf
        %1816 = vmax.xlane.f32.xlu0 %v1815
        %v1817 = vpop.xlane.xlu0 %1816
        %v1818 = vsub.f32 %v1814, %v1817
        %v1819 = vmul.f32 %v1818, 1.442695
        %v1820 = vpow.pop %v1819
        %v1821 = vsel %vm774, %v1820, 0.0
        %1822 = vadd.xlane.f32.xlu0 %v1821
        %v1823 = vpop.xlane.xlu0 %1822
        %v1824 = vrcp.pop %v1823
        %v1825 = vmul.f32 %v1823, %v1824
        %v1826 = vsub.f32 2.0, %v1825
        %v1827 = vmul.f32 %v1824, %v1826
        %v1828 = vmul.f32 %v1820, %v1827
        %v1830 = vsel %vm774, %v1828, 0
        %1832 = vmatprep.subr.mxu0 0.0
        %1833 = vmatpush1.msra.mxu0 %v1735
        %1834 = vmatprep.subr.mxu0 0.0
        %1835 = vmatpush1.msra.mxu0 0.0
        %1836 = vmatprep.subr.mxu0 0.0
        %1837 = vmatpush1.msra.mxu0 0.0
        %1838 = vmatprep.subr.mxu0 0.0
        %1839 = vmatpush1.msra.mxu0 0.0
        %1840 = vmatprep.subr.mxu0 0.0
        %1841 = vmatpush1.msra.mxu0 0.0
        %1842 = vmatprep.subr.mxu0 0.0
        %1843 = vmatpush1.msra.mxu0 0.0
        %1844 = vmatprep.subr.mxu0 0.0
        %1845 = vmatpush1.msra.mxu0 0.0
        %1846 = vmatprep.subr.mxu0 0.0
        %1847 = vmatpush1.msra.mxu0 0.0
        %1848 = vmatprep.subr.mxu0 0.0
        %1849 = vmatpush1.msra.mxu0 0.0
        %1850 = vmatprep.subr.mxu0 0.0
        %1851 = vmatpush1.msra.mxu0 0.0
        %1852 = vmatprep.subr.mxu0 0.0
        %1853 = vmatpush1.msra.mxu0 0.0
        %1854 = vmatprep.subr.mxu0 0.0
        %1855 = vmatpush1.msra.mxu0 0.0
        %1856 = vmatprep.subr.mxu0 0.0
        %1857 = vmatpush1.msra.mxu0 0.0
        %1858 = vmatprep.subr.mxu0 0.0
        %1859 = vmatpush1.msra.mxu0 0.0
        %1860 = vmatprep.subr.mxu0 0.0
        %1861 = vmatpush1.msra.mxu0 0.0
        %1862 = vmatprep.subr.mxu0 0.0
        %1863 = vmatpush1.msra.mxu0 0.0
        %1864 = vmatprep.subr.mxu0 0.0
        %1865 = vmatpush1.msra.mxu0 0.0
        %1866 = vmatprep.subr.mxu0 0.0
        %1867 = vmatpush1.msra.mxu0 0.0
        %1868 = vmatprep.subr.mxu0 0.0
        %1869 = vmatpush1.msra.mxu0 0.0
        %1870 = vmatprep.subr.mxu0 0.0
        %1871 = vmatpush1.msra.mxu0 0.0
        %1872 = vmatprep.subr.mxu0 0.0
        %1873 = vmatpush1.msra.mxu0 0.0
        %1874 = vmatprep.subr.mxu0 0.0
        %1875 = vmatpush1.msra.mxu0 0.0
        %1876 = vmatprep.subr.mxu0 0.0
        %1877 = vmatpush1.msra.mxu0 0.0
        %1878 = vmatprep.subr.mxu0 0.0
        %1879 = vmatpush1.msra.mxu0 0.0
        %1880 = vmatprep.subr.mxu0 0.0
        %1881 = vmatpush1.msra.mxu0 0.0
        %1882 = vmatprep.subr.mxu0 0.0
        %1883 = vmatpush1.msra.mxu0 0.0
        %1884 = vmatprep.subr.mxu0 0.0
        %1885 = vmatpush1.msra.mxu0 0.0
        %1886 = vmatprep.subr.mxu0 0.0
        %1887 = vmatpush1.msra.mxu0 0.0
        %1888 = vmatprep.subr.mxu0 0.0
        %1889 = vmatpush1.msra.mxu0 0.0
        %1890 = vmatprep.subr.mxu0 0.0
        %1891 = vmatpush1.msra.mxu0 0.0
        %1892 = vmatprep.subr.mxu0 0.0
        %1893 = vmatpush1.msra.mxu0 0.0
        %1894 = vmatprep.subr.mxu0 0.0
        %1895 = vmatpush1.msra.mxu0 0.0
        %1896 = vmatprep.mubr.f32.mxu0 0.0
        %1897 = vmatmul.mubr.f32.gmra.mrb[0].mxu0 %v1830
        %v1898 = vpop.f32.mrb[0].mxu0
        %v1899 = vadd.f32 0.0, %v1898
        %v1900 = vpop.f32.mrb[0].mxu0
        %1901 = vdwg.mxu0
        %v1902 = vsel %vm774, %v1899, 0.0
        %v1903 = vrot.slane %v1902, 4
        %v1904 = vadd.f32 %v1902, %v1903
        %v1905 = vrot.slane %v1904, 2
        %v1906 = vadd.f32 %v1904, %v1905
        %v1907 = vrot.slane %v1906, 1
        %v1908 = vadd.f32 %v1906, %v1907
        %v1909 = vsub.f32 %v1908, %v1899
        %v1910 = vmul.f32 %v1909, 0.14285715
        %v1911 = vld [vmem:[%s6] sm:$0xff]
        %v1912 = vld [vmem:[%s7] sm:$0x1]
        %v1914 = vsel %vm774, %v1910, 0
        %1916 = vmatprep.subr.mxu0 0.0
        %1917 = vmatpush1.msra.mxu0 %v1911
        %1918 = vmatprep.subr.mxu0 0.0
        %1919 = vmatpush1.msra.mxu0 0.0
        %1920 = vmatprep.subr.mxu0 0.0
        %1921 = vmatpush1.msra.mxu0 0.0
        %1922 = vmatprep.subr.mxu0 0.0
        %1923 = vmatpush1.msra.mxu0 0.0
        %1924 = vmatprep.subr.mxu0 0.0
        %1925 = vmatpush1.msra.mxu0 0.0
        %1926 = vmatprep.subr.mxu0 0.0
        %1927 = vmatpush1.msra.mxu0 0.0
        %1928 = vmatprep.subr.mxu0 0.0
        %1929 = vmatpush1.msra.mxu0 0.0
        %1930 = vmatprep.subr.mxu0 0.0
        %1931 = vmatpush1.msra.mxu0 0.0
        %1932 = vmatprep.subr.mxu0 0.0
        %1933 = vmatpush1.msra.mxu0 0.0
        %1934 = vmatprep.subr.mxu0 0.0
        %1935 = vmatpush1.msra.mxu0 0.0
        %1936 = vmatprep.subr.mxu0 0.0
        %1937 = vmatpush1.msra.mxu0 0.0
        %1938 = vmatprep.subr.mxu0 0.0
        %1939 = vmatpush1.msra.mxu0 0.0
        %1940 = vmatprep.subr.mxu0 0.0
        %1941 = vmatpush1.msra.mxu0 0.0
        %1942 = vmatprep.subr.mxu0 0.0
        %1943 = vmatpush1.msra.mxu0 0.0
        %1944 = vmatprep.subr.mxu0 0.0
        %1945 = vmatpush1.msra.mxu0 0.0
        %1946 = vmatprep.subr.mxu0 0.0
        %1947 = vmatpush1.msra.mxu0 0.0
        %1948 = vmatprep.subr.mxu0 0.0
        %1949 = vmatpush1.msra.mxu0 0.0
        %1950 = vmatprep.subr.mxu0 0.0
        %1951 = vmatpush1.msra.mxu0 0.0
        %1952 = vmatprep.subr.mxu0 0.0
        %1953 = vmatpush1.msra.mxu0 0.0
        %1954 = vmatprep.subr.mxu0 0.0
        %1955 = vmatpush1.msra.mxu0 0.0
        %1956 = vmatprep.subr.mxu0 0.0
        %1957 = vmatpush1.msra.mxu0 0.0
        %1958 = vmatprep.subr.mxu0 0.0
        %1959 = vmatpush1.msra.mxu0 0.0
        %1960 = vmatprep.subr.mxu0 0.0
        %1961 = vmatpush1.msra.mxu0 0.0
        %1962 = vmatprep.subr.mxu0 0.0
        %1963 = vmatpush1.msra.mxu0 0.0
        %1964 = vmatprep.subr.mxu0 0.0
        %1965 = vmatpush1.msra.mxu0 0.0
        %1966 = vmatprep.subr.mxu0 0.0
        %1967 = vmatpush1.msra.mxu0 0.0
        %1968 = vmatprep.subr.mxu0 0.0
        %1969 = vmatpush1.msra.mxu0 0.0
        %1970 = vmatprep.subr.mxu0 0.0
        %1971 = vmatpush1.msra.mxu0 0.0
        %1972 = vmatprep.subr.mxu0 0.0
        %1973 = vmatpush1.msra.mxu0 0.0
        %1974 = vmatprep.subr.mxu0 0.0
        %1975 = vmatpush1.msra.mxu0 0.0
        %1976 = vmatprep.subr.mxu0 0.0
        %1977 = vmatpush1.msra.mxu0 0.0
        %1978 = vmatprep.subr.mxu0 0.0
        %1979 = vmatpush1.msra.mxu0 0.0
        %1980 = vmatprep.mubr.f32.mxu0 0.0
        %1981 = vmatmul.mubr.f32.gmra.mrb[0].mxu0 %v1914
        %v1982 = vpop.f32.mrb[0].mxu0
        %v1983 = vadd.f32 %v1912, %v1982
        %v1984 = vpop.f32.mrb[0].mxu0
        %1985 = vdwg.mxu0
        %1987 = vrot.lane.b32.xlu0 %v1899, 16
        %v1988 = vpop.permute.xlu0 %1987
        %vm1990 = vcmask 195712
        %1991 = vst.msk [vmem:[#allocation2] sm:$0xff] %vm1990, %v1988
        %v1992 = vadd.f32 %v1899, %v1983
        %1994 = vrot.lane.b32.xlu0 %v1992, 16
        %v1995 = vpop.permute.xlu0 %1994
        %vm1997 = vcmask 188544
        %1998 = vst.msk [vmem:[#allocation2] sm:$0x1] %vm1997, %v1995
        %s1999 = scalar_lea.vmem %s3, 96
        %v2000 = vld [vmem:[%s1999] sm:$0xff]
        %v2001 = vld [vmem:[%s1999 + $0x8] sm:$0xff]
        %v2002 = vld [vmem:[%s1999 + $0x10] sm:$0xff]
        %v2003 = vld [vmem:[%s1999 + $0x18] sm:$0xff]
        %2004 = vmatprep.subr.mxu0 0.0
        %2005 = vmatpush1.msra.mxu0 %v2000
        %2006 = vmatprep.subr.mxu0 0.0
        %2007 = vmatpush1.msra.mxu0 %v2001
        %2008 = vmatprep.subr.mxu0 0.0
        %2009 = vmatpush1.msra.mxu0 %v2002
        %2010 = vmatprep.subr.mxu0 0.0
        %2011 = vmatpush1.msra.mxu0 %v2003
        %2012 = vmatprep.subr.mxu0 0.0
        %2013 = vmatpush1.msra.mxu0 0.0
        %2014 = vmatprep.subr.mxu0 0.0
        %2015 = vmatpush1.msra.mxu0 0.0
        %2016 = vmatprep.subr.mxu0 0.0
        %2017 = vmatpush1.msra.mxu0 0.0
        %2018 = vmatprep.subr.mxu0 0.0
        %2019 = vmatpush1.msra.mxu0 0.0
        %2020 = vmatprep.subr.mxu0 0.0
        %2021 = vmatpush1.msra.mxu0 0.0
        %2022 = vmatprep.subr.mxu0 0.0
        %2023 = vmatpush1.msra.mxu0 0.0
        %2024 = vmatprep.subr.mxu0 0.0
        %2025 = vmatpush1.msra.mxu0 0.0
        %2026 = vmatprep.subr.mxu0 0.0
        %2027 = vmatpush1.msra.mxu0 0.0
        %2028 = vmatprep.subr.mxu0 0.0
        %2029 = vmatpush1.msra.mxu0 0.0
        %2030 = vmatprep.subr.mxu0 0.0
        %2031 = vmatpush1.msra.mxu0 0.0
        %2032 = vmatprep.subr.mxu0 0.0
        %2033 = vmatpush1.msra.mxu0 0.0
        %2034 = vmatprep.subr.mxu0 0.0
        %2035 = vmatpush1.msra.mxu0 0.0
        %2036 = vmatprep.subr.mxu0 0.0
        %2037 = vmatpush1.msra.mxu0 0.0
        %2038 = vmatprep.subr.mxu0 0.0
        %2039 = vmatpush1.msra.mxu0 0.0
        %2040 = vmatprep.subr.mxu0 0.0
        %2041 = vmatpush1.msra.mxu0 0.0
        %2042 = vmatprep.subr.mxu0 0.0
        %2043 = vmatpush1.msra.mxu0 0.0
        %2044 = vmatprep.subr.mxu0 0.0
        %2045 = vmatpush1.msra.mxu0 0.0
        %2046 = vmatprep.subr.mxu0 0.0
        %2047 = vmatpush1.msra.mxu0 0.0
        %2048 = vmatprep.subr.mxu0 0.0
        %2049 = vmatpush1.msra.mxu0 0.0
        %2050 = vmatprep.subr.mxu0 0.0
        %2051 = vmatpush1.msra.mxu0 0.0
        %2052 = vmatprep.subr.mxu0 0.0
        %2053 = vmatpush1.msra.mxu0 0.0
        %2054 = vmatprep.subr.mxu0 0.0
        %2055 = vmatpush1.msra.mxu0 0.0
        %2056 = vmatprep.subr.mxu0 0.0
        %2057 = vmatpush1.msra.mxu0 0.0
        %2058 = vmatprep.subr.mxu0 0.0
        %2059 = vmatpush1.msra.mxu0 0.0
        %2060 = vmatprep.subr.mxu0 0.0
        %2061 = vmatpush1.msra.mxu0 0.0
        %2062 = vmatprep.subr.mxu0 0.0
        %2063 = vmatpush1.msra.mxu0 0.0
        %2064 = vmatprep.subr.mxu0 0.0
        %2065 = vmatpush1.msra.mxu0 0.0
        %2066 = vmatprep.subr.mxu0 0.0
        %2067 = vmatpush1.msra.mxu0 0.0
        %2068 = vmatprep.mubr.f32.mxu0 0.0
        %2069 = vmatmul.mubr.f32.gmra.mrb[0].mxu0 %v554
        %v2070 = vpop.f32.mrb[0].mxu0
        %v2071 = vadd.f32 0.0, %v2070
        %v2072 = vpop.f32.mrb[0].mxu0
        %2073 = vdwg.mxu0
        %s2074 = scalar_lea.vmem %s4, 96
        %v2075 = vld [vmem:[%s2074] sm:$0xff]
        %v2076 = vld [vmem:[%s2074 + $0x8] sm:$0xff]
        %v2077 = vld [vmem:[%s2074 + $0x10] sm:$0xff]
        %v2078 = vld [vmem:[%s2074 + $0x18] sm:$0xff]
        %2079 = vmatprep.subr.mxu0 0.0
        %2080 = vmatpush1.msra.mxu0 %v2075
        %2081 = vmatprep.subr.mxu0 0.0
        %2082 = vmatpush1.msra.mxu0 %v2076
        %2083 = vmatprep.subr.mxu0 0.0
        %2084 = vmatpush1.msra.mxu0 %v2077
        %2085 = vmatprep.subr.mxu0 0.0
        %2086 = vmatpush1.msra.mxu0 %v2078
        %2087 = vmatprep.subr.mxu0 0.0
        %2088 = vmatpush1.msra.mxu0 0.0
        %2089 = vmatprep.subr.mxu0 0.0
        %2090 = vmatpush1.msra.mxu0 0.0
        %2091 = vmatprep.subr.mxu0 0.0
        %2092 = vmatpush1.msra.mxu0 0.0
        %2093 = vmatprep.subr.mxu0 0.0
        %2094 = vmatpush1.msra.mxu0 0.0
        %2095 = vmatprep.subr.mxu0 0.0
        %2096 = vmatpush1.msra.mxu0 0.0
        %2097 = vmatprep.subr.mxu0 0.0
        %2098 = vmatpush1.msra.mxu0 0.0
        %2099 = vmatprep.subr.mxu0 0.0
        %2100 = vmatpush1.msra.mxu0 0.0
        %2101 = vmatprep.subr.mxu0 0.0
        %2102 = vmatpush1.msra.mxu0 0.0
        %2103 = vmatprep.subr.mxu0 0.0
        %2104 = vmatpush1.msra.mxu0 0.0
        %2105 = vmatprep.subr.mxu0 0.0
        %2106 = vmatpush1.msra.mxu0 0.0
        %2107 = vmatprep.subr.mxu0 0.0
        %2108 = vmatpush1.msra.mxu0 0.0
        %2109 = vmatprep.subr.mxu0 0.0
        %2110 = vmatpush1.msra.mxu0 0.0
        %2111 = vmatprep.subr.mxu0 0.0
        %2112 = vmatpush1.msra.mxu0 0.0
        %2113 = vmatprep.subr.mxu0 0.0
        %2114 = vmatpush1.msra.mxu0 0.0
        %2115 = vmatprep.subr.mxu0 0.0
        %2116 = vmatpush1.msra.mxu0 0.0
        %2117 = vmatprep.subr.mxu0 0.0
        %2118 = vmatpush1.msra.mxu0 0.0
        %2119 = vmatprep.subr.mxu0 0.0
        %2120 = vmatpush1.msra.mxu0 0.0
        %2121 = vmatprep.subr.mxu0 0.0
        %2122 = vmatpush1.msra.mxu0 0.0
        %2123 = vmatprep.subr.mxu0 0.0
        %2124 = vmatpush1.msra.mxu0 0.0
        %2125 = vmatprep.subr.mxu0 0.0
        %2126 = vmatpush1.msra.mxu0 0.0
        %2127 = vmatprep.subr.mxu0 0.0
        %2128 = vmatpush1.msra.mxu0 0.0
        %2129 = vmatprep.subr.mxu0 0.0
        %2130 = vmatpush1.msra.mxu0 0.0
        %2131 = vmatprep.subr.mxu0 0.0
        %2132 = vmatpush1.msra.mxu0 0.0
        %2133 = vmatprep.subr.mxu0 0.0
        %2134 = vmatpush1.msra.mxu0 0.0
        %2135 = vmatprep.subr.mxu0 0.0
        %2136 = vmatpush1.msra.mxu0 0.0
        %2137 = vmatprep.subr.mxu0 0.0
        %2138 = vmatpush1.msra.mxu0 0.0
        %2139 = vmatprep.subr.mxu0 0.0
        %2140 = vmatpush1.msra.mxu0 0.0
        %2141 = vmatprep.subr.mxu0 0.0
        %2142 = vmatpush1.msra.mxu0 0.0
        %2143 = vmatprep.mubr.f32.mxu0 0.0
        %2144 = vmatmul.mubr.f32.gmra.mrb[0].mxu0 %v554
        %v2145 = vpop.f32.mrb[0].mxu0
        %v2146 = vadd.f32 0.0, %v2145
        %v2147 = vpop.f32.mrb[0].mxu0
        %2148 = vdwg.mxu0
        %s2149 = scalar_lea.vmem %s5, 96
        %v2150 = vld [vmem:[%s2149] sm:$0xff]
        %v2151 = vld [vmem:[%s2149 + $0x8] sm:$0xff]
        %v2152 = vld [vmem:[%s2149 + $0x10] sm:$0xff]
        %v2153 = vld [vmem:[%s2149 + $0x18] sm:$0xff]
        %2154 = vmatprep.subr.mxu0 0.0
        %2155 = vmatpush1.msra.mxu0 %v2150
        %2156 = vmatprep.subr.mxu0 0.0
        %2157 = vmatpush1.msra.mxu0 %v2151
        %2158 = vmatprep.subr.mxu0 0.0
        %2159 = vmatpush1.msra.mxu0 %v2152
        %2160 = vmatprep.subr.mxu0 0.0
        %2161 = vmatpush1.msra.mxu0 %v2153
        %2162 = vmatprep.subr.mxu0 0.0
        %2163 = vmatpush1.msra.mxu0 0.0
        %2164 = vmatprep.subr.mxu0 0.0
        %2165 = vmatpush1.msra.mxu0 0.0
        %2166 = vmatprep.subr.mxu0 0.0
        %2167 = vmatpush1.msra.mxu0 0.0
        %2168 = vmatprep.subr.mxu0 0.0
        %2169 = vmatpush1.msra.mxu0 0.0
        %2170 = vmatprep.subr.mxu0 0.0
        %2171 = vmatpush1.msra.mxu0 0.0
        %2172 = vmatprep.subr.mxu0 0.0
        %2173 = vmatpush1.msra.mxu0 0.0
        %2174 = vmatprep.subr.mxu0 0.0
        %2175 = vmatpush1.msra.mxu0 0.0
        %2176 = vmatprep.subr.mxu0 0.0
        %2177 = vmatpush1.msra.mxu0 0.0
        %2178 = vmatprep.subr.mxu0 0.0
        %2179 = vmatpush1.msra.mxu0 0.0
        %2180 = vmatprep.subr.mxu0 0.0
        %2181 = vmatpush1.msra.mxu0 0.0
        %2182 = vmatprep.subr.mxu0 0.0
        %2183 = vmatpush1.msra.mxu0 0.0
        %2184 = vmatprep.subr.mxu0 0.0
        %2185 = vmatpush1.msra.mxu0 0.0
        %2186 = vmatprep.subr.mxu0 0.0
        %2187 = vmatpush1.msra.mxu0 0.0
        %2188 = vmatprep.subr.mxu0 0.0
        %2189 = vmatpush1.msra.mxu0 0.0
        %2190 = vmatprep.subr.mxu0 0.0
        %2191 = vmatpush1.msra.mxu0 0.0
        %2192 = vmatprep.subr.mxu0 0.0
        %2193 = vmatpush1.msra.mxu0 0.0
        %2194 = vmatprep.subr.mxu0 0.0
        %2195 = vmatpush1.msra.mxu0 0.0
        %2196 = vmatprep.subr.mxu0 0.0
        %2197 = vmatpush1.msra.mxu0 0.0
        %2198 = vmatprep.subr.mxu0 0.0
        %2199 = vmatpush1.msra.mxu0 0.0
        %2200 = vmatprep.subr.mxu0 0.0
        %2201 = vmatpush1.msra.mxu0 0.0
        %2202 = vmatprep.subr.mxu0 0.0
        %2203 = vmatpush1.msra.mxu0 0.0
        %2204 = vmatprep.subr.mxu0 0.0
        %2205 = vmatpush1.msra.mxu0 0.0
        %2206 = vmatprep.subr.mxu0 0.0
        %2207 = vmatpush1.msra.mxu0 0.0
        %2208 = vmatprep.subr.mxu0 0.0
        %2209 = vmatpush1.msra.mxu0 0.0
        %2210 = vmatprep.subr.mxu0 0.0
        %2211 = vmatpush1.msra.mxu0 0.0
        %2212 = vmatprep.subr.mxu0 0.0
        %2213 = vmatpush1.msra.mxu0 0.0
        %2214 = vmatprep.subr.mxu0 0.0
        %2215 = vmatpush1.msra.mxu0 0.0
        %2216 = vmatprep.subr.mxu0 0.0
        %2217 = vmatpush1.msra.mxu0 0.0
        %2218 = vmatprep.mubr.f32.mxu0 0.0
        %2219 = vmatmul.mubr.f32.gmra.mrb[0].mxu0 %v554
        %v2220 = vpop.f32.mrb[0].mxu0
        %v2221 = vadd.f32 0.0, %v2220
        %v2222 = vpop.f32.mrb[0].mxu0
        %2223 = vdwg.mxu0
        %v2225 = vsel %vm774, %v2071, 0
        %v2228 = vsel %vm774, %v2146, 0
        %2230 = vmatprep.subr.mxu0 0.0
        %2231 = vmatpush1.xpose.msra.mxu0 %v2228
        %2232 = vmatprep.subr.mxu0 0.0
        %2233 = vmatpush1.xpose.msra.mxu0 0.0
        %2234 = vmatprep.subr.mxu0 0.0
        %2235 = vmatpush1.xpose.msra.mxu0 0.0
        %2236 = vmatprep.subr.mxu0 0.0
        %2237 = vmatpush1.xpose.msra.mxu0 0.0
        %2238 = vmatprep.subr.mxu0 0.0
        %2239 = vmatpush1.xpose.msra.mxu0 0.0
        %2240 = vmatprep.subr.mxu0 0.0
        %2241 = vmatpush1.xpose.msra.mxu0 0.0
        %2242 = vmatprep.subr.mxu0 0.0
        %2243 = vmatpush1.xpose.msra.mxu0 0.0
        %2244 = vmatprep.subr.mxu0 0.0
        %2245 = vmatpush1.xpose.msra.mxu0 0.0
        %2246 = vmatprep.subr.mxu0 0.0
        %2247 = vmatpush1.xpose.msra.mxu0 0.0
        %2248 = vmatprep.subr.mxu0 0.0
        %2249 = vmatpush1.xpose.msra.mxu0 0.0
        %2250 = vmatprep.subr.mxu0 0.0
        %2251 = vmatpush1.xpose.msra.mxu0 0.0
        %2252 = vmatprep.subr.mxu0 0.0
        %2253 = vmatpush1.xpose.msra.mxu0 0.0
        %2254 = vmatprep.subr.mxu0 0.0
        %2255 = vmatpush1.xpose.msra.mxu0 0.0
        %2256 = vmatprep.subr.mxu0 0.0
        %2257 = vmatpush1.xpose.msra.mxu0 0.0
        %2258 = vmatprep.subr.mxu0 0.0
        %2259 = vmatpush1.xpose.msra.mxu0 0.0
        %2260 = vmatprep.subr.mxu0 0.0
        %2261 = vmatpush1.xpose.msra.mxu0 0.0
        %2262 = vmatprep.subr.mxu0 0.0
        %2263 = vmatpush1.xpose.msra.mxu0 0.0
        %2264 = vmatprep.subr.mxu0 0.0
        %2265 = vmatpush1.xpose.msra.mxu0 0.0
        %2266 = vmatprep.subr.mxu0 0.0
        %2267 = vmatpush1.xpose.msra.mxu0 0.0
        %2268 = vmatprep.subr.mxu0 0.0
        %2269 = vmatpush1.xpose.msra.mxu0 0.0
        %2270 = vmatprep.subr.mxu0 0.0
        %2271 = vmatpush1.xpose.msra.mxu0 0.0
        %2272 = vmatprep.subr.mxu0 0.0
        %2273 = vmatpush1.xpose.msra.mxu0 0.0
        %2274 = vmatprep.subr.mxu0 0.0
        %2275 = vmatpush1.xpose.msra.mxu0 0.0
        %2276 = vmatprep.subr.mxu0 0.0
        %2277 = vmatpush1.xpose.msra.mxu0 0.0
        %2278 = vmatprep.subr.mxu0 0.0
        %2279 = vmatpush1.xpose.msra.mxu0 0.0
        %2280 = vmatprep.subr.mxu0 0.0
        %2281 = vmatpush1.xpose.msra.mxu0 0.0
        %2282 = vmatprep.subr.mxu0 0.0
        %2283 = vmatpush1.xpose.msra.mxu0 0.0
        %2284 = vmatprep.subr.mxu0 0.0
        %2285 = vmatpush1.xpose.msra.mxu0 0.0
        %2286 = vmatprep.subr.mxu0 0.0
        %2287 = vmatpush1.xpose.msra.mxu0 0.0
        %2288 = vmatprep.subr.mxu0 0.0
        %2289 = vmatpush1.xpose.msra.mxu0 0.0
        %2290 = vmatprep.subr.mxu0 0.0
        %2291 = vmatpush1.xpose.msra.mxu0 0.0
        %2292 = vmatprep.subr.mxu0 0.0
        %2293 = vmatpush1.xpose.msra.mxu0 0.0
        %2294 = vmatprep.mubr.f32.mxu0 0.0
        %2295 = vmatmul.mubr.f32.gmra.mrb[0].mxu0 %v2225
        %v2296 = vpop.f32.mrb[0].mxu0
        %v2297 = vadd.f32 0.0, %v2296
        %v2298 = vpop.f32.mrb[0].mxu0
        %2299 = vdwg.mxu0
        %v2300 = vmul.f32 %v2297, 0.35355338
        %v2301 = vsel %vm774, %v2300, -inf
        %2302 = vmax.xlane.f32.xlu0 %v2301
        %v2303 = vpop.xlane.xlu0 %2302
        %v2304 = vsub.f32 %v2300, %v2303
        %v2305 = vmul.f32 %v2304, 1.442695
        %v2306 = vpow.pop %v2305
        %v2307 = vsel %vm774, %v2306, 0.0
        %2308 = vadd.xlane.f32.xlu0 %v2307
        %v2309 = vpop.xlane.xlu0 %2308
        %v2310 = vrcp.pop %v2309
        %v2311 = vmul.f32 %v2309, %v2310
        %v2312 = vsub.f32 2.0, %v2311
        %v2313 = vmul.f32 %v2310, %v2312
        %v2314 = vmul.f32 %v2306, %v2313
        %v2316 = vsel %vm774, %v2314, 0
        %2318 = vmatprep.subr.mxu0 0.0
        %2319 = vmatpush1.msra.mxu0 %v2221
        %2320 = vmatprep.subr.mxu0 0.0
        %2321 = vmatpush1.msra.mxu0 0.0
        %2322 = vmatprep.subr.mxu0 0.0
        %2323 = vmatpush1.msra.mxu0 0.0
        %2324 = vmatprep.subr.mxu0 0.0
        %2325 = vmatpush1.msra.mxu0 0.0
        %2326 = vmatprep.subr.mxu0 0.0
        %2327 = vmatpush1.msra.mxu0 0.0
        %2328 = vmatprep.subr.mxu0 0.0
        %2329 = vmatpush1.msra.mxu0 0.0
        %2330 = vmatprep.subr.mxu0 0.0
        %2331 = vmatpush1.msra.mxu0 0.0
        %2332 = vmatprep.subr.mxu0 0.0
        %2333 = vmatpush1.msra.mxu0 0.0
        %2334 = vmatprep.subr.mxu0 0.0
        %2335 = vmatpush1.msra.mxu0 0.0
        %2336 = vmatprep.subr.mxu0 0.0
        %2337 = vmatpush1.msra.mxu0 0.0
        %2338 = vmatprep.subr.mxu0 0.0
        %2339 = vmatpush1.msra.mxu0 0.0
        %2340 = vmatprep.subr.mxu0 0.0
        %2341 = vmatpush1.msra.mxu0 0.0
        %2342 = vmatprep.subr.mxu0 0.0
        %2343 = vmatpush1.msra.mxu0 0.0
        %2344 = vmatprep.subr.mxu0 0.0
        %2345 = vmatpush1.msra.mxu0 0.0
        %2346 = vmatprep.subr.mxu0 0.0
        %2347 = vmatpush1.msra.mxu0 0.0
        %2348 = vmatprep.subr.mxu0 0.0
        %2349 = vmatpush1.msra.mxu0 0.0
        %2350 = vmatprep.subr.mxu0 0.0
        %2351 = vmatpush1.msra.mxu0 0.0
        %2352 = vmatprep.subr.mxu0 0.0
        %2353 = vmatpush1.msra.mxu0 0.0
        %2354 = vmatprep.subr.mxu0 0.0
        %2355 = vmatpush1.msra.mxu0 0.0
        %2356 = vmatprep.subr.mxu0 0.0
        %2357 = vmatpush1.msra.mxu0 0.0
        %2358 = vmatprep.subr.mxu0 0.0
        %2359 = vmatpush1.msra.mxu0 0.0
        %2360 = vmatprep.subr.mxu0 0.0
        %2361 = vmatpush1.msra.mxu0 0.0
        %2362 = vmatprep.subr.mxu0 0.0
        %2363 = vmatpush1.msra.mxu0 0.0
        %2364 = vmatprep.subr.mxu0 0.0
        %2365 = vmatpush1.msra.mxu0 0.0
        %2366 = vmatprep.subr.mxu0 0.0
        %2367 = vmatpush1.msra.mxu0 0.0
        %2368 = vmatprep.subr.mxu0 0.0
        %2369 = vmatpush1.msra.mxu0 0.0
        %2370 = vmatprep.subr.mxu0 0.0
        %2371 = vmatpush1.msra.mxu0 0.0
        %2372 = vmatprep.subr.mxu0 0.0
        %2373 = vmatpush1.msra.mxu0 0.0
        %2374 = vmatprep.subr.mxu0 0.0
        %2375 = vmatpush1.msra.mxu0 0.0
        %2376 = vmatprep.subr.mxu0 0.0
        %2377 = vmatpush1.msra.mxu0 0.0
        %2378 = vmatprep.subr.mxu0 0.0
        %2379 = vmatpush1.msra.mxu0 0.0
        %2380 = vmatprep.subr.mxu0 0.0
        %2381 = vmatpush1.msra.mxu0 0.0
        %2382 = vmatprep.mubr.f32.mxu0 0.0
        %2383 = vmatmul.mubr.f32.gmra.mrb[0].mxu0 %v2316
        %v2384 = vpop.f32.mrb[0].mxu0
        %v2385 = vadd.f32 0.0, %v2384
        %v2386 = vpop.f32.mrb[0].mxu0
        %2387 = vdwg.mxu0
        %v2388 = vsel %vm774, %v2385, 0.0
        %v2389 = vrot.slane %v2388, 4
        %v2390 = vadd.f32 %v2388, %v2389
        %v2391 = vrot.slane %v2390, 2
        %v2392 = vadd.f32 %v2390, %v2391
        %v2393 = vrot.slane %v2392, 1
        %v2394 = vadd.f32 %v2392, %v2393
        %v2395 = vsub.f32 %v2394, %v2385
        %v2396 = vmul.f32 %v2395, 0.14285715
        %v2397 = vld [vmem:[%s6] sm:$0xff]
        %v2398 = vld [vmem:[%s7] sm:$0x1]
        %v2400 = vsel %vm774, %v2396, 0
        %2402 = vmatprep.subr.mxu0 0.0
        %2403 = vmatpush1.msra.mxu0 %v2397
        %2404 = vmatprep.subr.mxu0 0.0
        %2405 = vmatpush1.msra.mxu0 0.0
        %2406 = vmatprep.subr.mxu0 0.0
        %2407 = vmatpush1.msra.mxu0 0.0
        %2408 = vmatprep.subr.mxu0 0.0
        %2409 = vmatpush1.msra.mxu0 0.0
        %2410 = vmatprep.subr.mxu0 0.0
        %2411 = vmatpush1.msra.mxu0 0.0
        %2412 = vmatprep.subr.mxu0 0.0
        %2413 = vmatpush1.msra.mxu0 0.0
        %2414 = vmatprep.subr.mxu0 0.0
        %2415 = vmatpush1.msra.mxu0 0.0
        %2416 = vmatprep.subr.mxu0 0.0
        %2417 = vmatpush1.msra.mxu0 0.0
        %2418 = vmatprep.subr.mxu0 0.0
        %2419 = vmatpush1.msra.mxu0 0.0
        %2420 = vmatprep.subr.mxu0 0.0
        %2421 = vmatpush1.msra.mxu0 0.0
        %2422 = vmatprep.subr.mxu0 0.0
        %2423 = vmatpush1.msra.mxu0 0.0
        %2424 = vmatprep.subr.mxu0 0.0
        %2425 = vmatpush1.msra.mxu0 0.0
        %2426 = vmatprep.subr.mxu0 0.0
        %2427 = vmatpush1.msra.mxu0 0.0
        %2428 = vmatprep.subr.mxu0 0.0
        %2429 = vmatpush1.msra.mxu0 0.0
        %2430 = vmatprep.subr.mxu0 0.0
        %2431 = vmatpush1.msra.mxu0 0.0
        %2432 = vmatprep.subr.mxu0 0.0
        %2433 = vmatpush1.msra.mxu0 0.0
        %2434 = vmatprep.subr.mxu0 0.0
        %2435 = vmatpush1.msra.mxu0 0.0
        %2436 = vmatprep.subr.mxu0 0.0
        %2437 = vmatpush1.msra.mxu0 0.0
        %2438 = vmatprep.subr.mxu0 0.0
        %2439 = vmatpush1.msra.mxu0 0.0
        %2440 = vmatprep.subr.mxu0 0.0
        %2441 = vmatpush1.msra.mxu0 0.0
        %2442 = vmatprep.subr.mxu0 0.0
        %2443 = vmatpush1.msra.mxu0 0.0
        %2444 = vmatprep.subr.mxu0 0.0
        %2445 = vmatpush1.msra.mxu0 0.0
        %2446 = vmatprep.subr.mxu0 0.0
        %2447 = vmatpush1.msra.mxu0 0.0
        %2448 = vmatprep.subr.mxu0 0.0
        %2449 = vmatpush1.msra.mxu0 0.0
        %2450 = vmatprep.subr.mxu0 0.0
        %2451 = vmatpush1.msra.mxu0 0.0
        %2452 = vmatprep.subr.mxu0 0.0
        %2453 = vmatpush1.msra.mxu0 0.0
        %2454 = vmatprep.subr.mxu0 0.0
        %2455 = vmatpush1.msra.mxu0 0.0
        %2456 = vmatprep.subr.mxu0 0.0
        %2457 = vmatpush1.msra.mxu0 0.0
        %2458 = vmatprep.subr.mxu0 0.0
        %2459 = vmatpush1.msra.mxu0 0.0
        %2460 = vmatprep.subr.mxu0 0.0
        %2461 = vmatpush1.msra.mxu0 0.0
        %2462 = vmatprep.subr.mxu0 0.0
        %2463 = vmatpush1.msra.mxu0 0.0
        %2464 = vmatprep.subr.mxu0 0.0
        %2465 = vmatpush1.msra.mxu0 0.0
        %2466 = vmatprep.mubr.f32.mxu0 0.0
        %2467 = vmatmul.mubr.f32.gmra.mrb[0].mxu0 %v2400
        %v2468 = vpop.f32.mrb[0].mxu0
        %v2469 = vadd.f32 %v2398, %v2468
        %v2470 = vpop.f32.mrb[0].mxu0
        %2471 = vdwg.mxu0
        %2473 = vrot.lane.b32.xlu0 %v2385, 24
        %v2474 = vpop.permute.xlu0 %2473
        %vm2476 = vcmask 261312
        %2477 = vst.msk [vmem:[#allocation2] sm:$0xff] %vm2476, %v2474
        %v2478 = vadd.f32 %v2385, %v2469
        %2480 = vrot.lane.b32.xlu0 %v2478, 24
        %v2481 = vpop.permute.xlu0 %2480
        %vm2483 = vcmask 254144
        %2484 = vst.msk [vmem:[#allocation2] sm:$0x1] %vm2483, %v2481
        %v2485 = vld [vmem:[#allocation2] sm:$0xff]
        %v2486 = vld [vmem:[%s8] sm:$0xff]
        %v2487 = vld [vmem:[%s8 + $0x8] sm:$0xff]
        %v2488 = vld [vmem:[%s8 + $0x10] sm:$0xff]
        %v2489 = vld [vmem:[%s8 + $0x18] sm:$0xff]
        %v2490 = vld [vmem:[%s9] sm:$0x1]
        %v2492 = vlaneseq
        %v2493 = vshrl.u32 %v2492, 7
        %v2494 = vsub.s32 0, %v2493
        %v2495 = vrot.slane %v2490, %v2494
        %v2498 = vsel %vm520, %v2485, 0
        %2500 = vmatprep.subr.mxu0 0.0
        %2501 = vmatpush1.msra.mxu0 %v2486
        %2502 = vmatprep.subr.mxu0 0.0
        %2503 = vmatpush1.msra.mxu0 %v2487
        %2504 = vmatprep.subr.mxu0 0.0
        %2505 = vmatpush1.msra.mxu0 %v2488
        %2506 = vmatprep.subr.mxu0 0.0
        %2507 = vmatpush1.msra.mxu0 %v2489
        %2508 = vmatprep.subr.mxu0 0.0
        %2509 = vmatpush1.msra.mxu0 0.0
        %2510 = vmatprep.subr.mxu0 0.0
        %2511 = vmatpush1.msra.mxu0 0.0
        %2512 = vmatprep.subr.mxu0 0.0
        %2513 = vmatpush1.msra.mxu0 0.0
        %2514 = vmatprep.subr.mxu0 0.0
        %2515 = vmatpush1.msra.mxu0 0.0
        %2516 = vmatprep.subr.mxu0 0.0
        %2517 = vmatpush1.msra.mxu0 0.0
        %2518 = vmatprep.subr.mxu0 0.0
        %2519 = vmatpush1.msra.mxu0 0.0
        %2520 = vmatprep.subr.mxu0 0.0
        %2521 = vmatpush1.msra.mxu0 0.0
        %2522 = vmatprep.subr.mxu0 0.0
        %2523 = vmatpush1.msra.mxu0 0.0
        %2524 = vmatprep.subr.mxu0 0.0
        %2525 = vmatpush1.msra.mxu0 0.0
        %2526 = vmatprep.subr.mxu0 0.0
        %2527 = vmatpush1.msra.mxu0 0.0
        %2528 = vmatprep.subr.mxu0 0.0
        %2529 = vmatpush1.msra.mxu0 0.0
        %2530 = vmatprep.subr.mxu0 0.0
        %2531 = vmatpush1.msra.mxu0 0.0
        %2532 = vmatprep.subr.mxu0 0.0
        %2533 = vmatpush1.msra.mxu0 0.0
        %2534 = vmatprep.subr.mxu0 0.0
        %2535 = vmatpush1.msra.mxu0 0.0
        %2536 = vmatprep.subr.mxu0 0.0
        %2537 = vmatpush1.msra.mxu0 0.0
        %2538 = vmatprep.subr.mxu0 0.0
        %2539 = vmatpush1.msra.mxu0 0.0
        %2540 = vmatprep.subr.mxu0 0.0
        %2541 = vmatpush1.msra.mxu0 0.0
        %2542 = vmatprep.subr.mxu0 0.0
        %2543 = vmatpush1.msra.mxu0 0.0
        %2544 = vmatprep.subr.mxu0 0.0
        %2545 = vmatpush1.msra.mxu0 0.0
        %2546 = vmatprep.subr.mxu0 0.0
        %2547 = vmatpush1.msra.mxu0 0.0
        %2548 = vmatprep.subr.mxu0 0.0
        %2549 = vmatpush1.msra.mxu0 0.0
        %2550 = vmatprep.subr.mxu0 0.0
        %2551 = vmatpush1.msra.mxu0 0.0
        %2552 = vmatprep.subr.mxu0 0.0
        %2553 = vmatpush1.msra.mxu0 0.0
        %2554 = vmatprep.subr.mxu0 0.0
        %2555 = vmatpush1.msra.mxu0 0.0
        %2556 = vmatprep.subr.mxu0 0.0
        %2557 = vmatpush1.msra.mxu0 0.0
        %2558 = vmatprep.subr.mxu0 0.0
        %2559 = vmatpush1.msra.mxu0 0.0
        %2560 = vmatprep.subr.mxu0 0.0
        %2561 = vmatpush1.msra.mxu0 0.0
        %2562 = vmatprep.subr.mxu0 0.0
        %2563 = vmatpush1.msra.mxu0 0.0
        %2564 = vmatprep.mubr.f32.mxu0 0.0
        %2565 = vmatmul.mubr.f32.gmra.mrb[0].mxu0 %v2498
        %v2566 = vpop.f32.mrb[0].mxu0
        %v2567 = vadd.f32 %v2495, %v2566
        %v2568 = vpop.f32.mrb[0].mxu0
        %2569 = vdwg.mxu0
        %v2570 = vadd.f32 %v517, %v2567
        %v2571 = vld [vmem:[%s10] sm:$0x1]
        %v2572 = vld [vmem:[%s11] sm:$0x1]
        %v2573 = vsel %vm520, %v2570, 0.0
        %2574 = vadd.xlane.f32.xlu0 %v2573
        %v2575 = vpop.xlane.xlu0 %2574
        %v2576 = vmul.f32 %v2575, %v524
        %v2577 = vsub.f32 %v2570, %v2576
        %v2578 = vmul.f32 %v2577, %v2577
        %v2579 = vsel %vm520, %v2578, 0.0
        %2580 = vadd.xlane.f32.xlu0 %v2579
        %v2581 = vpop.xlane.xlu0 %2580
        %v2582 = vmul.f32 %v2581, %v524
        %v2583 = vadd.f32 %v2582, 1e-05
        %v2584 = vrsqrt.pop %v2583
        %v2585 = vmul.f32 %v2577, %v2584
        %v2587 = vlaneseq
        %v2588 = vshrl.u32 %v2587, 7
        %v2589 = vsub.s32 0, %v2588
        %v2590 = vrot.slane %v2571, %v2589
        %v2592 = vmul.f32 %v2585, %v2590
        %v2594 = vlaneseq
        %v2595 = vshrl.u32 %v2594, 7
        %v2596 = vsub.s32 0, %v2595
        %v2597 = vrot.slane %v2572, %v2596
        %v2599 = vadd.f32 %v2592, %v2597
        %v2600 = vld [vmem:[%s12] sm:$0xff]
        %v2601 = vld [vmem:[%s12 + $0x8] sm:$0xff]
        %v2602 = vld [vmem:[%s12 + $0x10] sm:$0xff]
        %v2603 = vld [vmem:[%s12 + $0x18] sm:$0xff]
        %v2604 = vld [vmem:[%s13] sm:$0x1]
        %v2606 = vlaneseq
        %v2607 = vshrl.u32 %v2606, 7
        %v2608 = vsub.s32 0, %v2607
        %v2609 = vrot.slane %v2604, %v2608
        %v2612 = vsel %vm520, %v2599, 0
        %2614 = vmatprep.subr.mxu0 0.0
        %2615 = vmatpush1.msra.mxu0 %v2600
        %2616 = vmatprep.subr.mxu0 0.0
        %2617 = vmatpush1.msra.mxu0 %v2601
        %2618 = vmatprep.subr.mxu0 0.0
        %2619 = vmatpush1.msra.mxu0 %v2602
        %2620 = vmatprep.subr.mxu0 0.0
        %2621 = vmatpush1.msra.mxu0 %v2603
        %2622 = vmatprep.subr.mxu0 0.0
        %2623 = vmatpush1.msra.mxu0 0.0
        %2624 = vmatprep.subr.mxu0 0.0
        %2625 = vmatpush1.msra.mxu0 0.0
        %2626 = vmatprep.subr.mxu0 0.0
        %2627 = vmatpush1.msra.mxu0 0.0
        %2628 = vmatprep.subr.mxu0 0.0
        %2629 = vmatpush1.msra.mxu0 0.0
        %2630 = vmatprep.subr.mxu0 0.0
        %2631 = vmatpush1.msra.mxu0 0.0
        %2632 = vmatprep.subr.mxu0 0.0
        %2633 = vmatpush1.msra.mxu0 0.0
        %2634 = vmatprep.subr.mxu0 0.0
        %2635 = vmatpush1.msra.mxu0 0.0
        %2636 = vmatprep.subr.mxu0 0.0
        %2637 = vmatpush1.msra.mxu0 0.0
        %2638 = vmatprep.subr.mxu0 0.0
        %2639 = vmatpush1.msra.mxu0 0.0
        %2640 = vmatprep.subr.mxu0 0.0
        %2641 = vmatpush1.msra.mxu0 0.0
        %2642 = vmatprep.subr.mxu0 0.0
        %2643 = vmatpush1.msra.mxu0 0.0
        %2644 = vmatprep.subr.mxu0 0.0
        %2645 = vmatpush1.msra.mxu0 0.0
        %2646 = vmatprep.subr.mxu0 0.0
        %2647 = vmatpush1.msra.mxu0 0.0
        %2648 = vmatprep.subr.mxu0 0.0
        %2649 = vmatpush1.msra.mxu0 0.0
        %2650 = vmatprep.subr.mxu0 0.0
        %2651 = vmatpush1.msra.mxu0 0.0
        %2652 = vmatprep.subr.mxu0 0.0
        %2653 = vmatpush1.msra.mxu0 0.0
        %2654 = vmatprep.subr.mxu0 0.0
        %2655 = vmatpush1.msra.mxu0 0.0
        %2656 = vmatprep.subr.mxu0 0.0
        %2657 = vmatpush1.msra.mxu0 0.0
        %2658 = vmatprep.subr.mxu0 0.0
        %2659 = vmatpush1.msra.mxu0 0.0
        %2660 = vmatprep.subr.mxu0 0.0
        %2661 = vmatpush1.msra.mxu0 0.0
        %2662 = vmatprep.subr.mxu0 0.0
        %2663 = vmatpush1.msra.mxu0 0.0
        %2664 = vmatprep.subr.mxu0 0.0
        %2665 = vmatpush1.msra.mxu0 0.0
        %2666 = vmatprep.subr.mxu0 0.0
        %2667 = vmatpush1.msra.mxu0 0.0
        %2668 = vmatprep.subr.mxu0 0.0
        %2669 = vmatpush1.msra.mxu0 0.0
        %2670 = vmatprep.subr.mxu0 0.0
        %2671 = vmatpush1.msra.mxu0 0.0
        %2672 = vmatprep.subr.mxu0 0.0
        %2673 = vmatpush1.msra.mxu0 0.0
        %2674 = vmatprep.subr.mxu0 0.0
        %2675 = vmatpush1.msra.mxu0 0.0
        %2676 = vmatprep.subr.mxu0 0.0
        %2677 = vmatpush1.msra.mxu0 0.0
        %2678 = vmatprep.mubr.f32.mxu0 0.0
        %2679 = vmatmul.mubr.f32.gmra.mrb[0].mxu0 %v2612
        %v2680 = vpop.f32.mrb[0].mxu0
        %v2681 = vadd.f32 %v2609, %v2680
        %v2682 = vpop.f32.mrb[0].mxu0
        %2683 = vdwg.mxu0
        %v2684 = vmul.f32 %v2681, 0.5
        %v2685 = vmul.f32 %v2681, 0.70710677
        %v2686 = vand.u32 2147483647, %v2685
        %v2687 = vmul.f32 %v2686, 0.3275911
        %v2688 = vadd.f32 %v2687, 1.0
        %v2689 = vrcp.pop %v2688
        %v2690 = vmul.f32 1.0, %v2689
        %v2691 = vmul.f32 %v2690, 1.0614054
        %v2692 = vadd.f32 %v2691, -1.4531521
        %v2693 = vmul.f32 %v2690, %v2692
        %v2694 = vadd.f32 %v2693, 1.4214138
        %v2695 = vmul.f32 %v2690, %v2694
        %v2696 = vadd.f32 %v2695, -0.28449672
        %v2697 = vmul.f32 %v2690, %v2696
        %v2698 = vadd.f32 %v2697, 0.2548296
        %v2699 = vmul.f32 %v2690, %v2698
        %v2700 = vsub.f32 0.0, %v2686
        %v2701 = vmul.f32 %v2700, %v2686
        %v2702 = vmul.f32 %v2701, 1.442695
        %v2703 = vpow.pop %v2702
        %v2704 = vmul.f32 %v2699, %v2703
        %v2705 = vsub.f32 1.0, %v2704
        %vm2706 = vcmp.ge.f32.partialorder %v2685, 0.0
        %v2707 = vsub.f32 0.0, %v2705
        %v2708 = vsel %vm2706, %v2705, %v2707
        %v2709 = vadd.f32 %v2708, 1.0
        %v2710 = vmul.f32 %v2684, %v2709
        %v2711 = vld [vmem:[%s14] sm:$0xff]
        %v2712 = vld [vmem:[%s14 + $0x8] sm:$0xff]
        %v2713 = vld [vmem:[%s14 + $0x10] sm:$0xff]
        %v2714 = vld [vmem:[%s14 + $0x18] sm:$0xff]
        %v2715 = vld [vmem:[%s14 + $0x20] sm:$0xff]
        %v2716 = vld [vmem:[%s14 + $0x28] sm:$0xff]
        %v2717 = vld [vmem:[%s14 + $0x30] sm:$0xff]
        %v2718 = vld [vmem:[%s14 + $0x38] sm:$0xff]
        %v2719 = vld [vmem:[%s15] sm:$0x1]
        %v2721 = vlaneseq
        %v2722 = vshrl.u32 %v2721, 7
        %v2723 = vsub.s32 0, %v2722
        %v2724 = vrot.slane %v2719, %v2723
        %vm2726 = vcmask 523264
        %v2728 = vsel %vm2726, %v2710, 0
        %2730 = vmatprep.subr.mxu0 0.0
        %2731 = vmatpush1.msra.mxu0 %v2711
        %2732 = vmatprep.subr.mxu0 0.0
        %2733 = vmatpush1.msra.mxu0 %v2712
        %2734 = vmatprep.subr.mxu0 0.0
        %2735 = vmatpush1.msra.mxu0 %v2713
        %2736 = vmatprep.subr.mxu0 0.0
        %2737 = vmatpush1.msra.mxu0 %v2714
        %2738 = vmatprep.subr.mxu0 0.0
        %2739 = vmatpush1.msra.mxu0 %v2715
        %2740 = vmatprep.subr.mxu0 0.0
        %2741 = vmatpush1.msra.mxu0 %v2716
        %2742 = vmatprep.subr.mxu0 0.0
        %2743 = vmatpush1.msra.mxu0 %v2717
        %2744 = vmatprep.subr.mxu0 0.0
        %2745 = vmatpush1.msra.mxu0 %v2718
        %2746 = vmatprep.subr.mxu0 0.0
        %2747 = vmatpush1.msra.mxu0 0.0
        %2748 = vmatprep.subr.mxu0 0.0
        %2749 = vmatpush1.msra.mxu0 0.0
        %2750 = vmatprep.subr.mxu0 0.0
        %2751 = vmatpush1.msra.mxu0 0.0
        %2752 = vmatprep.subr.mxu0 0.0
        %2753 = vmatpush1.msra.mxu0 0.0
        %2754 = vmatprep.subr.mxu0 0.0
        %2755 = vmatpush1.msra.mxu0 0.0
        %2756 = vmatprep.subr.mxu0 0.0
        %2757 = vmatpush1.msra.mxu0 0.0
        %2758 = vmatprep.subr.mxu0 0.0
        %2759 = vmatpush1.msra.mxu0 0.0
        %2760 = vmatprep.subr.mxu0 0.0
        %2761 = vmatpush1.msra.mxu0 0.0
        %2762 = vmatprep.subr.mxu0 0.0
        %2763 = vmatpush1.msra.mxu0 0.0
        %2764 = vmatprep.subr.mxu0 0.0
        %2765 = vmatpush1.msra.mxu0 0.0
        %2766 = vmatprep.subr.mxu0 0.0
        %2767 = vmatpush1.msra.mxu0 0.0
        %2768 = vmatprep.subr.mxu0 0.0
        %2769 = vmatpush1.msra.mxu0 0.0
        %2770 = vmatprep.subr.mxu0 0.0
        %2771 = vmatpush1.msra.mxu0 0.0
        %2772 = vmatprep.subr.mxu0 0.0
        %2773 = vmatpush1.msra.mxu0 0.0
        %2774 = vmatprep.subr.mxu0 0.0
        %2775 = vmatpush1.msra.mxu0 0.0
        %2776 = vmatprep.subr.mxu0 0.0
        %2777 = vmatpush1.msra.mxu0 0.0
        %2778 = vmatprep.subr.mxu0 0.0
        %2779 = vmatpush1.msra.mxu0 0.0
        %2780 = vmatprep.subr.mxu0 0.0
        %2781 = vmatpush1.msra.mxu0 0.0
        %2782 = vmatprep.subr.mxu0 0.0
        %2783 = vmatpush1.msra.mxu0 0.0
        %2784 = vmatprep.subr.mxu0 0.0
        %2785 = vmatpush1.msra.mxu0 0.0
        %2786 = vmatprep.subr.mxu0 0.0
        %2787 = vmatpush1.msra.mxu0 0.0
        %2788 = vmatprep.subr.mxu0 0.0
        %2789 = vmatpush1.msra.mxu0 0.0
        %2790 = vmatprep.subr.mxu0 0.0
        %2791 = vmatpush1.msra.mxu0 0.0
        %2792 = vmatprep.subr.mxu0 0.0
        %2793 = vmatpush1.msra.mxu0 0.0
        %2794 = vmatprep.mubr.f32.mxu0 0.0
        %2795 = vmatmul.mubr.f32.gmra.mrb[0].mxu0 %v2728
        %v2796 = vpop.f32.mrb[0].mxu0
        %v2797 = vadd.f32 %v2724, %v2796
        %v2798 = vpop.f32.mrb[0].mxu0
        %2799 = vdwg.mxu0
        %v2800 = vadd.f32 %v2570, %v2797
        %2801 = vst.msk [vmem:[%s512] sm:$0xff] %vm520, %v2800
        %s2802 = sand.u32 %s379, 1
        %s2803 = scalar_lea.sflag [#allocation4], %s2802
        %s2804 = sand.u32 %s379, 1
        %s2805 = smul.addr %s2804, 8
        %s2806 = scalar_lea.vmem [#allocation3], %s2805
        // Predicated region
        $region85: #{tpu_custom_call.1} parent=83 // pred_check
          %p2807 = pneg %p389
        $region86: #{tpu_custom_call.1} parent=83 // pred_check_branch
          %2809 = sbr.rel (%p2807) target = $region88
        $region87: #{tpu_custom_call.1} parent=83 // pred_region
          %s2811 = ssub.s32 128, 128
          %2812 = vsyncadd %s2803, %s2811
          %s2813 = smul.addr %s30, 128
          %s2814 = scalar_lea.hbm %s16, %s2813
          %s2816 = sshll.u32 %s2806, 4
          %s2817 = int_to_ptr.vmem [resolvable:$true] %s2816
          %2819 = dma.vmem_to_hbm [thread:$0]  %s2817, 128, %s2814, %s2803
        $region88: #{tpu_custom_call.1} parent=83 // pred_fallthru
          _
      $region84: #{tpu_custom_call.1} parent=5 // pred_fallthru
        _
      %p2820 = scmp.le.s32.totalorder 2, %s25
      // Predicated region
      $region89: #{tpu_custom_call.1} parent=5 // pred_check
        %p2821 = pneg %p2820
      $region90: #{tpu_custom_call.1} parent=5 // pred_check_branch
        %2823 = sbr.rel (%p2821) target = $region92
      $region91: #{tpu_custom_call.1} parent=5 // pred_region
        %s2824 = ssub.s32 %s25, 2
        // Predicated region
        $region93: #{tpu_custom_call.1} parent=91 // pred_check
          %p2825 = pneg %p395
        $region94: #{tpu_custom_call.1} parent=91 // pred_check_branch
          %2827 = sbr.rel (%p2825) target = $region96
        $region95: #{tpu_custom_call.1} parent=91 // pred_region
          %s2828 = sand.u32 %s380, 1
          %s2829 = scalar_lea.sflag [#allocation4], %s2828
          %s2830 = sand.u32 %s380, 1
          %s2831 = smul.addr %s2830, 8
          %s2832 = scalar_lea.vmem [#allocation3], %s2831
          %2833 = dma.done %s2829, 128
        $region96: #{tpu_custom_call.1} parent=91 // pred_fallthru
          _
      $region92: #{tpu_custom_call.1} parent=5 // pred_fallthru
        _
    $region6: #{tpu_custom_call.1} parent=1 // loop_footer
      %s29 = sadd.s32 1, %s25
    $region7: #{tpu_custom_call.1} parent=1 // loop_footer_branch
      %24 = sbr.rel target = $region3
    $region8: #{tpu_custom_call.1} parent=1 // loop_exit
      _
    %2834 = vsyncpa [#allocation4], 1
    %s2835 = scalar_lea.sflag [#allocation4], 1
    %2836 = vsyncpa %s2835, 1

</llo_original>
